<compile_context>
chip_gen: v6e
topology: v6e:2x2x1
jax: 0.10.0
libtpu: 0.0.40
codegen_flags: <defaults>
</compile_context>

<pallas_src>
import math

import jax
import jax.numpy as jnp
from jax.experimental import pallas as pl
from jax.experimental.pallas import tpu as pltpu

# ---- small config consistent with the PyTorch module's constructor ----
BATCH = 2
IMG = 32
CHANNELS = 3
PATCH = 8
EMBED = 128
HEADS = 4
HEAD_DIM = EMBED // HEADS
MLP = 256
LAYERS = 2
CLASSES = 16
NUM_PATCHES = (IMG // PATCH) ** 2            # 16
SEQ = NUM_PATCHES + 1                        # 17 (class token + patches)
SEQ_PAD = 24                                 # padded to a sublane multiple of 8
PATCH_DIM = CHANNELS * PATCH * PATCH         # 192
CLASSES_PAD = 128                            # lane-dense classifier output
LN_EPS = 1e-5
ATTN_SCALE = 1.0 / math.sqrt(HEAD_DIM)


# ----------------------------- in-kernel math helpers -----------------------------
def _layernorm(x, g, b):
    """PyTorch-style LayerNorm (biased variance) over the last (lane) axis."""
    mean = jnp.mean(x, axis=-1, keepdims=True)
    var = jnp.mean(jnp.square(x - mean), axis=-1, keepdims=True)
    return (x - mean) * jax.lax.rsqrt(var + LN_EPS) * g + b


def _erf(x):
    # TODO(synk): exact erf-GELU (PyTorch F.gelu) approximated in-kernel with the
    # Abramowitz & Stegun 7.1.26 polynomial (max abs err ~1.5e-7, i.e. at f32
    # precision) to avoid relying on a lax.erf lowering inside Mosaic.
    p = 0.3275911
    a1, a2, a3, a4, a5 = 0.254829592, -0.284496736, 1.421413741, -1.453152027, 1.061405429
    ax = jnp.abs(x)
    t = 1.0 / (1.0 + p * ax)
    poly = ((((a5 * t + a4) * t + a3) * t + a2) * t + a1) * t
    y = 1.0 - poly * jnp.exp(-ax * ax)
    return jnp.where(x >= 0.0, y, -y)


def _gelu_exact(x):
    return 0.5 * x * (1.0 + _erf(x * (1.0 / math.sqrt(2.0))))


def _attention(h_norm, qkv_w, qkv_b, out_w, out_b, key_bias):
    """Multi-head self-attention + output projection for one image.

    All heads handled in one kernel invocation (static unrolled loop).  Q/K/V
    per head live in 32-lane slices of the lane-dense (SEQ_PAD, 3*EMBED) qkv
    activation; the output projection is folded into the head loop (sum of
    per-head slabs of out_w), so the result is produced lane-dense (x, 128)
    without any concatenation or transposes.
    """
    qkv = jnp.dot(h_norm, qkv_w, preferred_element_type=jnp.float32) + qkv_b
    proj = jnp.zeros((SEQ_PAD, EMBED), jnp.float32)
    for h in range(HEADS):
        lo, hi = h * HEAD_DIM, (h + 1) * HEAD_DIM
        qh = qkv[:, lo:hi]
        kh = qkv[:, EMBED + lo:EMBED + hi]
        vh = qkv[:, 2 * EMBED + lo:2 * EMBED + hi]
        # q @ k^T via dot_general contracting the last axes (MXU path, no k.T).
        s = jax.lax.dot_general(qh, kh, (((1,), (1,)), ((), ())),
                                preferred_element_type=jnp.float32)
        s = s * ATTN_SCALE + key_bias            # mask padded key positions
        s = s - jnp.max(s, axis=-1, keepdims=True)
        p = jnp.exp(s)
        p = p * pl.reciprocal(jnp.sum(p, axis=-1, keepdims=True), approx=True)
        oh = jnp.dot(p, vh, preferred_element_type=jnp.float32)          # (SEQ_PAD, HEAD_DIM)
        proj = proj + jnp.dot(oh, out_w[lo:hi, :], preferred_element_type=jnp.float32)
    return proj + out_b


def _encoder_layer(x, ln1_g, ln1_b, qkv_w, qkv_b, out_w, out_b,
                   ln2_g, ln2_b, w1, b1, w2, b2, key_bias):
    """Pre-norm (norm_first=True) nn.TransformerEncoderLayer, eval mode."""
    h = _layernorm(x, ln1_g, ln1_b)
    x = x + _attention(h, qkv_w, qkv_b, out_w, out_b, key_bias)   # dropout = identity (eval)
    h2 = _layernorm(x, ln2_g, ln2_b)
    ff = jnp.dot(h2, w1, preferred_element_type=jnp.float32) + b1
    ff = _gelu_exact(ff)
    ff = jnp.dot(ff, w2, preferred_element_type=jnp.float32) + b2
    return x + ff                                                 # dropout = identity (eval)


# ----------------------------- fused whole-model kernel -----------------------------
def _vit_kernel(patches_ref, patch_w_ref, tok_bias_ref,
                ln1_g_ref, ln1_b_ref, qkv_w_ref, qkv_b_ref, out_w_ref, out_b_ref,
                ln2_g_ref, ln2_b_ref, mlp_w1_ref, mlp_b1_ref, mlp_w2_ref, mlp_b2_ref,
                head_ln_g_ref, head_ln_b_ref, head_w_ref, head_b_ref,
                out_ref):
    # Patch embedding (stride-P conv == per-patch matmul).  patches are already
    # zero-padded to SEQ_PAD rows (row 0 = cls slot, rows SEQ.. = padding); the
    # precomputed tok_bias adds cls+pos / patch_bias+pos / 0 per row, so the
    # token matrix is built with one matmul and one add — no in-kernel concats.
    x = jnp.dot(patches_ref[0], patch_w_ref[...],
                preferred_element_type=jnp.float32) + tok_bias_ref[...]    # (SEQ_PAD, E)
    # embedding dropout = identity (eval mode)

    # Large negative bias for padded key positions (exp -> 0 after max-subtract).
    kidx = jax.lax.broadcasted_iota(jnp.int32, (1, SEQ_PAD), 1)
    key_bias = jnp.where(kidx >= SEQ, jnp.float32(-1e30), jnp.float32(0.0))

    # Encoder stack: static unroll; all layer weights stay VMEM-resident.
    for l in range(LAYERS):
        x = _encoder_layer(
            x,
            ln1_g_ref[l], ln1_b_ref[l], qkv_w_ref[l], qkv_b_ref[l],
            out_w_ref[l], out_b_ref[l],
            ln2_g_ref[l], ln2_b_ref[l],
            mlp_w1_ref[l], mlp_b1_ref[l], mlp_w2_ref[l], mlp_b2_ref[l],
            key_bias)

    # Classification head on the class token: LayerNorm -> Linear (lane-padded to 128).
    h = _layernorm(x[0:1, :], head_ln_g_ref[...], head_ln_b_ref[...])       # (1, E)
    logits = jnp.dot(h, head_w_ref[...], preferred_element_type=jnp.float32) + head_b_ref[...]
    out_ref[0] = logits                                                     # (1, CLASSES_PAD)


# ----------------------------- wrapper (layout plumbing only) -----------------------------
def _rep_spec(shape):
    """Whole-array block, same block for every grid step (stays VMEM-resident)."""
    if len(shape) == 2:
        return pl.BlockSpec(shape, lambda b: (0, 0))
    return pl.BlockSpec(shape, lambda b: (0, 0, 0))


def vit_forward(x, params):
    B, C, H, W = x.shape
    Hp, Wp = H // PATCH, W // PATCH

    # Patch extraction is pure layout plumbing -> keep in the XLA wrapper.
    patches = (
        x.reshape(B, C, Hp, PATCH, Wp, PATCH)
        .transpose(0, 2, 4, 1, 3, 5)                      # (B, hp, wp, C, ph, pw)
        .reshape(B, Hp * Wp, PATCH_DIM)
    )
    # Zero row 0 (cls slot) and rows SEQ..SEQ_PAD-1 (padding tokens).
    patches_pad = jnp.pad(patches, ((0, 0), (1, SEQ_PAD - SEQ), (0, 0)))    # (B, SEQ_PAD, PATCH_DIM)

    # Per-token additive bias: row 0 = cls + pos[0]; rows 1..SEQ-1 = patch_b + pos; rest 0.
    tok_bias = jnp.concatenate([
        params["cls"] + params["pos"][0:1],
        params["patch_b"] + params["pos"][1:SEQ],
        jnp.zeros((SEQ_PAD - SEQ, EMBED), jnp.float32),
    ], axis=0)                                                              # (SEQ_PAD, EMBED)

    in_specs = [
        pl.BlockSpec((1, SEQ_PAD, PATCH_DIM), lambda b: (b, 0, 0)),         # patches (per image)
        _rep_spec(params["patch_w"].shape),
        _rep_spec((SEQ_PAD, EMBED)),                                        # tok_bias
        _rep_spec(params["ln1_g"].shape), _rep_spec(params["ln1_b"].shape),
        _rep_spec(params["qkv_w"].shape), _rep_spec(params["qkv_b"].shape),
        _rep_spec(params["out_w"].shape), _rep_spec(params["out_b"].shape),
        _rep_spec(params["ln2_g"].shape), _rep_spec(params["ln2_b"].shape),
        _rep_spec(params["mlp_w1"].shape), _rep_spec(params["mlp_b1"].shape),
        _rep_spec(params["mlp_w2"].shape), _rep_spec(params["mlp_b2"].shape),
        _rep_spec(params["head_ln_g"].shape), _rep_spec(params["head_ln_b"].shape),
        _rep_spec(params["head_w"].shape), _rep_spec(params["head_b"].shape),
    ]

    logits_pad = pl.pallas_call(
        _vit_kernel,
        out_shape=jax.ShapeDtypeStruct((B, 1, CLASSES_PAD), jnp.float32),
        grid=(B,),
        in_specs=in_specs,
        out_specs=pl.BlockSpec((1, 1, CLASSES_PAD), lambda b: (b, 0, 0)),
        compiler_params=pltpu.CompilerParams(
            dimension_semantics=("parallel",),            # one image per TensorCore on v7x
            vmem_limit_bytes=16 * 1024 * 1024,            # ~1.3 MB residency; ample headroom
        ),
    )(patches_pad, params["patch_w"], tok_bias,
      params["ln1_g"], params["ln1_b"], params["qkv_w"], params["qkv_b"],
      params["out_w"], params["out_b"],
      params["ln2_g"], params["ln2_b"],
      params["mlp_w1"], params["mlp_b1"], params["mlp_w2"], params["mlp_b2"],
      params["head_ln_g"], params["head_ln_b"], params["head_w"], params["head_b"])

    return logits_pad[:, 0, :CLASSES]


# ----------------------------- parameters -----------------------------
def init_params(key):
    # NOTE: linear weights are stored pre-transposed as (in, out), i.e. W.T of
    # PyTorch's (out, in) nn.Linear layout; qkv_w columns are ordered [q | k | v].
    def nrm(k, shape, scale=0.02):
        return scale * jax.random.normal(k, shape, jnp.float32)

    keys = iter(jax.random.split(key, 32))

    head_w = nrm(next(keys), (EMBED, CLASSES))
    head_w_pad = jnp.zeros((EMBED, CLASSES_PAD), jnp.float32).at[:, :CLASSES].set(head_w)

    params = {
        "patch_w": nrm(next(keys), (PATCH_DIM, EMBED)),      # conv kernel, flattened
        "patch_b": nrm(next(keys), (1, EMBED)),
        "cls": nrm(next(keys), (1, EMBED), scale=1.0),
        "pos": nrm(next(keys), (SEQ, EMBED), scale=1.0),
        "head_ln_g": jnp.ones((1, EMBED), jnp.float32),
        "head_ln_b": jnp.zeros((1, EMBED), jnp.float32),
        "head_w": head_w_pad,                                # zero-padded to 128 output lanes
        "head_b": jnp.zeros((1, CLASSES_PAD), jnp.float32),
        # per-layer weights stacked along a leading LAYERS axis
        "ln1_g": jnp.ones((LAYERS, 1, EMBED), jnp.float32),
        "ln1_b": jnp.zeros((LAYERS, 1, EMBED), jnp.float32),
        "qkv_w": jnp.stack([nrm(next(keys), (EMBED, 3 * EMBED)) for _ in range(LAYERS)]),
        "qkv_b": jnp.zeros((LAYERS, 1, 3 * EMBED), jnp.float32),
        "out_w": jnp.stack([nrm(next(keys), (EMBED, EMBED)) for _ in range(LAYERS)]),
        "out_b": jnp.zeros((LAYERS, 1, EMBED), jnp.float32),
        "ln2_g": jnp.ones((LAYERS, 1, EMBED), jnp.float32),
        "ln2_b": jnp.zeros((LAYERS, 1, EMBED), jnp.float32),
        "mlp_w1": jnp.stack([nrm(next(keys), (EMBED, MLP)) for _ in range(LAYERS)]),
        "mlp_b1": jnp.zeros((LAYERS, 1, MLP), jnp.float32),
        "mlp_w2": jnp.stack([nrm(next(keys), (MLP, EMBED)) for _ in range(LAYERS)]),
        "mlp_b2": jnp.zeros((LAYERS, 1, EMBED), jnp.float32),
    }
    return params


# ----------------------------- main -----------------------------
if __name__ == "__main__":
    key = jax.random.PRNGKey(0)
    k_x, k_p = jax.random.split(key)
    x = jax.random.normal(k_x, (BATCH, CHANNELS, IMG, IMG), jnp.float32)   # NCHW, like PyTorch
    params = init_params(k_p)

    out = jax.jit(vit_forward)(x, params)
    out = jax.block_until_ready(out)

    assert out.shape == (BATCH, CLASSES), out.shape
    assert bool(jnp.all(jnp.isfinite(out)))
    print("KERNEL_OK")
</pallas_src>

<mosaic_0001>
module attributes {stable_mosaic.version = 11 : i64} {
  func.func @_vit_kernel(%arg0: i32, %arg1: memref<1x24x192xf32, #tpu.memory_space<vmem>>, %arg2: memref<192x128xf32, #tpu.memory_space<vmem>>, %arg3: memref<24x128xf32, #tpu.memory_space<vmem>>, %arg4: memref<2x1x128xf32, #tpu.memory_space<vmem>>, %arg5: memref<2x1x128xf32, #tpu.memory_space<vmem>>, %arg6: memref<2x128x384xf32, #tpu.memory_space<vmem>>, %arg7: memref<2x1x384xf32, #tpu.memory_space<vmem>>, %arg8: memref<2x128x128xf32, #tpu.memory_space<vmem>>, %arg9: memref<2x1x128xf32, #tpu.memory_space<vmem>>, %arg10: memref<2x1x128xf32, #tpu.memory_space<vmem>>, %arg11: memref<2x1x128xf32, #tpu.memory_space<vmem>>, %arg12: memref<2x128x256xf32, #tpu.memory_space<vmem>>, %arg13: memref<2x1x256xf32, #tpu.memory_space<vmem>>, %arg14: memref<2x256x128xf32, #tpu.memory_space<vmem>>, %arg15: memref<2x1x128xf32, #tpu.memory_space<vmem>>, %arg16: memref<1x128xf32, #tpu.memory_space<vmem>>, %arg17: memref<1x128xf32, #tpu.memory_space<vmem>>, %arg18: memref<128x128xf32, #tpu.memory_space<vmem>>, %arg19: memref<1x128xf32, #tpu.memory_space<vmem>>, %arg20: memref<1x1x128xf32, #tpu.memory_space<vmem>>) attributes {dimension_semantics = [#tpu.dimension_semantics<parallel>], iteration_bounds = array<i64: 2>, scalar_prefetch = 0 : i64, scratch_operands = 0 : i64, tpu.core_type = #tpu.core_type<tc>, window_params = [{transform_indices = @transform_0, window_bounds = array<i64: 1, 24, 192>}, {pipeline_mode = #tpu.pipeline_mode<synchronous>, transform_indices = @transform_1, window_bounds = array<i64: 192, 128>}, {pipeline_mode = #tpu.pipeline_mode<synchronous>, transform_indices = @transform_2, window_bounds = array<i64: 24, 128>}, {pipeline_mode = #tpu.pipeline_mode<synchronous>, transform_indices = @transform_3, window_bounds = array<i64: 2, 1, 128>}, {pipeline_mode = #tpu.pipeline_mode<synchronous>, transform_indices = @transform_4, window_bounds = array<i64: 2, 1, 128>}, {pipeline_mode = #tpu.pipeline_mode<synchronous>, transform_indices = @transform_5, window_bounds = array<i64: 2, 128, 384>}, {pipeline_mode = #tpu.pipeline_mode<synchronous>, transform_indices = @transform_6, window_bounds = array<i64: 2, 1, 384>}, {pipeline_mode = #tpu.pipeline_mode<synchronous>, transform_indices = @transform_7, window_bounds = array<i64: 2, 128, 128>}, {pipeline_mode = #tpu.pipeline_mode<synchronous>, transform_indices = @transform_8, window_bounds = array<i64: 2, 1, 128>}, {pipeline_mode = #tpu.pipeline_mode<synchronous>, transform_indices = @transform_9, window_bounds = array<i64: 2, 1, 128>}, {pipeline_mode = #tpu.pipeline_mode<synchronous>, transform_indices = @transform_10, window_bounds = array<i64: 2, 1, 128>}, {pipeline_mode = #tpu.pipeline_mode<synchronous>, transform_indices = @transform_11, window_bounds = array<i64: 2, 128, 256>}, {pipeline_mode = #tpu.pipeline_mode<synchronous>, transform_indices = @transform_12, window_bounds = array<i64: 2, 1, 256>}, {pipeline_mode = #tpu.pipeline_mode<synchronous>, transform_indices = @transform_13, window_bounds = array<i64: 2, 256, 128>}, {pipeline_mode = #tpu.pipeline_mode<synchronous>, transform_indices = @transform_14, window_bounds = array<i64: 2, 1, 128>}, {pipeline_mode = #tpu.pipeline_mode<synchronous>, transform_indices = @transform_15, window_bounds = array<i64: 1, 128>}, {pipeline_mode = #tpu.pipeline_mode<synchronous>, transform_indices = @transform_16, window_bounds = array<i64: 1, 128>}, {pipeline_mode = #tpu.pipeline_mode<synchronous>, transform_indices = @transform_17, window_bounds = array<i64: 128, 128>}, {pipeline_mode = #tpu.pipeline_mode<synchronous>, transform_indices = @transform_18, window_bounds = array<i64: 1, 128>}, {transform_indices = @transform_19, window_bounds = array<i64: 1, 1, 128>}]} {
    %c0 = arith.constant 0 : index
    %c0_0 = arith.constant 0 : index
    %c0_1 = arith.constant 0 : index
    %0 = vector.load %arg1[%c0, %c0_0, %c0_1] : memref<1x24x192xf32, #tpu.memory_space<vmem>>, vector<1x24x192xf32>
    %1 = vector.shape_cast %0 : vector<1x24x192xf32> to vector<24x192xf32>
    %c0_2 = arith.constant 0 : index
    %c0_3 = arith.constant 0 : index
    %2 = vector.load %arg2[%c0_2, %c0_3] : memref<192x128xf32, #tpu.memory_space<vmem>>, vector<192x128xf32>
    %cst = arith.constant dense<0.000000e+00> : vector<24x128xf32>
    %3 = tpu.matmul %1, %2, %cst {dimension_numbers = #tpu.dot_dimension_numbers<[1], [0], [0], [1], [0, 0, 1, 1], [], []>} : vector<24x192xf32>, vector<192x128xf32>, vector<24x128xf32> -> vector<24x128xf32>
    %c0_4 = arith.constant 0 : index
    %c0_5 = arith.constant 0 : index
    %4 = vector.load %arg3[%c0_4, %c0_5] : memref<24x128xf32, #tpu.memory_space<vmem>>, vector<24x128xf32>
    %5 = arith.addf %3, %4 : vector<24x128xf32>
    %6 = tpu.iota {dimensions = array<i32: 1>} : vector<1x24xi32>
    %c17_i32 = arith.constant 17 : i32
    %7 = vector.broadcast %c17_i32 : i32 to vector<1x24xi32>
    %8 = arith.cmpi sge, %6, %7 : vector<1x24xi32>
    %cst_6 = arith.constant -1.000000e+30 : f32
    %cst_7 = arith.constant 0.000000e+00 : f32
    %9 = vector.broadcast %cst_6 : f32 to vector<1x24xf32>
    %10 = vector.broadcast %cst_7 : f32 to vector<1x24xf32>
    %11 = arith.select %8, %9, %10 : vector<1x24xi1>, vector<1x24xf32>
    %c0_8 = arith.constant 0 : index
    %c0_9 = arith.constant 0 : index
    %c0_10 = arith.constant 0 : index
    %12 = vector.load %arg4[%c0_8, %c0_9, %c0_10] : memref<2x1x128xf32, #tpu.memory_space<vmem>>, vector<1x1x128xf32>
    %13 = vector.shape_cast %12 : vector<1x1x128xf32> to vector<1x128xf32>
    %c0_11 = arith.constant 0 : index
    %c0_12 = arith.constant 0 : index
    %c0_13 = arith.constant 0 : index
    %14 = vector.load %arg5[%c0_11, %c0_12, %c0_13] : memref<2x1x128xf32, #tpu.memory_space<vmem>>, vector<1x1x128xf32>
    %15 = vector.shape_cast %14 : vector<1x1x128xf32> to vector<1x128xf32>
    %c0_14 = arith.constant 0 : index
    %c0_15 = arith.constant 0 : index
    %c0_16 = arith.constant 0 : index
    %16 = vector.load %arg6[%c0_14, %c0_15, %c0_16] : memref<2x128x384xf32, #tpu.memory_space<vmem>>, vector<1x128x384xf32>
    %17 = vector.shape_cast %16 : vector<1x128x384xf32> to vector<128x384xf32>
    %c0_17 = arith.constant 0 : index
    %c0_18 = arith.constant 0 : index
    %c0_19 = arith.constant 0 : index
    %18 = vector.load %arg7[%c0_17, %c0_18, %c0_19] : memref<2x1x384xf32, #tpu.memory_space<vmem>>, vector<1x1x384xf32>
    %19 = vector.shape_cast %18 : vector<1x1x384xf32> to vector<1x384xf32>
    %c0_20 = arith.constant 0 : index
    %c0_21 = arith.constant 0 : index
    %c0_22 = arith.constant 0 : index
    %20 = vector.load %arg8[%c0_20, %c0_21, %c0_22] : memref<2x128x128xf32, #tpu.memory_space<vmem>>, vector<1x128x128xf32>
    %21 = vector.shape_cast %20 : vector<1x128x128xf32> to vector<128x128xf32>
    %c0_23 = arith.constant 0 : index
    %c0_24 = arith.constant 0 : index
    %c0_25 = arith.constant 0 : index
    %22 = vector.load %arg9[%c0_23, %c0_24, %c0_25] : memref<2x1x128xf32, #tpu.memory_space<vmem>>, vector<1x1x128xf32>
    %23 = vector.shape_cast %22 : vector<1x1x128xf32> to vector<1x128xf32>
    %c0_26 = arith.constant 0 : index
    %c0_27 = arith.constant 0 : index
    %c0_28 = arith.constant 0 : index
    %24 = vector.load %arg10[%c0_26, %c0_27, %c0_28] : memref<2x1x128xf32, #tpu.memory_space<vmem>>, vector<1x1x128xf32>
    %25 = vector.shape_cast %24 : vector<1x1x128xf32> to vector<1x128xf32>
    %c0_29 = arith.constant 0 : index
    %c0_30 = arith.constant 0 : index
    %c0_31 = arith.constant 0 : index
    %26 = vector.load %arg11[%c0_29, %c0_30, %c0_31] : memref<2x1x128xf32, #tpu.memory_space<vmem>>, vector<1x1x128xf32>
    %27 = vector.shape_cast %26 : vector<1x1x128xf32> to vector<1x128xf32>
    %c0_32 = arith.constant 0 : index
    %c0_33 = arith.constant 0 : index
    %c0_34 = arith.constant 0 : index
    %28 = vector.load %arg12[%c0_32, %c0_33, %c0_34] : memref<2x128x256xf32, #tpu.memory_space<vmem>>, vector<1x128x256xf32>
    %29 = vector.shape_cast %28 : vector<1x128x256xf32> to vector<128x256xf32>
    %c0_35 = arith.constant 0 : index
    %c0_36 = arith.constant 0 : index
    %c0_37 = arith.constant 0 : index
    %30 = vector.load %arg13[%c0_35, %c0_36, %c0_37] : memref<2x1x256xf32, #tpu.memory_space<vmem>>, vector<1x1x256xf32>
    %31 = vector.shape_cast %30 : vector<1x1x256xf32> to vector<1x256xf32>
    %c0_38 = arith.constant 0 : index
    %c0_39 = arith.constant 0 : index
    %c0_40 = arith.constant 0 : index
    %32 = vector.load %arg14[%c0_38, %c0_39, %c0_40] : memref<2x256x128xf32, #tpu.memory_space<vmem>>, vector<1x256x128xf32>
    %33 = vector.shape_cast %32 : vector<1x256x128xf32> to vector<256x128xf32>
    %c0_41 = arith.constant 0 : index
    %c0_42 = arith.constant 0 : index
    %c0_43 = arith.constant 0 : index
    %34 = vector.load %arg15[%c0_41, %c0_42, %c0_43] : memref<2x1x128xf32, #tpu.memory_space<vmem>>, vector<1x1x128xf32>
    %35 = vector.shape_cast %34 : vector<1x1x128xf32> to vector<1x128xf32>
    %cst_44 = arith.constant dense<0.000000e+00> : vector<24xf32>
    %36 = vector.multi_reduction <add>, %5, %cst_44 [1] : vector<24x128xf32> to vector<24xf32>
    %37 = vector.shape_cast %36 : vector<24xf32> to vector<24x1xf32>
    %cst_45 = arith.constant 1.280000e+02 : f32
    %38 = vector.broadcast %cst_45 : f32 to vector<24x1xf32>
    %39 = arith.divf %37, %38 : vector<24x1xf32>
    %40 = vector.broadcast %39 : vector<24x1xf32> to vector<24x128xf32>
    %41 = arith.subf %5, %40 : vector<24x128xf32>
    %42 = arith.mulf %41, %41 : vector<24x128xf32>
    %cst_46 = arith.constant dense<0.000000e+00> : vector<24xf32>
    %43 = vector.multi_reduction <add>, %42, %cst_46 [1] : vector<24x128xf32> to vector<24xf32>
    %44 = vector.shape_cast %43 : vector<24xf32> to vector<24x1xf32>
    %cst_47 = arith.constant 1.280000e+02 : f32
    %45 = vector.broadcast %cst_47 : f32 to vector<24x1xf32>
    %46 = arith.divf %44, %45 : vector<24x1xf32>
    %47 = vector.broadcast %39 : vector<24x1xf32> to vector<24x128xf32>
    %48 = arith.subf %5, %47 : vector<24x128xf32>
    %cst_48 = arith.constant 9.99999974E-6 : f32
    %49 = vector.broadcast %cst_48 : f32 to vector<24x1xf32>
    %50 = arith.addf %46, %49 : vector<24x1xf32>
    %51 = math.rsqrt %50 : vector<24x1xf32>
    %52 = vector.broadcast %51 : vector<24x1xf32> to vector<24x128xf32>
    %53 = arith.mulf %48, %52 : vector<24x128xf32>
    %54 = vector.broadcast %13 : vector<1x128xf32> to vector<24x128xf32>
    %55 = arith.mulf %53, %54 : vector<24x128xf32>
    %56 = vector.broadcast %15 : vector<1x128xf32> to vector<24x128xf32>
    %57 = arith.addf %55, %56 : vector<24x128xf32>
    %cst_49 = arith.constant dense<0.000000e+00> : vector<24x384xf32>
    %58 = tpu.matmul %57, %17, %cst_49 {dimension_numbers = #tpu.dot_dimension_numbers<[1], [0], [0], [1], [0, 0, 1, 1], [], []>} : vector<24x128xf32>, vector<128x384xf32>, vector<24x384xf32> -> vector<24x384xf32>
    %59 = vector.broadcast %19 : vector<1x384xf32> to vector<24x384xf32>
    %60 = arith.addf %58, %59 : vector<24x384xf32>
    %cst_50 = arith.constant 0.000000e+00 : f32
    %61 = vector.broadcast %cst_50 : f32 to vector<24x128xf32>
    %62 = vector.extract_strided_slice %60 {offsets = [0, 0], sizes = [24, 32], strides = [1, 1]} : vector<24x384xf32> to vector<24x32xf32>
    %63 = vector.extract_strided_slice %60 {offsets = [0, 128], sizes = [24, 32], strides = [1, 1]} : vector<24x384xf32> to vector<24x32xf32>
    %64 = vector.extract_strided_slice %60 {offsets = [0, 256], sizes = [24, 32], strides = [1, 1]} : vector<24x384xf32> to vector<24x32xf32>
    %cst_51 = arith.constant dense<0.000000e+00> : vector<24x24xf32>
    %65 = tpu.matmul %62, %63, %cst_51 {dimension_numbers = #tpu.dot_dimension_numbers<[1], [1], [0], [0], [0, 0, 1, 0], [], []>} : vector<24x32xf32>, vector<24x32xf32>, vector<24x24xf32> -> vector<24x24xf32>
    %cst_52 = arith.constant 0.176776692 : f32
    %66 = vector.broadcast %cst_52 : f32 to vector<24x24xf32>
    %67 = arith.mulf %65, %66 : vector<24x24xf32>
    %68 = vector.broadcast %11 : vector<1x24xf32> to vector<24x24xf32>
    %69 = arith.addf %67, %68 : vector<24x24xf32>
    %cst_53 = arith.constant dense<0xFF800000> : vector<24xf32>
    %70 = vector.multi_reduction <maximumf>, %69, %cst_53 [1] : vector<24x24xf32> to vector<24xf32>
    %71 = vector.shape_cast %70 : vector<24xf32> to vector<24x1xf32>
    %72 = vector.broadcast %71 : vector<24x1xf32> to vector<24x24xf32>
    %73 = arith.subf %69, %72 : vector<24x24xf32>
    %74 = math.exp %73 : vector<24x24xf32>
    %cst_54 = arith.constant dense<0.000000e+00> : vector<24xf32>
    %75 = vector.multi_reduction <add>, %74, %cst_54 [1] : vector<24x24xf32> to vector<24xf32>
    %76 = vector.shape_cast %75 : vector<24xf32> to vector<24x1xf32>
    %77 = tpu.reciprocal %76 {approx = true} : vector<24x1xf32> -> vector<24x1xf32>
    %78 = vector.broadcast %77 : vector<24x1xf32> to vector<24x24xf32>
    %79 = arith.mulf %74, %78 : vector<24x24xf32>
    %cst_55 = arith.constant dense<0.000000e+00> : vector<24x32xf32>
    %80 = tpu.matmul %79, %64, %cst_55 {dimension_numbers = #tpu.dot_dimension_numbers<[1], [0], [0], [1], [0, 0, 1, 1], [], []>} : vector<24x24xf32>, vector<24x32xf32>, vector<24x32xf32> -> vector<24x32xf32>
    %81 = vector.extract_strided_slice %21 {offsets = [0, 0], sizes = [32, 128], strides = [1, 1]} : vector<128x128xf32> to vector<32x128xf32>
    %cst_56 = arith.constant dense<0.000000e+00> : vector<24x128xf32>
    %82 = tpu.matmul %80, %81, %cst_56 {dimension_numbers = #tpu.dot_dimension_numbers<[1], [0], [0], [1], [0, 0, 1, 1], [], []>} : vector<24x32xf32>, vector<32x128xf32>, vector<24x128xf32> -> vector<24x128xf32>
    %83 = arith.addf %61, %82 : vector<24x128xf32>
    %84 = vector.extract_strided_slice %60 {offsets = [0, 32], sizes = [24, 32], strides = [1, 1]} : vector<24x384xf32> to vector<24x32xf32>
    %85 = vector.extract_strided_slice %60 {offsets = [0, 160], sizes = [24, 32], strides = [1, 1]} : vector<24x384xf32> to vector<24x32xf32>
    %86 = vector.extract_strided_slice %60 {offsets = [0, 288], sizes = [24, 32], strides = [1, 1]} : vector<24x384xf32> to vector<24x32xf32>
    %cst_57 = arith.constant dense<0.000000e+00> : vector<24x24xf32>
    %87 = tpu.matmul %84, %85, %cst_57 {dimension_numbers = #tpu.dot_dimension_numbers<[1], [1], [0], [0], [0, 0, 1, 0], [], []>} : vector<24x32xf32>, vector<24x32xf32>, vector<24x24xf32> -> vector<24x24xf32>
    %cst_58 = arith.constant 0.176776692 : f32
    %88 = vector.broadcast %cst_58 : f32 to vector<24x24xf32>
    %89 = arith.mulf %87, %88 : vector<24x24xf32>
    %90 = vector.broadcast %11 : vector<1x24xf32> to vector<24x24xf32>
    %91 = arith.addf %89, %90 : vector<24x24xf32>
    %cst_59 = arith.constant dense<0xFF800000> : vector<24xf32>
    %92 = vector.multi_reduction <maximumf>, %91, %cst_59 [1] : vector<24x24xf32> to vector<24xf32>
    %93 = vector.shape_cast %92 : vector<24xf32> to vector<24x1xf32>
    %94 = vector.broadcast %93 : vector<24x1xf32> to vector<24x24xf32>
    %95 = arith.subf %91, %94 : vector<24x24xf32>
    %96 = math.exp %95 : vector<24x24xf32>
    %cst_60 = arith.constant dense<0.000000e+00> : vector<24xf32>
    %97 = vector.multi_reduction <add>, %96, %cst_60 [1] : vector<24x24xf32> to vector<24xf32>
    %98 = vector.shape_cast %97 : vector<24xf32> to vector<24x1xf32>
    %99 = tpu.reciprocal %98 {approx = true} : vector<24x1xf32> -> vector<24x1xf32>
    %100 = vector.broadcast %99 : vector<24x1xf32> to vector<24x24xf32>
    %101 = arith.mulf %96, %100 : vector<24x24xf32>
    %cst_61 = arith.constant dense<0.000000e+00> : vector<24x32xf32>
    %102 = tpu.matmul %101, %86, %cst_61 {dimension_numbers = #tpu.dot_dimension_numbers<[1], [0], [0], [1], [0, 0, 1, 1], [], []>} : vector<24x24xf32>, vector<24x32xf32>, vector<24x32xf32> -> vector<24x32xf32>
    %103 = vector.extract_strided_slice %21 {offsets = [32, 0], sizes = [32, 128], strides = [1, 1]} : vector<128x128xf32> to vector<32x128xf32>
    %cst_62 = arith.constant dense<0.000000e+00> : vector<24x128xf32>
    %104 = tpu.matmul %102, %103, %cst_62 {dimension_numbers = #tpu.dot_dimension_numbers<[1], [0], [0], [1], [0, 0, 1, 1], [], []>} : vector<24x32xf32>, vector<32x128xf32>, vector<24x128xf32> -> vector<24x128xf32>
    %105 = arith.addf %83, %104 : vector<24x128xf32>
    %106 = vector.extract_strided_slice %60 {offsets = [0, 64], sizes = [24, 32], strides = [1, 1]} : vector<24x384xf32> to vector<24x32xf32>
    %107 = vector.extract_strided_slice %60 {offsets = [0, 192], sizes = [24, 32], strides = [1, 1]} : vector<24x384xf32> to vector<24x32xf32>
    %108 = vector.extract_strided_slice %60 {offsets = [0, 320], sizes = [24, 32], strides = [1, 1]} : vector<24x384xf32> to vector<24x32xf32>
    %cst_63 = arith.constant dense<0.000000e+00> : vector<24x24xf32>
    %109 = tpu.matmul %106, %107, %cst_63 {dimension_numbers = #tpu.dot_dimension_numbers<[1], [1], [0], [0], [0, 0, 1, 0], [], []>} : vector<24x32xf32>, vector<24x32xf32>, vector<24x24xf32> -> vector<24x24xf32>
    %cst_64 = arith.constant 0.176776692 : f32
    %110 = vector.broadcast %cst_64 : f32 to vector<24x24xf32>
    %111 = arith.mulf %109, %110 : vector<24x24xf32>
    %112 = vector.broadcast %11 : vector<1x24xf32> to vector<24x24xf32>
    %113 = arith.addf %111, %112 : vector<24x24xf32>
    %cst_65 = arith.constant dense<0xFF800000> : vector<24xf32>
    %114 = vector.multi_reduction <maximumf>, %113, %cst_65 [1] : vector<24x24xf32> to vector<24xf32>
    %115 = vector.shape_cast %114 : vector<24xf32> to vector<24x1xf32>
    %116 = vector.broadcast %115 : vector<24x1xf32> to vector<24x24xf32>
    %117 = arith.subf %113, %116 : vector<24x24xf32>
    %118 = math.exp %117 : vector<24x24xf32>
    %cst_66 = arith.constant dense<0.000000e+00> : vector<24xf32>
    %119 = vector.multi_reduction <add>, %118, %cst_66 [1] : vector<24x24xf32> to vector<24xf32>
    %120 = vector.shape_cast %119 : vector<24xf32> to vector<24x1xf32>
    %121 = tpu.reciprocal %120 {approx = true} : vector<24x1xf32> -> vector<24x1xf32>
    %122 = vector.broadcast %121 : vector<24x1xf32> to vector<24x24xf32>
    %123 = arith.mulf %118, %122 : vector<24x24xf32>
    %cst_67 = arith.constant dense<0.000000e+00> : vector<24x32xf32>
    %124 = tpu.matmul %123, %108, %cst_67 {dimension_numbers = #tpu.dot_dimension_numbers<[1], [0], [0], [1], [0, 0, 1, 1], [], []>} : vector<24x24xf32>, vector<24x32xf32>, vector<24x32xf32> -> vector<24x32xf32>
    %125 = vector.extract_strided_slice %21 {offsets = [64, 0], sizes = [32, 128], strides = [1, 1]} : vector<128x128xf32> to vector<32x128xf32>
    %cst_68 = arith.constant dense<0.000000e+00> : vector<24x128xf32>
    %126 = tpu.matmul %124, %125, %cst_68 {dimension_numbers = #tpu.dot_dimension_numbers<[1], [0], [0], [1], [0, 0, 1, 1], [], []>} : vector<24x32xf32>, vector<32x128xf32>, vector<24x128xf32> -> vector<24x128xf32>
    %127 = arith.addf %105, %126 : vector<24x128xf32>
    %128 = vector.extract_strided_slice %60 {offsets = [0, 96], sizes = [24, 32], strides = [1, 1]} : vector<24x384xf32> to vector<24x32xf32>
    %129 = vector.extract_strided_slice %60 {offsets = [0, 224], sizes = [24, 32], strides = [1, 1]} : vector<24x384xf32> to vector<24x32xf32>
    %130 = vector.extract_strided_slice %60 {offsets = [0, 352], sizes = [24, 32], strides = [1, 1]} : vector<24x384xf32> to vector<24x32xf32>
    %cst_69 = arith.constant dense<0.000000e+00> : vector<24x24xf32>
    %131 = tpu.matmul %128, %129, %cst_69 {dimension_numbers = #tpu.dot_dimension_numbers<[1], [1], [0], [0], [0, 0, 1, 0], [], []>} : vector<24x32xf32>, vector<24x32xf32>, vector<24x24xf32> -> vector<24x24xf32>
    %cst_70 = arith.constant 0.176776692 : f32
    %132 = vector.broadcast %cst_70 : f32 to vector<24x24xf32>
    %133 = arith.mulf %131, %132 : vector<24x24xf32>
    %134 = vector.broadcast %11 : vector<1x24xf32> to vector<24x24xf32>
    %135 = arith.addf %133, %134 : vector<24x24xf32>
    %cst_71 = arith.constant dense<0xFF800000> : vector<24xf32>
    %136 = vector.multi_reduction <maximumf>, %135, %cst_71 [1] : vector<24x24xf32> to vector<24xf32>
    %137 = vector.shape_cast %136 : vector<24xf32> to vector<24x1xf32>
    %138 = vector.broadcast %137 : vector<24x1xf32> to vector<24x24xf32>
    %139 = arith.subf %135, %138 : vector<24x24xf32>
    %140 = math.exp %139 : vector<24x24xf32>
    %cst_72 = arith.constant dense<0.000000e+00> : vector<24xf32>
    %141 = vector.multi_reduction <add>, %140, %cst_72 [1] : vector<24x24xf32> to vector<24xf32>
    %142 = vector.shape_cast %141 : vector<24xf32> to vector<24x1xf32>
    %143 = tpu.reciprocal %142 {approx = true} : vector<24x1xf32> -> vector<24x1xf32>
    %144 = vector.broadcast %143 : vector<24x1xf32> to vector<24x24xf32>
    %145 = arith.mulf %140, %144 : vector<24x24xf32>
    %cst_73 = arith.constant dense<0.000000e+00> : vector<24x32xf32>
    %146 = tpu.matmul %145, %130, %cst_73 {dimension_numbers = #tpu.dot_dimension_numbers<[1], [0], [0], [1], [0, 0, 1, 1], [], []>} : vector<24x24xf32>, vector<24x32xf32>, vector<24x32xf32> -> vector<24x32xf32>
    %147 = vector.extract_strided_slice %21 {offsets = [96, 0], sizes = [32, 128], strides = [1, 1]} : vector<128x128xf32> to vector<32x128xf32>
    %cst_74 = arith.constant dense<0.000000e+00> : vector<24x128xf32>
    %148 = tpu.matmul %146, %147, %cst_74 {dimension_numbers = #tpu.dot_dimension_numbers<[1], [0], [0], [1], [0, 0, 1, 1], [], []>} : vector<24x32xf32>, vector<32x128xf32>, vector<24x128xf32> -> vector<24x128xf32>
    %149 = arith.addf %127, %148 : vector<24x128xf32>
    %150 = vector.broadcast %23 : vector<1x128xf32> to vector<24x128xf32>
    %151 = arith.addf %149, %150 : vector<24x128xf32>
    %152 = arith.addf %5, %151 : vector<24x128xf32>
    %cst_75 = arith.constant dense<0.000000e+00> : vector<24xf32>
    %153 = vector.multi_reduction <add>, %152, %cst_75 [1] : vector<24x128xf32> to vector<24xf32>
    %154 = vector.shape_cast %153 : vector<24xf32> to vector<24x1xf32>
    %cst_76 = arith.constant 1.280000e+02 : f32
    %155 = vector.broadcast %cst_76 : f32 to vector<24x1xf32>
    %156 = arith.divf %154, %155 : vector<24x1xf32>
    %157 = vector.broadcast %156 : vector<24x1xf32> to vector<24x128xf32>
    %158 = arith.subf %152, %157 : vector<24x128xf32>
    %159 = arith.mulf %158, %158 : vector<24x128xf32>
    %cst_77 = arith.constant dense<0.000000e+00> : vector<24xf32>
    %160 = vector.multi_reduction <add>, %159, %cst_77 [1] : vector<24x128xf32> to vector<24xf32>
    %161 = vector.shape_cast %160 : vector<24xf32> to vector<24x1xf32>
    %cst_78 = arith.constant 1.280000e+02 : f32
    %162 = vector.broadcast %cst_78 : f32 to vector<24x1xf32>
    %163 = arith.divf %161, %162 : vector<24x1xf32>
    %164 = vector.broadcast %156 : vector<24x1xf32> to vector<24x128xf32>
    %165 = arith.subf %152, %164 : vector<24x128xf32>
    %cst_79 = arith.constant 9.99999974E-6 : f32
    %166 = vector.broadcast %cst_79 : f32 to vector<24x1xf32>
    %167 = arith.addf %163, %166 : vector<24x1xf32>
    %168 = math.rsqrt %167 : vector<24x1xf32>
    %169 = vector.broadcast %168 : vector<24x1xf32> to vector<24x128xf32>
    %170 = arith.mulf %165, %169 : vector<24x128xf32>
    %171 = vector.broadcast %25 : vector<1x128xf32> to vector<24x128xf32>
    %172 = arith.mulf %170, %171 : vector<24x128xf32>
    %173 = vector.broadcast %27 : vector<1x128xf32> to vector<24x128xf32>
    %174 = arith.addf %172, %173 : vector<24x128xf32>
    %cst_80 = arith.constant dense<0.000000e+00> : vector<24x256xf32>
    %175 = tpu.matmul %174, %29, %cst_80 {dimension_numbers = #tpu.dot_dimension_numbers<[1], [0], [0], [1], [0, 0, 1, 1], [], []>} : vector<24x128xf32>, vector<128x256xf32>, vector<24x256xf32> -> vector<24x256xf32>
    %176 = vector.broadcast %31 : vector<1x256xf32> to vector<24x256xf32>
    %177 = arith.addf %175, %176 : vector<24x256xf32>
    %cst_81 = arith.constant 5.000000e-01 : f32
    %178 = vector.broadcast %cst_81 : f32 to vector<24x256xf32>
    %179 = arith.mulf %178, %177 : vector<24x256xf32>
    %cst_82 = arith.constant 0.707106769 : f32
    %180 = vector.broadcast %cst_82 : f32 to vector<24x256xf32>
    %181 = arith.mulf %177, %180 : vector<24x256xf32>
    %182 = math.absf %181 : vector<24x256xf32>
    %cst_83 = arith.constant 0.327591091 : f32
    %183 = vector.broadcast %cst_83 : f32 to vector<24x256xf32>
    %184 = arith.mulf %183, %182 : vector<24x256xf32>
    %cst_84 = arith.constant 1.000000e+00 : f32
    %185 = vector.broadcast %cst_84 : f32 to vector<24x256xf32>
    %186 = arith.addf %185, %184 : vector<24x256xf32>
    %cst_85 = arith.constant 1.000000e+00 : f32
    %187 = vector.broadcast %cst_85 : f32 to vector<24x256xf32>
    %188 = arith.divf %187, %186 : vector<24x256xf32>
    %cst_86 = arith.constant 1.06140542 : f32
    %189 = vector.broadcast %cst_86 : f32 to vector<24x256xf32>
    %190 = arith.mulf %189, %188 : vector<24x256xf32>
    %cst_87 = arith.constant -1.45315206 : f32
    %191 = vector.broadcast %cst_87 : f32 to vector<24x256xf32>
    %192 = arith.addf %190, %191 : vector<24x256xf32>
    %193 = arith.mulf %192, %188 : vector<24x256xf32>
    %cst_88 = arith.constant 1.42141378 : f32
    %194 = vector.broadcast %cst_88 : f32 to vector<24x256xf32>
    %195 = arith.addf %193, %194 : vector<24x256xf32>
    %196 = arith.mulf %195, %188 : vector<24x256xf32>
    %cst_89 = arith.constant -0.284496725 : f32
    %197 = vector.broadcast %cst_89 : f32 to vector<24x256xf32>
    %198 = arith.addf %196, %197 : vector<24x256xf32>
    %199 = arith.mulf %198, %188 : vector<24x256xf32>
    %cst_90 = arith.constant 0.254829586 : f32
    %200 = vector.broadcast %cst_90 : f32 to vector<24x256xf32>
    %201 = arith.addf %199, %200 : vector<24x256xf32>
    %202 = arith.mulf %201, %188 : vector<24x256xf32>
    %cst_91 = arith.constant 0.000000e+00 : f32
    %203 = vector.broadcast %cst_91 : f32 to vector<24x256xf32>
    %204 = arith.subf %203, %182 : vector<24x256xf32>
    %205 = arith.mulf %204, %182 : vector<24x256xf32>
    %206 = math.exp %205 : vector<24x256xf32>
    %207 = arith.mulf %202, %206 : vector<24x256xf32>
    %cst_92 = arith.constant 1.000000e+00 : f32
    %208 = vector.broadcast %cst_92 : f32 to vector<24x256xf32>
    %209 = arith.subf %208, %207 : vector<24x256xf32>
    %cst_93 = arith.constant 0.000000e+00 : f32
    %210 = vector.broadcast %cst_93 : f32 to vector<24x256xf32>
    %211 = arith.cmpf oge, %181, %210 : vector<24x256xf32>
    %cst_94 = arith.constant 0.000000e+00 : f32
    %212 = vector.broadcast %cst_94 : f32 to vector<24x256xf32>
    %213 = arith.subf %212, %209 : vector<24x256xf32>
    %214 = arith.select %211, %209, %213 : vector<24x256xi1>, vector<24x256xf32>
    %cst_95 = arith.constant 1.000000e+00 : f32
    %215 = vector.broadcast %cst_95 : f32 to vector<24x256xf32>
    %216 = arith.addf %215, %214 : vector<24x256xf32>
    %217 = arith.mulf %179, %216 : vector<24x256xf32>
    %cst_96 = arith.constant dense<0.000000e+00> : vector<24x128xf32>
    %218 = tpu.matmul %217, %33, %cst_96 {dimension_numbers = #tpu.dot_dimension_numbers<[1], [0], [0], [1], [0, 0, 1, 1], [], []>} : vector<24x256xf32>, vector<256x128xf32>, vector<24x128xf32> -> vector<24x128xf32>
    %219 = vector.broadcast %35 : vector<1x128xf32> to vector<24x128xf32>
    %220 = arith.addf %218, %219 : vector<24x128xf32>
    %221 = arith.addf %152, %220 : vector<24x128xf32>
    %c1 = arith.constant 1 : index
    %c0_97 = arith.constant 0 : index
    %c0_98 = arith.constant 0 : index
    %222 = vector.load %arg4[%c1, %c0_97, %c0_98] : memref<2x1x128xf32, #tpu.memory_space<vmem>>, vector<1x1x128xf32>
    %223 = vector.shape_cast %222 : vector<1x1x128xf32> to vector<1x128xf32>
    %c1_99 = arith.constant 1 : index
    %c0_100 = arith.constant 0 : index
    %c0_101 = arith.constant 0 : index
    %224 = vector.load %arg5[%c1_99, %c0_100, %c0_101] : memref<2x1x128xf32, #tpu.memory_space<vmem>>, vector<1x1x128xf32>
    %225 = vector.shape_cast %224 : vector<1x1x128xf32> to vector<1x128xf32>
    %c1_102 = arith.constant 1 : index
    %c0_103 = arith.constant 0 : index
    %c0_104 = arith.constant 0 : index
    %226 = vector.load %arg6[%c1_102, %c0_103, %c0_104] : memref<2x128x384xf32, #tpu.memory_space<vmem>>, vector<1x128x384xf32>
    %227 = vector.shape_cast %226 : vector<1x128x384xf32> to vector<128x384xf32>
    %c1_105 = arith.constant 1 : index
    %c0_106 = arith.constant 0 : index
    %c0_107 = arith.constant 0 : index
    %228 = vector.load %arg7[%c1_105, %c0_106, %c0_107] : memref<2x1x384xf32, #tpu.memory_space<vmem>>, vector<1x1x384xf32>
    %229 = vector.shape_cast %228 : vector<1x1x384xf32> to vector<1x384xf32>
    %c1_108 = arith.constant 1 : index
    %c0_109 = arith.constant 0 : index
    %c0_110 = arith.constant 0 : index
    %230 = vector.load %arg8[%c1_108, %c0_109, %c0_110] : memref<2x128x128xf32, #tpu.memory_space<vmem>>, vector<1x128x128xf32>
    %231 = vector.shape_cast %230 : vector<1x128x128xf32> to vector<128x128xf32>
    %c1_111 = arith.constant 1 : index
    %c0_112 = arith.constant 0 : index
    %c0_113 = arith.constant 0 : index
    %232 = vector.load %arg9[%c1_111, %c0_112, %c0_113] : memref<2x1x128xf32, #tpu.memory_space<vmem>>, vector<1x1x128xf32>
    %233 = vector.shape_cast %232 : vector<1x1x128xf32> to vector<1x128xf32>
    %c1_114 = arith.constant 1 : index
    %c0_115 = arith.constant 0 : index
    %c0_116 = arith.constant 0 : index
    %234 = vector.load %arg10[%c1_114, %c0_115, %c0_116] : memref<2x1x128xf32, #tpu.memory_space<vmem>>, vector<1x1x128xf32>
    %235 = vector.shape_cast %234 : vector<1x1x128xf32> to vector<1x128xf32>
    %c1_117 = arith.constant 1 : index
    %c0_118 = arith.constant 0 : index
    %c0_119 = arith.constant 0 : index
    %236 = vector.load %arg11[%c1_117, %c0_118, %c0_119] : memref<2x1x128xf32, #tpu.memory_space<vmem>>, vector<1x1x128xf32>
    %237 = vector.shape_cast %236 : vector<1x1x128xf32> to vector<1x128xf32>
    %c1_120 = arith.constant 1 : index
    %c0_121 = arith.constant 0 : index
    %c0_122 = arith.constant 0 : index
    %238 = vector.load %arg12[%c1_120, %c0_121, %c0_122] : memref<2x128x256xf32, #tpu.memory_space<vmem>>, vector<1x128x256xf32>
    %239 = vector.shape_cast %238 : vector<1x128x256xf32> to vector<128x256xf32>
    %c1_123 = arith.constant 1 : index
    %c0_124 = arith.constant 0 : index
    %c0_125 = arith.constant 0 : index
    %240 = vector.load %arg13[%c1_123, %c0_124, %c0_125] : memref<2x1x256xf32, #tpu.memory_space<vmem>>, vector<1x1x256xf32>
    %241 = vector.shape_cast %240 : vector<1x1x256xf32> to vector<1x256xf32>
    %c1_126 = arith.constant 1 : index
    %c0_127 = arith.constant 0 : index
    %c0_128 = arith.constant 0 : index
    %242 = vector.load %arg14[%c1_126, %c0_127, %c0_128] : memref<2x256x128xf32, #tpu.memory_space<vmem>>, vector<1x256x128xf32>
    %243 = vector.shape_cast %242 : vector<1x256x128xf32> to vector<256x128xf32>
    %c1_129 = arith.constant 1 : index
    %c0_130 = arith.constant 0 : index
    %c0_131 = arith.constant 0 : index
    %244 = vector.load %arg15[%c1_129, %c0_130, %c0_131] : memref<2x1x128xf32, #tpu.memory_space<vmem>>, vector<1x1x128xf32>
    %245 = vector.shape_cast %244 : vector<1x1x128xf32> to vector<1x128xf32>
    %cst_132 = arith.constant dense<0.000000e+00> : vector<24xf32>
    %246 = vector.multi_reduction <add>, %221, %cst_132 [1] : vector<24x128xf32> to vector<24xf32>
    %247 = vector.shape_cast %246 : vector<24xf32> to vector<24x1xf32>
    %cst_133 = arith.constant 1.280000e+02 : f32
    %248 = vector.broadcast %cst_133 : f32 to vector<24x1xf32>
    %249 = arith.divf %247, %248 : vector<24x1xf32>
    %250 = vector.broadcast %249 : vector<24x1xf32> to vector<24x128xf32>
    %251 = arith.subf %221, %250 : vector<24x128xf32>
    %252 = arith.mulf %251, %251 : vector<24x128xf32>
    %cst_134 = arith.constant dense<0.000000e+00> : vector<24xf32>
    %253 = vector.multi_reduction <add>, %252, %cst_134 [1] : vector<24x128xf32> to vector<24xf32>
    %254 = vector.shape_cast %253 : vector<24xf32> to vector<24x1xf32>
    %cst_135 = arith.constant 1.280000e+02 : f32
    %255 = vector.broadcast %cst_135 : f32 to vector<24x1xf32>
    %256 = arith.divf %254, %255 : vector<24x1xf32>
    %257 = vector.broadcast %249 : vector<24x1xf32> to vector<24x128xf32>
    %258 = arith.subf %221, %257 : vector<24x128xf32>
    %cst_136 = arith.constant 9.99999974E-6 : f32
    %259 = vector.broadcast %cst_136 : f32 to vector<24x1xf32>
    %260 = arith.addf %256, %259 : vector<24x1xf32>
    %261 = math.rsqrt %260 : vector<24x1xf32>
    %262 = vector.broadcast %261 : vector<24x1xf32> to vector<24x128xf32>
    %263 = arith.mulf %258, %262 : vector<24x128xf32>
    %264 = vector.broadcast %223 : vector<1x128xf32> to vector<24x128xf32>
    %265 = arith.mulf %263, %264 : vector<24x128xf32>
    %266 = vector.broadcast %225 : vector<1x128xf32> to vector<24x128xf32>
    %267 = arith.addf %265, %266 : vector<24x128xf32>
    %cst_137 = arith.constant dense<0.000000e+00> : vector<24x384xf32>
    %268 = tpu.matmul %267, %227, %cst_137 {dimension_numbers = #tpu.dot_dimension_numbers<[1], [0], [0], [1], [0, 0, 1, 1], [], []>} : vector<24x128xf32>, vector<128x384xf32>, vector<24x384xf32> -> vector<24x384xf32>
    %269 = vector.broadcast %229 : vector<1x384xf32> to vector<24x384xf32>
    %270 = arith.addf %268, %269 : vector<24x384xf32>
    %cst_138 = arith.constant 0.000000e+00 : f32
    %271 = vector.broadcast %cst_138 : f32 to vector<24x128xf32>
    %272 = vector.extract_strided_slice %270 {offsets = [0, 0], sizes = [24, 32], strides = [1, 1]} : vector<24x384xf32> to vector<24x32xf32>
    %273 = vector.extract_strided_slice %270 {offsets = [0, 128], sizes = [24, 32], strides = [1, 1]} : vector<24x384xf32> to vector<24x32xf32>
    %274 = vector.extract_strided_slice %270 {offsets = [0, 256], sizes = [24, 32], strides = [1, 1]} : vector<24x384xf32> to vector<24x32xf32>
    %cst_139 = arith.constant dense<0.000000e+00> : vector<24x24xf32>
    %275 = tpu.matmul %272, %273, %cst_139 {dimension_numbers = #tpu.dot_dimension_numbers<[1], [1], [0], [0], [0, 0, 1, 0], [], []>} : vector<24x32xf32>, vector<24x32xf32>, vector<24x24xf32> -> vector<24x24xf32>
    %cst_140 = arith.constant 0.176776692 : f32
    %276 = vector.broadcast %cst_140 : f32 to vector<24x24xf32>
    %277 = arith.mulf %275, %276 : vector<24x24xf32>
    %278 = vector.broadcast %11 : vector<1x24xf32> to vector<24x24xf32>
    %279 = arith.addf %277, %278 : vector<24x24xf32>
    %cst_141 = arith.constant dense<0xFF800000> : vector<24xf32>
    %280 = vector.multi_reduction <maximumf>, %279, %cst_141 [1] : vector<24x24xf32> to vector<24xf32>
    %281 = vector.shape_cast %280 : vector<24xf32> to vector<24x1xf32>
    %282 = vector.broadcast %281 : vector<24x1xf32> to vector<24x24xf32>
    %283 = arith.subf %279, %282 : vector<24x24xf32>
    %284 = math.exp %283 : vector<24x24xf32>
    %cst_142 = arith.constant dense<0.000000e+00> : vector<24xf32>
    %285 = vector.multi_reduction <add>, %284, %cst_142 [1] : vector<24x24xf32> to vector<24xf32>
    %286 = vector.shape_cast %285 : vector<24xf32> to vector<24x1xf32>
    %287 = tpu.reciprocal %286 {approx = true} : vector<24x1xf32> -> vector<24x1xf32>
    %288 = vector.broadcast %287 : vector<24x1xf32> to vector<24x24xf32>
    %289 = arith.mulf %284, %288 : vector<24x24xf32>
    %cst_143 = arith.constant dense<0.000000e+00> : vector<24x32xf32>
    %290 = tpu.matmul %289, %274, %cst_143 {dimension_numbers = #tpu.dot_dimension_numbers<[1], [0], [0], [1], [0, 0, 1, 1], [], []>} : vector<24x24xf32>, vector<24x32xf32>, vector<24x32xf32> -> vector<24x32xf32>
    %291 = vector.extract_strided_slice %231 {offsets = [0, 0], sizes = [32, 128], strides = [1, 1]} : vector<128x128xf32> to vector<32x128xf32>
    %cst_144 = arith.constant dense<0.000000e+00> : vector<24x128xf32>
    %292 = tpu.matmul %290, %291, %cst_144 {dimension_numbers = #tpu.dot_dimension_numbers<[1], [0], [0], [1], [0, 0, 1, 1], [], []>} : vector<24x32xf32>, vector<32x128xf32>, vector<24x128xf32> -> vector<24x128xf32>
    %293 = arith.addf %271, %292 : vector<24x128xf32>
    %294 = vector.extract_strided_slice %270 {offsets = [0, 32], sizes = [24, 32], strides = [1, 1]} : vector<24x384xf32> to vector<24x32xf32>
    %295 = vector.extract_strided_slice %270 {offsets = [0, 160], sizes = [24, 32], strides = [1, 1]} : vector<24x384xf32> to vector<24x32xf32>
    %296 = vector.extract_strided_slice %270 {offsets = [0, 288], sizes = [24, 32], strides = [1, 1]} : vector<24x384xf32> to vector<24x32xf32>
    %cst_145 = arith.constant dense<0.000000e+00> : vector<24x24xf32>
    %297 = tpu.matmul %294, %295, %cst_145 {dimension_numbers = #tpu.dot_dimension_numbers<[1], [1], [0], [0], [0, 0, 1, 0], [], []>} : vector<24x32xf32>, vector<24x32xf32>, vector<24x24xf32> -> vector<24x24xf32>
    %cst_146 = arith.constant 0.176776692 : f32
    %298 = vector.broadcast %cst_146 : f32 to vector<24x24xf32>
    %299 = arith.mulf %297, %298 : vector<24x24xf32>
    %300 = vector.broadcast %11 : vector<1x24xf32> to vector<24x24xf32>
    %301 = arith.addf %299, %300 : vector<24x24xf32>
    %cst_147 = arith.constant dense<0xFF800000> : vector<24xf32>
    %302 = vector.multi_reduction <maximumf>, %301, %cst_147 [1] : vector<24x24xf32> to vector<24xf32>
    %303 = vector.shape_cast %302 : vector<24xf32> to vector<24x1xf32>
    %304 = vector.broadcast %303 : vector<24x1xf32> to vector<24x24xf32>
    %305 = arith.subf %301, %304 : vector<24x24xf32>
    %306 = math.exp %305 : vector<24x24xf32>
    %cst_148 = arith.constant dense<0.000000e+00> : vector<24xf32>
    %307 = vector.multi_reduction <add>, %306, %cst_148 [1] : vector<24x24xf32> to vector<24xf32>
    %308 = vector.shape_cast %307 : vector<24xf32> to vector<24x1xf32>
    %309 = tpu.reciprocal %308 {approx = true} : vector<24x1xf32> -> vector<24x1xf32>
    %310 = vector.broadcast %309 : vector<24x1xf32> to vector<24x24xf32>
    %311 = arith.mulf %306, %310 : vector<24x24xf32>
    %cst_149 = arith.constant dense<0.000000e+00> : vector<24x32xf32>
    %312 = tpu.matmul %311, %296, %cst_149 {dimension_numbers = #tpu.dot_dimension_numbers<[1], [0], [0], [1], [0, 0, 1, 1], [], []>} : vector<24x24xf32>, vector<24x32xf32>, vector<24x32xf32> -> vector<24x32xf32>
    %313 = vector.extract_strided_slice %231 {offsets = [32, 0], sizes = [32, 128], strides = [1, 1]} : vector<128x128xf32> to vector<32x128xf32>
    %cst_150 = arith.constant dense<0.000000e+00> : vector<24x128xf32>
    %314 = tpu.matmul %312, %313, %cst_150 {dimension_numbers = #tpu.dot_dimension_numbers<[1], [0], [0], [1], [0, 0, 1, 1], [], []>} : vector<24x32xf32>, vector<32x128xf32>, vector<24x128xf32> -> vector<24x128xf32>
    %315 = arith.addf %293, %314 : vector<24x128xf32>
    %316 = vector.extract_strided_slice %270 {offsets = [0, 64], sizes = [24, 32], strides = [1, 1]} : vector<24x384xf32> to vector<24x32xf32>
    %317 = vector.extract_strided_slice %270 {offsets = [0, 192], sizes = [24, 32], strides = [1, 1]} : vector<24x384xf32> to vector<24x32xf32>
    %318 = vector.extract_strided_slice %270 {offsets = [0, 320], sizes = [24, 32], strides = [1, 1]} : vector<24x384xf32> to vector<24x32xf32>
    %cst_151 = arith.constant dense<0.000000e+00> : vector<24x24xf32>
    %319 = tpu.matmul %316, %317, %cst_151 {dimension_numbers = #tpu.dot_dimension_numbers<[1], [1], [0], [0], [0, 0, 1, 0], [], []>} : vector<24x32xf32>, vector<24x32xf32>, vector<24x24xf32> -> vector<24x24xf32>
    %cst_152 = arith.constant 0.176776692 : f32
    %320 = vector.broadcast %cst_152 : f32 to vector<24x24xf32>
    %321 = arith.mulf %319, %320 : vector<24x24xf32>
    %322 = vector.broadcast %11 : vector<1x24xf32> to vector<24x24xf32>
    %323 = arith.addf %321, %322 : vector<24x24xf32>
    %cst_153 = arith.constant dense<0xFF800000> : vector<24xf32>
    %324 = vector.multi_reduction <maximumf>, %323, %cst_153 [1] : vector<24x24xf32> to vector<24xf32>
    %325 = vector.shape_cast %324 : vector<24xf32> to vector<24x1xf32>
    %326 = vector.broadcast %325 : vector<24x1xf32> to vector<24x24xf32>
    %327 = arith.subf %323, %326 : vector<24x24xf32>
    %328 = math.exp %327 : vector<24x24xf32>
    %cst_154 = arith.constant dense<0.000000e+00> : vector<24xf32>
    %329 = vector.multi_reduction <add>, %328, %cst_154 [1] : vector<24x24xf32> to vector<24xf32>
    %330 = vector.shape_cast %329 : vector<24xf32> to vector<24x1xf32>
    %331 = tpu.reciprocal %330 {approx = true} : vector<24x1xf32> -> vector<24x1xf32>
    %332 = vector.broadcast %331 : vector<24x1xf32> to vector<24x24xf32>
    %333 = arith.mulf %328, %332 : vector<24x24xf32>
    %cst_155 = arith.constant dense<0.000000e+00> : vector<24x32xf32>
    %334 = tpu.matmul %333, %318, %cst_155 {dimension_numbers = #tpu.dot_dimension_numbers<[1], [0], [0], [1], [0, 0, 1, 1], [], []>} : vector<24x24xf32>, vector<24x32xf32>, vector<24x32xf32> -> vector<24x32xf32>
    %335 = vector.extract_strided_slice %231 {offsets = [64, 0], sizes = [32, 128], strides = [1, 1]} : vector<128x128xf32> to vector<32x128xf32>
    %cst_156 = arith.constant dense<0.000000e+00> : vector<24x128xf32>
    %336 = tpu.matmul %334, %335, %cst_156 {dimension_numbers = #tpu.dot_dimension_numbers<[1], [0], [0], [1], [0, 0, 1, 1], [], []>} : vector<24x32xf32>, vector<32x128xf32>, vector<24x128xf32> -> vector<24x128xf32>
    %337 = arith.addf %315, %336 : vector<24x128xf32>
    %338 = vector.extract_strided_slice %270 {offsets = [0, 96], sizes = [24, 32], strides = [1, 1]} : vector<24x384xf32> to vector<24x32xf32>
    %339 = vector.extract_strided_slice %270 {offsets = [0, 224], sizes = [24, 32], strides = [1, 1]} : vector<24x384xf32> to vector<24x32xf32>
    %340 = vector.extract_strided_slice %270 {offsets = [0, 352], sizes = [24, 32], strides = [1, 1]} : vector<24x384xf32> to vector<24x32xf32>
    %cst_157 = arith.constant dense<0.000000e+00> : vector<24x24xf32>
    %341 = tpu.matmul %338, %339, %cst_157 {dimension_numbers = #tpu.dot_dimension_numbers<[1], [1], [0], [0], [0, 0, 1, 0], [], []>} : vector<24x32xf32>, vector<24x32xf32>, vector<24x24xf32> -> vector<24x24xf32>
    %cst_158 = arith.constant 0.176776692 : f32
    %342 = vector.broadcast %cst_158 : f32 to vector<24x24xf32>
    %343 = arith.mulf %341, %342 : vector<24x24xf32>
    %344 = vector.broadcast %11 : vector<1x24xf32> to vector<24x24xf32>
    %345 = arith.addf %343, %344 : vector<24x24xf32>
    %cst_159 = arith.constant dense<0xFF800000> : vector<24xf32>
    %346 = vector.multi_reduction <maximumf>, %345, %cst_159 [1] : vector<24x24xf32> to vector<24xf32>
    %347 = vector.shape_cast %346 : vector<24xf32> to vector<24x1xf32>
    %348 = vector.broadcast %347 : vector<24x1xf32> to vector<24x24xf32>
    %349 = arith.subf %345, %348 : vector<24x24xf32>
    %350 = math.exp %349 : vector<24x24xf32>
    %cst_160 = arith.constant dense<0.000000e+00> : vector<24xf32>
    %351 = vector.multi_reduction <add>, %350, %cst_160 [1] : vector<24x24xf32> to vector<24xf32>
    %352 = vector.shape_cast %351 : vector<24xf32> to vector<24x1xf32>
    %353 = tpu.reciprocal %352 {approx = true} : vector<24x1xf32> -> vector<24x1xf32>
    %354 = vector.broadcast %353 : vector<24x1xf32> to vector<24x24xf32>
    %355 = arith.mulf %350, %354 : vector<24x24xf32>
    %cst_161 = arith.constant dense<0.000000e+00> : vector<24x32xf32>
    %356 = tpu.matmul %355, %340, %cst_161 {dimension_numbers = #tpu.dot_dimension_numbers<[1], [0], [0], [1], [0, 0, 1, 1], [], []>} : vector<24x24xf32>, vector<24x32xf32>, vector<24x32xf32> -> vector<24x32xf32>
    %357 = vector.extract_strided_slice %231 {offsets = [96, 0], sizes = [32, 128], strides = [1, 1]} : vector<128x128xf32> to vector<32x128xf32>
    %cst_162 = arith.constant dense<0.000000e+00> : vector<24x128xf32>
    %358 = tpu.matmul %356, %357, %cst_162 {dimension_numbers = #tpu.dot_dimension_numbers<[1], [0], [0], [1], [0, 0, 1, 1], [], []>} : vector<24x32xf32>, vector<32x128xf32>, vector<24x128xf32> -> vector<24x128xf32>
    %359 = arith.addf %337, %358 : vector<24x128xf32>
    %360 = vector.broadcast %233 : vector<1x128xf32> to vector<24x128xf32>
    %361 = arith.addf %359, %360 : vector<24x128xf32>
    %362 = arith.addf %221, %361 : vector<24x128xf32>
    %cst_163 = arith.constant dense<0.000000e+00> : vector<24xf32>
    %363 = vector.multi_reduction <add>, %362, %cst_163 [1] : vector<24x128xf32> to vector<24xf32>
    %364 = vector.shape_cast %363 : vector<24xf32> to vector<24x1xf32>
    %cst_164 = arith.constant 1.280000e+02 : f32
    %365 = vector.broadcast %cst_164 : f32 to vector<24x1xf32>
    %366 = arith.divf %364, %365 : vector<24x1xf32>
    %367 = vector.broadcast %366 : vector<24x1xf32> to vector<24x128xf32>
    %368 = arith.subf %362, %367 : vector<24x128xf32>
    %369 = arith.mulf %368, %368 : vector<24x128xf32>
    %cst_165 = arith.constant dense<0.000000e+00> : vector<24xf32>
    %370 = vector.multi_reduction <add>, %369, %cst_165 [1] : vector<24x128xf32> to vector<24xf32>
    %371 = vector.shape_cast %370 : vector<24xf32> to vector<24x1xf32>
    %cst_166 = arith.constant 1.280000e+02 : f32
    %372 = vector.broadcast %cst_166 : f32 to vector<24x1xf32>
    %373 = arith.divf %371, %372 : vector<24x1xf32>
    %374 = vector.broadcast %366 : vector<24x1xf32> to vector<24x128xf32>
    %375 = arith.subf %362, %374 : vector<24x128xf32>
    %cst_167 = arith.constant 9.99999974E-6 : f32
    %376 = vector.broadcast %cst_167 : f32 to vector<24x1xf32>
    %377 = arith.addf %373, %376 : vector<24x1xf32>
    %378 = math.rsqrt %377 : vector<24x1xf32>
    %379 = vector.broadcast %378 : vector<24x1xf32> to vector<24x128xf32>
    %380 = arith.mulf %375, %379 : vector<24x128xf32>
    %381 = vector.broadcast %235 : vector<1x128xf32> to vector<24x128xf32>
    %382 = arith.mulf %380, %381 : vector<24x128xf32>
    %383 = vector.broadcast %237 : vector<1x128xf32> to vector<24x128xf32>
    %384 = arith.addf %382, %383 : vector<24x128xf32>
    %cst_168 = arith.constant dense<0.000000e+00> : vector<24x256xf32>
    %385 = tpu.matmul %384, %239, %cst_168 {dimension_numbers = #tpu.dot_dimension_numbers<[1], [0], [0], [1], [0, 0, 1, 1], [], []>} : vector<24x128xf32>, vector<128x256xf32>, vector<24x256xf32> -> vector<24x256xf32>
    %386 = vector.broadcast %241 : vector<1x256xf32> to vector<24x256xf32>
    %387 = arith.addf %385, %386 : vector<24x256xf32>
    %cst_169 = arith.constant 5.000000e-01 : f32
    %388 = vector.broadcast %cst_169 : f32 to vector<24x256xf32>
    %389 = arith.mulf %388, %387 : vector<24x256xf32>
    %cst_170 = arith.constant 0.707106769 : f32
    %390 = vector.broadcast %cst_170 : f32 to vector<24x256xf32>
    %391 = arith.mulf %387, %390 : vector<24x256xf32>
    %392 = math.absf %391 : vector<24x256xf32>
    %cst_171 = arith.constant 0.327591091 : f32
    %393 = vector.broadcast %cst_171 : f32 to vector<24x256xf32>
    %394 = arith.mulf %393, %392 : vector<24x256xf32>
    %cst_172 = arith.constant 1.000000e+00 : f32
    %395 = vector.broadcast %cst_172 : f32 to vector<24x256xf32>
    %396 = arith.addf %395, %394 : vector<24x256xf32>
    %cst_173 = arith.constant 1.000000e+00 : f32
    %397 = vector.broadcast %cst_173 : f32 to vector<24x256xf32>
    %398 = arith.divf %397, %396 : vector<24x256xf32>
    %cst_174 = arith.constant 1.06140542 : f32
    %399 = vector.broadcast %cst_174 : f32 to vector<24x256xf32>
    %400 = arith.mulf %399, %398 : vector<24x256xf32>
    %cst_175 = arith.constant -1.45315206 : f32
    %401 = vector.broadcast %cst_175 : f32 to vector<24x256xf32>
    %402 = arith.addf %400, %401 : vector<24x256xf32>
    %403 = arith.mulf %402, %398 : vector<24x256xf32>
    %cst_176 = arith.constant 1.42141378 : f32
    %404 = vector.broadcast %cst_176 : f32 to vector<24x256xf32>
    %405 = arith.addf %403, %404 : vector<24x256xf32>
    %406 = arith.mulf %405, %398 : vector<24x256xf32>
    %cst_177 = arith.constant -0.284496725 : f32
    %407 = vector.broadcast %cst_177 : f32 to vector<24x256xf32>
    %408 = arith.addf %406, %407 : vector<24x256xf32>
    %409 = arith.mulf %408, %398 : vector<24x256xf32>
    %cst_178 = arith.constant 0.254829586 : f32
    %410 = vector.broadcast %cst_178 : f32 to vector<24x256xf32>
    %411 = arith.addf %409, %410 : vector<24x256xf32>
    %412 = arith.mulf %411, %398 : vector<24x256xf32>
    %cst_179 = arith.constant 0.000000e+00 : f32
    %413 = vector.broadcast %cst_179 : f32 to vector<24x256xf32>
    %414 = arith.subf %413, %392 : vector<24x256xf32>
    %415 = arith.mulf %414, %392 : vector<24x256xf32>
    %416 = math.exp %415 : vector<24x256xf32>
    %417 = arith.mulf %412, %416 : vector<24x256xf32>
    %cst_180 = arith.constant 1.000000e+00 : f32
    %418 = vector.broadcast %cst_180 : f32 to vector<24x256xf32>
    %419 = arith.subf %418, %417 : vector<24x256xf32>
    %cst_181 = arith.constant 0.000000e+00 : f32
    %420 = vector.broadcast %cst_181 : f32 to vector<24x256xf32>
    %421 = arith.cmpf oge, %391, %420 : vector<24x256xf32>
    %cst_182 = arith.constant 0.000000e+00 : f32
    %422 = vector.broadcast %cst_182 : f32 to vector<24x256xf32>
    %423 = arith.subf %422, %419 : vector<24x256xf32>
    %424 = arith.select %421, %419, %423 : vector<24x256xi1>, vector<24x256xf32>
    %cst_183 = arith.constant 1.000000e+00 : f32
    %425 = vector.broadcast %cst_183 : f32 to vector<24x256xf32>
    %426 = arith.addf %425, %424 : vector<24x256xf32>
    %427 = arith.mulf %389, %426 : vector<24x256xf32>
    %cst_184 = arith.constant dense<0.000000e+00> : vector<24x128xf32>
    %428 = tpu.matmul %427, %243, %cst_184 {dimension_numbers = #tpu.dot_dimension_numbers<[1], [0], [0], [1], [0, 0, 1, 1], [], []>} : vector<24x256xf32>, vector<256x128xf32>, vector<24x128xf32> -> vector<24x128xf32>
    %429 = vector.broadcast %245 : vector<1x128xf32> to vector<24x128xf32>
    %430 = arith.addf %428, %429 : vector<24x128xf32>
    %431 = arith.addf %362, %430 : vector<24x128xf32>
    %432 = vector.extract_strided_slice %431 {offsets = [0, 0], sizes = [1, 128], strides = [1, 1]} : vector<24x128xf32> to vector<1x128xf32>
    %c0_185 = arith.constant 0 : index
    %c0_186 = arith.constant 0 : index
    %433 = vector.load %arg16[%c0_185, %c0_186] : memref<1x128xf32, #tpu.memory_space<vmem>>, vector<1x128xf32>
    %c0_187 = arith.constant 0 : index
    %c0_188 = arith.constant 0 : index
    %434 = vector.load %arg17[%c0_187, %c0_188] : memref<1x128xf32, #tpu.memory_space<vmem>>, vector<1x128xf32>
    %cst_189 = arith.constant dense<0.000000e+00> : vector<1xf32>
    %435 = vector.multi_reduction <add>, %432, %cst_189 [1] : vector<1x128xf32> to vector<1xf32>
    %436 = vector.shape_cast %435 : vector<1xf32> to vector<1x1xf32>
    %cst_190 = arith.constant 1.280000e+02 : f32
    %437 = vector.broadcast %cst_190 : f32 to vector<1x1xf32>
    %438 = arith.divf %436, %437 : vector<1x1xf32>
    %439 = vector.broadcast %438 : vector<1x1xf32> to vector<1x128xf32>
    %440 = arith.subf %432, %439 : vector<1x128xf32>
    %441 = arith.mulf %440, %440 : vector<1x128xf32>
    %cst_191 = arith.constant dense<0.000000e+00> : vector<1xf32>
    %442 = vector.multi_reduction <add>, %441, %cst_191 [1] : vector<1x128xf32> to vector<1xf32>
    %443 = vector.shape_cast %442 : vector<1xf32> to vector<1x1xf32>
    %cst_192 = arith.constant 1.280000e+02 : f32
    %444 = vector.broadcast %cst_192 : f32 to vector<1x1xf32>
    %445 = arith.divf %443, %444 : vector<1x1xf32>
    %446 = vector.broadcast %438 : vector<1x1xf32> to vector<1x128xf32>
    %447 = arith.subf %432, %446 : vector<1x128xf32>
    %cst_193 = arith.constant 9.99999974E-6 : f32
    %448 = vector.broadcast %cst_193 : f32 to vector<1x1xf32>
    %449 = arith.addf %445, %448 : vector<1x1xf32>
    %450 = math.rsqrt %449 : vector<1x1xf32>
    %451 = vector.broadcast %450 : vector<1x1xf32> to vector<1x128xf32>
    %452 = arith.mulf %447, %451 : vector<1x128xf32>
    %453 = arith.mulf %452, %433 : vector<1x128xf32>
    %454 = arith.addf %453, %434 : vector<1x128xf32>
    %c0_194 = arith.constant 0 : index
    %c0_195 = arith.constant 0 : index
    %455 = vector.load %arg18[%c0_194, %c0_195] : memref<128x128xf32, #tpu.memory_space<vmem>>, vector<128x128xf32>
    %cst_196 = arith.constant dense<0.000000e+00> : vector<1x128xf32>
    %456 = tpu.matmul %454, %455, %cst_196 {dimension_numbers = #tpu.dot_dimension_numbers<[1], [0], [0], [1], [0, 0, 1, 1], [], []>} : vector<1x128xf32>, vector<128x128xf32>, vector<1x128xf32> -> vector<1x128xf32>
    %c0_197 = arith.constant 0 : index
    %c0_198 = arith.constant 0 : index
    %457 = vector.load %arg19[%c0_197, %c0_198] : memref<1x128xf32, #tpu.memory_space<vmem>>, vector<1x128xf32>
    %458 = arith.addf %456, %457 : vector<1x128xf32>
    %c0_199 = arith.constant 0 : index
    %c0_200 = arith.constant 0 : index
    %c0_201 = arith.constant 0 : index
    %459 = vector.load %arg20[%c0_199, %c0_200, %c0_201] : memref<1x1x128xf32, #tpu.memory_space<vmem>>, vector<1x1x128xf32>
    %460 = vector.shape_cast %459 : vector<1x1x128xf32> to vector<1x128xf32>
    %461 = vector.shape_cast %458 : vector<1x128xf32> to vector<1x1x128xf32>
    tpu.vector_store %arg20[%c0_199, %c0_200, %c0_201], %461 {strides = array<i32>} : memref<1x1x128xf32, #tpu.memory_space<vmem>>, vector<1x1x128xf32>,
    return
  }
  func.func @transform_0(%arg0: i32) -> (i32, i32, i32) {
    %c0_i32 = arith.constant 0 : i32
    %c0_i32_0 = arith.constant 0 : i32
    %c0_i32_1 = arith.constant 0 : i32
    return %arg0, %c0_i32, %c0_i32_0 : i32, i32, i32
  }
  func.func @transform_1(%arg0: i32) -> (i32, i32) {
    %c0_i32 = arith.constant 0 : i32
    %c0_i32_0 = arith.constant 0 : i32
    %c0_i32_1 = arith.constant 0 : i32
    return %c0_i32, %c0_i32_0 : i32, i32
  }
  func.func @transform_2(%arg0: i32) -> (i32, i32) {
    %c0_i32 = arith.constant 0 : i32
    %c0_i32_0 = arith.constant 0 : i32
    %c0_i32_1 = arith.constant 0 : i32
    return %c0_i32, %c0_i32_0 : i32, i32
  }
  func.func @transform_3(%arg0: i32) -> (i32, i32, i32) {
    %c0_i32 = arith.constant 0 : i32
    %c0_i32_0 = arith.constant 0 : i32
    %c0_i32_1 = arith.constant 0 : i32
    %c0_i32_2 = arith.constant 0 : i32
    return %c0_i32, %c0_i32_0, %c0_i32_1 : i32, i32, i32
  }
  func.func @transform_4(%arg0: i32) -> (i32, i32, i32) {
    %c0_i32 = arith.constant 0 : i32
    %c0_i32_0 = arith.constant 0 : i32
    %c0_i32_1 = arith.constant 0 : i32
    %c0_i32_2 = arith.constant 0 : i32
    return %c0_i32, %c0_i32_0, %c0_i32_1 : i32, i32, i32
  }
  func.func @transform_5(%arg0: i32) -> (i32, i32, i32) {
    %c0_i32 = arith.constant 0 : i32
    %c0_i32_0 = arith.constant 0 : i32
    %c0_i32_1 = arith.constant 0 : i32
    %c0_i32_2 = arith.constant 0 : i32
    return %c0_i32, %c0_i32_0, %c0_i32_1 : i32, i32, i32
  }
  func.func @transform_6(%arg0: i32) -> (i32, i32, i32) {
    %c0_i32 = arith.constant 0 : i32
    %c0_i32_0 = arith.constant 0 : i32
    %c0_i32_1 = arith.constant 0 : i32
    %c0_i32_2 = arith.constant 0 : i32
    return %c0_i32, %c0_i32_0, %c0_i32_1 : i32, i32, i32
  }
  func.func @transform_7(%arg0: i32) -> (i32, i32, i32) {
    %c0_i32 = arith.constant 0 : i32
    %c0_i32_0 = arith.constant 0 : i32
    %c0_i32_1 = arith.constant 0 : i32
    %c0_i32_2 = arith.constant 0 : i32
    return %c0_i32, %c0_i32_0, %c0_i32_1 : i32, i32, i32
  }
  func.func @transform_8(%arg0: i32) -> (i32, i32, i32) {
    %c0_i32 = arith.constant 0 : i32
    %c0_i32_0 = arith.constant 0 : i32
    %c0_i32_1 = arith.constant 0 : i32
    %c0_i32_2 = arith.constant 0 : i32
    return %c0_i32, %c0_i32_0, %c0_i32_1 : i32, i32, i32
  }
  func.func @transform_9(%arg0: i32) -> (i32, i32, i32) {
    %c0_i32 = arith.constant 0 : i32
    %c0_i32_0 = arith.constant 0 : i32
    %c0_i32_1 = arith.constant 0 : i32
    %c0_i32_2 = arith.constant 0 : i32
    return %c0_i32, %c0_i32_0, %c0_i32_1 : i32, i32, i32
  }
  func.func @transform_10(%arg0: i32) -> (i32, i32, i32) {
    %c0_i32 = arith.constant 0 : i32
    %c0_i32_0 = arith.constant 0 : i32
    %c0_i32_1 = arith.constant 0 : i32
    %c0_i32_2 = arith.constant 0 : i32
    return %c0_i32, %c0_i32_0, %c0_i32_1 : i32, i32, i32
  }
  func.func @transform_11(%arg0: i32) -> (i32, i32, i32) {
    %c0_i32 = arith.constant 0 : i32
    %c0_i32_0 = arith.constant 0 : i32
    %c0_i32_1 = arith.constant 0 : i32
    %c0_i32_2 = arith.constant 0 : i32
    return %c0_i32, %c0_i32_0, %c0_i32_1 : i32, i32, i32
  }
  func.func @transform_12(%arg0: i32) -> (i32, i32, i32) {
    %c0_i32 = arith.constant 0 : i32
    %c0_i32_0 = arith.constant 0 : i32
    %c0_i32_1 = arith.constant 0 : i32
    %c0_i32_2 = arith.constant 0 : i32
    return %c0_i32, %c0_i32_0, %c0_i32_1 : i32, i32, i32
  }
  func.func @transform_13(%arg0: i32) -> (i32, i32, i32) {
    %c0_i32 = arith.constant 0 : i32
    %c0_i32_0 = arith.constant 0 : i32
    %c0_i32_1 = arith.constant 0 : i32
    %c0_i32_2 = arith.constant 0 : i32
    return %c0_i32, %c0_i32_0, %c0_i32_1 : i32, i32, i32
  }
  func.func @transform_14(%arg0: i32) -> (i32, i32, i32) {
    %c0_i32 = arith.constant 0 : i32
    %c0_i32_0 = arith.constant 0 : i32
    %c0_i32_1 = arith.constant 0 : i32
    %c0_i32_2 = arith.constant 0 : i32
    return %c0_i32, %c0_i32_0, %c0_i32_1 : i32, i32, i32
  }
  func.func @transform_15(%arg0: i32) -> (i32, i32) {
    %c0_i32 = arith.constant 0 : i32
    %c0_i32_0 = arith.constant 0 : i32
    %c0_i32_1 = arith.constant 0 : i32
    return %c0_i32, %c0_i32_0 : i32, i32
  }
  func.func @transform_16(%arg0: i32) -> (i32, i32) {
    %c0_i32 = arith.constant 0 : i32
    %c0_i32_0 = arith.constant 0 : i32
    %c0_i32_1 = arith.constant 0 : i32
    return %c0_i32, %c0_i32_0 : i32, i32
  }
  func.func @transform_17(%arg0: i32) -> (i32, i32) {
    %c0_i32 = arith.constant 0 : i32
    %c0_i32_0 = arith.constant 0 : i32
    %c0_i32_1 = arith.constant 0 : i32
    return %c0_i32, %c0_i32_0 : i32, i32
  }
  func.func @transform_18(%arg0: i32) -> (i32, i32) {
    %c0_i32 = arith.constant 0 : i32
    %c0_i32_0 = arith.constant 0 : i32
    %c0_i32_1 = arith.constant 0 : i32
    return %c0_i32, %c0_i32_0 : i32, i32
  }
  func.func @transform_19(%arg0: i32) -> (i32, i32, i32) {
    %c0_i32 = arith.constant 0 : i32
    %c0_i32_0 = arith.constant 0 : i32
    %c0_i32_1 = arith.constant 0 : i32
    return %arg0, %c0_i32, %c0_i32_0 : i32, i32, i32
  }
}

</mosaic_0001>

<llo_original>
// kernel: vit_forward.1
$region0: #{vit_forward.1}
  #allocation0 [shape = 'u32[]', space=smem, size = 0x4, offset = 0x4, fixed_abs, tag = 'smem constant byte address 0x4 - core index']
  #allocation1 [shape = 'u32[144,128]{1,0:T(1,128)}', space=vmem, size = 0x12000, scoped, tag = 'internal scratch']
  %s0 = inlined_call_operand.vmem [shape: f32[2,24,192], index: 0, kind: input, shape index: {}]
  %s1 = inlined_call_operand.vmem [shape: f32[192,128], index: 1, kind: input, shape index: {}]
  %s2 = inlined_call_operand.vmem [shape: f32[24,128], index: 2, kind: input, shape index: {}]
  %s3 = inlined_call_operand.vmem [shape: f32[2,1,128], index: 3, kind: input, shape index: {}]
  %s4 = inlined_call_operand.vmem [shape: f32[2,1,128], index: 4, kind: input, shape index: {}]
  %s5 = inlined_call_operand.vmem [shape: f32[2,128,384], index: 5, kind: input, shape index: {}]
  %s6 = inlined_call_operand.vmem [shape: f32[2,1,384], index: 6, kind: input, shape index: {}]
  %s7 = inlined_call_operand.vmem [shape: f32[2,128,128], index: 7, kind: input, shape index: {}]
  %s8 = inlined_call_operand.vmem [shape: f32[2,1,128], index: 8, kind: input, shape index: {}]
  %s9 = inlined_call_operand.vmem [shape: f32[2,1,128], index: 9, kind: input, shape index: {}]
  %s10 = inlined_call_operand.vmem [shape: f32[2,1,128], index: 10, kind: input, shape index: {}]
  %s11 = inlined_call_operand.vmem [shape: f32[2,128,256], index: 11, kind: input, shape index: {}]
  %s12 = inlined_call_operand.vmem [shape: f32[2,1,256], index: 12, kind: input, shape index: {}]
  %s13 = inlined_call_operand.vmem [shape: f32[2,256,128], index: 13, kind: input, shape index: {}]
  %s14 = inlined_call_operand.vmem [shape: f32[2,1,128], index: 14, kind: input, shape index: {}]
  %s15 = inlined_call_operand.vmem [shape: f32[1,128], index: 15, kind: input, shape index: {}]
  %s16 = inlined_call_operand.vmem [shape: f32[1,128], index: 16, kind: input, shape index: {}]
  %s17 = inlined_call_operand.vmem [shape: f32[128,128], index: 17, kind: input, shape index: {}]
  %s18 = inlined_call_operand.vmem [shape: f32[1,128], index: 18, kind: input, shape index: {}]
  %s19 = inlined_call_operand.hbm [shape: f32[2,1,128], index: 19, kind: output, shape index: {}]
  %s20 = sld [smem:[#allocation0]]
  $region109: #{vit_forward.1} parent=0
    _
  %s22 = ssub.s32 1, %s20
  %s23 = scalar_select 0, %s22, %s20
  $region1: #{vit_forward.1} parent=0
    #allocation2 [shape = 'u8[1024]{0}', space=vmem, size = 0x400, scoped, tag = 'output window, operand 0']
    #allocation3 [shape = 's32[2]{0}', space=sflag, size = 0x8, scoped, tag = 'scoped memory for vit_forward.1']
    %24 = vsyncpa [#allocation3], 0
    %s25 = scalar_lea.sflag [#allocation3], 1
    %26 = vsyncpa %s25, 0
    loop: start=0, step=1, limit=4
    $region2: #{vit_forward.1} parent=1 // loop_pre_header
      _
    $region3: #{vit_forward.1} parent=1 // loop_header
      %s28 = sphi 0, %s32
      %p29 = scmp.ge.s32.totalorder %s28, 4
      %s38 = sphi 0, %s40
      %s41 = sphi 0, %s38
      %s42 = sphi 0, %s41
      %s58 = sphi 0, %s42
      %s62 = sphi 0, %s62
      %s64 = sphi 0, %s62
      %s65 = sphi 0, %s64
      %s79 = sphi 0, %s65
      %s83 = sphi 0, %s83
      %s85 = sphi 0, %s83
      %s86 = sphi 0, %s85
      %s100 = sphi 0, %s86
      %s104 = sphi 0, %s104
      %s106 = sphi 0, %s104
      %s107 = sphi 0, %s106
      %s121 = sphi 0, %s107
      %s125 = sphi 0, %s125
      %s127 = sphi 0, %s125
      %s128 = sphi 0, %s127
      %s142 = sphi 0, %s128
      %s146 = sphi 0, %s146
      %s148 = sphi 0, %s146
      %s149 = sphi 0, %s148
      %s163 = sphi 0, %s149
      %s167 = sphi 0, %s167
      %s169 = sphi 0, %s167
      %s170 = sphi 0, %s169
      %s184 = sphi 0, %s170
      %s188 = sphi 0, %s188
      %s190 = sphi 0, %s188
      %s191 = sphi 0, %s190
      %s205 = sphi 0, %s191
      %s209 = sphi 0, %s209
      %s211 = sphi 0, %s209
      %s212 = sphi 0, %s211
      %s226 = sphi 0, %s212
      %s230 = sphi 0, %s230
      %s232 = sphi 0, %s230
      %s233 = sphi 0, %s232
      %s247 = sphi 0, %s233
      %s251 = sphi 0, %s251
      %s253 = sphi 0, %s251
      %s254 = sphi 0, %s253
      %s268 = sphi 0, %s254
      %s272 = sphi 0, %s272
      %s274 = sphi 0, %s272
      %s275 = sphi 0, %s274
      %s289 = sphi 0, %s275
      %s293 = sphi 0, %s293
      %s295 = sphi 0, %s293
      %s296 = sphi 0, %s295
      %s310 = sphi 0, %s296
      %s314 = sphi 0, %s314
      %s316 = sphi 0, %s314
      %s317 = sphi 0, %s316
      %s331 = sphi 0, %s317
      %s335 = sphi 0, %s335
      %s337 = sphi 0, %s335
      %s338 = sphi 0, %s337
      %s352 = sphi 0, %s338
      %s356 = sphi 0, %s356
      %s358 = sphi 0, %s356
      %s359 = sphi 0, %s358
      %s373 = sphi 0, %s359
      %s377 = sphi 0, %s377
      %s379 = sphi 0, %s377
      %s380 = sphi 0, %s379
      %s394 = sphi 0, %s380
      %s398 = sphi 0, %s398
      %s400 = sphi 0, %s398
      %s401 = sphi 0, %s400
      %s415 = sphi 0, %s401
      %s419 = sphi 0, %s419
      %s421 = sphi 0, %s419
      %s422 = sphi 0, %s421
      %s436 = sphi 0, %s422
      %s442 = sphi 0, %s444
      %s445 = sphi 0, %s442
      %s446 = sphi 0, %s445
      %s462 = sphi 0, %s446
    $region4: #{vit_forward.1} parent=1 // loop_header_branch
      %31 = sbr.rel (%p29) target = $region8
    $region5: #{vit_forward.1} parent=1 // loop_body
      %s33 = ssub.s32 %s28, 1
      %s34 = ssub.s32 %s28, 2
      %s35 = sadd.s32 %s28, 1
      %s36 = ssub.s32 %s28, %s35
      %p37 = scmp.eq.s32.totalorder %s36, 0
      %s39 = sadd.s32 %s38, 1
      %s40 = scalar_select %p37, %s38, %s39
      %p43 = pneg %p37
      %p44 = scmp.eq.s32.totalorder %s28, 1
      %p45 = por %p43, %p44
      %p46 = scmp.ne.s32.totalorder %s38, %s41
      %p47 = scmp.eq.s32.totalorder %s28, 0
      %p48 = por %p46, %p47
      %p49 = scmp.ne.s32.totalorder %s38, %s41
      %p50 = scmp.eq.s32.totalorder %s33, 1
      %p51 = por %p49, %p50
      %p52 = scmp.ne.s32.totalorder %s41, %s42
      %p53 = scmp.eq.s32.totalorder %s33, 0
      %p54 = por %p52, %p53
      %p55 = scmp.ne.s32.totalorder %s41, %s42
      %p56 = scmp.eq.s32.totalorder %s34, 1
      %p57 = por %p55, %p56
      %p59 = scmp.ne.s32.totalorder %s42, %s58
      %p60 = scmp.eq.s32.totalorder %s34, 0
      %p61 = por %p59, %p60
      %s63 = sadd.s32 %s62, 1
      %p66 = scmp.eq.s32.totalorder %s28, 1
      %p67 = scmp.ne.s32.totalorder %s62, %s64
      %p68 = scmp.eq.s32.totalorder %s28, 0
      %p69 = por %p67, %p68
      %p70 = scmp.ne.s32.totalorder %s62, %s64
      %p71 = scmp.eq.s32.totalorder %s33, 1
      %p72 = por %p70, %p71
      %p73 = scmp.ne.s32.totalorder %s64, %s65
      %p74 = scmp.eq.s32.totalorder %s33, 0
      %p75 = por %p73, %p74
      %p76 = scmp.ne.s32.totalorder %s64, %s65
      %p77 = scmp.eq.s32.totalorder %s34, 1
      %p78 = por %p76, %p77
      %p80 = scmp.ne.s32.totalorder %s65, %s79
      %p81 = scmp.eq.s32.totalorder %s34, 0
      %p82 = por %p80, %p81
      %s84 = sadd.s32 %s83, 1
      %p87 = scmp.eq.s32.totalorder %s28, 1
      %p88 = scmp.ne.s32.totalorder %s83, %s85
      %p89 = scmp.eq.s32.totalorder %s28, 0
      %p90 = por %p88, %p89
      %p91 = scmp.ne.s32.totalorder %s83, %s85
      %p92 = scmp.eq.s32.totalorder %s33, 1
      %p93 = por %p91, %p92
      %p94 = scmp.ne.s32.totalorder %s85, %s86
      %p95 = scmp.eq.s32.totalorder %s33, 0
      %p96 = por %p94, %p95
      %p97 = scmp.ne.s32.totalorder %s85, %s86
      %p98 = scmp.eq.s32.totalorder %s34, 1
      %p99 = por %p97, %p98
      %p101 = scmp.ne.s32.totalorder %s86, %s100
      %p102 = scmp.eq.s32.totalorder %s34, 0
      %p103 = por %p101, %p102
      %s105 = sadd.s32 %s104, 1
      %p108 = scmp.eq.s32.totalorder %s28, 1
      %p109 = scmp.ne.s32.totalorder %s104, %s106
      %p110 = scmp.eq.s32.totalorder %s28, 0
      %p111 = por %p109, %p110
      %p112 = scmp.ne.s32.totalorder %s104, %s106
      %p113 = scmp.eq.s32.totalorder %s33, 1
      %p114 = por %p112, %p113
      %p115 = scmp.ne.s32.totalorder %s106, %s107
      %p116 = scmp.eq.s32.totalorder %s33, 0
      %p117 = por %p115, %p116
      %p118 = scmp.ne.s32.totalorder %s106, %s107
      %p119 = scmp.eq.s32.totalorder %s34, 1
      %p120 = por %p118, %p119
      %p122 = scmp.ne.s32.totalorder %s107, %s121
      %p123 = scmp.eq.s32.totalorder %s34, 0
      %p124 = por %p122, %p123
      %s126 = sadd.s32 %s125, 1
      %p129 = scmp.eq.s32.totalorder %s28, 1
      %p130 = scmp.ne.s32.totalorder %s125, %s127
      %p131 = scmp.eq.s32.totalorder %s28, 0
      %p132 = por %p130, %p131
      %p133 = scmp.ne.s32.totalorder %s125, %s127
      %p134 = scmp.eq.s32.totalorder %s33, 1
      %p135 = por %p133, %p134
      %p136 = scmp.ne.s32.totalorder %s127, %s128
      %p137 = scmp.eq.s32.totalorder %s33, 0
      %p138 = por %p136, %p137
      %p139 = scmp.ne.s32.totalorder %s127, %s128
      %p140 = scmp.eq.s32.totalorder %s34, 1
      %p141 = por %p139, %p140
      %p143 = scmp.ne.s32.totalorder %s128, %s142
      %p144 = scmp.eq.s32.totalorder %s34, 0
      %p145 = por %p143, %p144
      %s147 = sadd.s32 %s146, 1
      %p150 = scmp.eq.s32.totalorder %s28, 1
      %p151 = scmp.ne.s32.totalorder %s146, %s148
      %p152 = scmp.eq.s32.totalorder %s28, 0
      %p153 = por %p151, %p152
      %p154 = scmp.ne.s32.totalorder %s146, %s148
      %p155 = scmp.eq.s32.totalorder %s33, 1
      %p156 = por %p154, %p155
      %p157 = scmp.ne.s32.totalorder %s148, %s149
      %p158 = scmp.eq.s32.totalorder %s33, 0
      %p159 = por %p157, %p158
      %p160 = scmp.ne.s32.totalorder %s148, %s149
      %p161 = scmp.eq.s32.totalorder %s34, 1
      %p162 = por %p160, %p161
      %p164 = scmp.ne.s32.totalorder %s149, %s163
      %p165 = scmp.eq.s32.totalorder %s34, 0
      %p166 = por %p164, %p165
      %s168 = sadd.s32 %s167, 1
      %p171 = scmp.eq.s32.totalorder %s28, 1
      %p172 = scmp.ne.s32.totalorder %s167, %s169
      %p173 = scmp.eq.s32.totalorder %s28, 0
      %p174 = por %p172, %p173
      %p175 = scmp.ne.s32.totalorder %s167, %s169
      %p176 = scmp.eq.s32.totalorder %s33, 1
      %p177 = por %p175, %p176
      %p178 = scmp.ne.s32.totalorder %s169, %s170
      %p179 = scmp.eq.s32.totalorder %s33, 0
      %p180 = por %p178, %p179
      %p181 = scmp.ne.s32.totalorder %s169, %s170
      %p182 = scmp.eq.s32.totalorder %s34, 1
      %p183 = por %p181, %p182
      %p185 = scmp.ne.s32.totalorder %s170, %s184
      %p186 = scmp.eq.s32.totalorder %s34, 0
      %p187 = por %p185, %p186
      %s189 = sadd.s32 %s188, 1
      %p192 = scmp.eq.s32.totalorder %s28, 1
      %p193 = scmp.ne.s32.totalorder %s188, %s190
      %p194 = scmp.eq.s32.totalorder %s28, 0
      %p195 = por %p193, %p194
      %p196 = scmp.ne.s32.totalorder %s188, %s190
      %p197 = scmp.eq.s32.totalorder %s33, 1
      %p198 = por %p196, %p197
      %p199 = scmp.ne.s32.totalorder %s190, %s191
      %p200 = scmp.eq.s32.totalorder %s33, 0
      %p201 = por %p199, %p200
      %p202 = scmp.ne.s32.totalorder %s190, %s191
      %p203 = scmp.eq.s32.totalorder %s34, 1
      %p204 = por %p202, %p203
      %p206 = scmp.ne.s32.totalorder %s191, %s205
      %p207 = scmp.eq.s32.totalorder %s34, 0
      %p208 = por %p206, %p207
      %s210 = sadd.s32 %s209, 1
      %p213 = scmp.eq.s32.totalorder %s28, 1
      %p214 = scmp.ne.s32.totalorder %s209, %s211
      %p215 = scmp.eq.s32.totalorder %s28, 0
      %p216 = por %p214, %p215
      %p217 = scmp.ne.s32.totalorder %s209, %s211
      %p218 = scmp.eq.s32.totalorder %s33, 1
      %p219 = por %p217, %p218
      %p220 = scmp.ne.s32.totalorder %s211, %s212
      %p221 = scmp.eq.s32.totalorder %s33, 0
      %p222 = por %p220, %p221
      %p223 = scmp.ne.s32.totalorder %s211, %s212
      %p224 = scmp.eq.s32.totalorder %s34, 1
      %p225 = por %p223, %p224
      %p227 = scmp.ne.s32.totalorder %s212, %s226
      %p228 = scmp.eq.s32.totalorder %s34, 0
      %p229 = por %p227, %p228
      %s231 = sadd.s32 %s230, 1
      %p234 = scmp.eq.s32.totalorder %s28, 1
      %p235 = scmp.ne.s32.totalorder %s230, %s232
      %p236 = scmp.eq.s32.totalorder %s28, 0
      %p237 = por %p235, %p236
      %p238 = scmp.ne.s32.totalorder %s230, %s232
      %p239 = scmp.eq.s32.totalorder %s33, 1
      %p240 = por %p238, %p239
      %p241 = scmp.ne.s32.totalorder %s232, %s233
      %p242 = scmp.eq.s32.totalorder %s33, 0
      %p243 = por %p241, %p242
      %p244 = scmp.ne.s32.totalorder %s232, %s233
      %p245 = scmp.eq.s32.totalorder %s34, 1
      %p246 = por %p244, %p245
      %p248 = scmp.ne.s32.totalorder %s233, %s247
      %p249 = scmp.eq.s32.totalorder %s34, 0
      %p250 = por %p248, %p249
      %s252 = sadd.s32 %s251, 1
      %p255 = scmp.eq.s32.totalorder %s28, 1
      %p256 = scmp.ne.s32.totalorder %s251, %s253
      %p257 = scmp.eq.s32.totalorder %s28, 0
      %p258 = por %p256, %p257
      %p259 = scmp.ne.s32.totalorder %s251, %s253
      %p260 = scmp.eq.s32.totalorder %s33, 1
      %p261 = por %p259, %p260
      %p262 = scmp.ne.s32.totalorder %s253, %s254
      %p263 = scmp.eq.s32.totalorder %s33, 0
      %p264 = por %p262, %p263
      %p265 = scmp.ne.s32.totalorder %s253, %s254
      %p266 = scmp.eq.s32.totalorder %s34, 1
      %p267 = por %p265, %p266
      %p269 = scmp.ne.s32.totalorder %s254, %s268
      %p270 = scmp.eq.s32.totalorder %s34, 0
      %p271 = por %p269, %p270
      %s273 = sadd.s32 %s272, 1
      %p276 = scmp.eq.s32.totalorder %s28, 1
      %p277 = scmp.ne.s32.totalorder %s272, %s274
      %p278 = scmp.eq.s32.totalorder %s28, 0
      %p279 = por %p277, %p278
      %p280 = scmp.ne.s32.totalorder %s272, %s274
      %p281 = scmp.eq.s32.totalorder %s33, 1
      %p282 = por %p280, %p281
      %p283 = scmp.ne.s32.totalorder %s274, %s275
      %p284 = scmp.eq.s32.totalorder %s33, 0
      %p285 = por %p283, %p284
      %p286 = scmp.ne.s32.totalorder %s274, %s275
      %p287 = scmp.eq.s32.totalorder %s34, 1
      %p288 = por %p286, %p287
      %p290 = scmp.ne.s32.totalorder %s275, %s289
      %p291 = scmp.eq.s32.totalorder %s34, 0
      %p292 = por %p290, %p291
      %s294 = sadd.s32 %s293, 1
      %p297 = scmp.eq.s32.totalorder %s28, 1
      %p298 = scmp.ne.s32.totalorder %s293, %s295
      %p299 = scmp.eq.s32.totalorder %s28, 0
      %p300 = por %p298, %p299
      %p301 = scmp.ne.s32.totalorder %s293, %s295
      %p302 = scmp.eq.s32.totalorder %s33, 1
      %p303 = por %p301, %p302
      %p304 = scmp.ne.s32.totalorder %s295, %s296
      %p305 = scmp.eq.s32.totalorder %s33, 0
      %p306 = por %p304, %p305
      %p307 = scmp.ne.s32.totalorder %s295, %s296
      %p308 = scmp.eq.s32.totalorder %s34, 1
      %p309 = por %p307, %p308
      %p311 = scmp.ne.s32.totalorder %s296, %s310
      %p312 = scmp.eq.s32.totalorder %s34, 0
      %p313 = por %p311, %p312
      %s315 = sadd.s32 %s314, 1
      %p318 = scmp.eq.s32.totalorder %s28, 1
      %p319 = scmp.ne.s32.totalorder %s314, %s316
      %p320 = scmp.eq.s32.totalorder %s28, 0
      %p321 = por %p319, %p320
      %p322 = scmp.ne.s32.totalorder %s314, %s316
      %p323 = scmp.eq.s32.totalorder %s33, 1
      %p324 = por %p322, %p323
      %p325 = scmp.ne.s32.totalorder %s316, %s317
      %p326 = scmp.eq.s32.totalorder %s33, 0
      %p327 = por %p325, %p326
      %p328 = scmp.ne.s32.totalorder %s316, %s317
      %p329 = scmp.eq.s32.totalorder %s34, 1
      %p330 = por %p328, %p329
      %p332 = scmp.ne.s32.totalorder %s317, %s331
      %p333 = scmp.eq.s32.totalorder %s34, 0
      %p334 = por %p332, %p333
      %s336 = sadd.s32 %s335, 1
      %p339 = scmp.eq.s32.totalorder %s28, 1
      %p340 = scmp.ne.s32.totalorder %s335, %s337
      %p341 = scmp.eq.s32.totalorder %s28, 0
      %p342 = por %p340, %p341
      %p343 = scmp.ne.s32.totalorder %s335, %s337
      %p344 = scmp.eq.s32.totalorder %s33, 1
      %p345 = por %p343, %p344
      %p346 = scmp.ne.s32.totalorder %s337, %s338
      %p347 = scmp.eq.s32.totalorder %s33, 0
      %p348 = por %p346, %p347
      %p349 = scmp.ne.s32.totalorder %s337, %s338
      %p350 = scmp.eq.s32.totalorder %s34, 1
      %p351 = por %p349, %p350
      %p353 = scmp.ne.s32.totalorder %s338, %s352
      %p354 = scmp.eq.s32.totalorder %s34, 0
      %p355 = por %p353, %p354
      %s357 = sadd.s32 %s356, 1
      %p360 = scmp.eq.s32.totalorder %s28, 1
      %p361 = scmp.ne.s32.totalorder %s356, %s358
      %p362 = scmp.eq.s32.totalorder %s28, 0
      %p363 = por %p361, %p362
      %p364 = scmp.ne.s32.totalorder %s356, %s358
      %p365 = scmp.eq.s32.totalorder %s33, 1
      %p366 = por %p364, %p365
      %p367 = scmp.ne.s32.totalorder %s358, %s359
      %p368 = scmp.eq.s32.totalorder %s33, 0
      %p369 = por %p367, %p368
      %p370 = scmp.ne.s32.totalorder %s358, %s359
      %p371 = scmp.eq.s32.totalorder %s34, 1
      %p372 = por %p370, %p371
      %p374 = scmp.ne.s32.totalorder %s359, %s373
      %p375 = scmp.eq.s32.totalorder %s34, 0
      %p376 = por %p374, %p375
      %s378 = sadd.s32 %s377, 1
      %p381 = scmp.eq.s32.totalorder %s28, 1
      %p382 = scmp.ne.s32.totalorder %s377, %s379
      %p383 = scmp.eq.s32.totalorder %s28, 0
      %p384 = por %p382, %p383
      %p385 = scmp.ne.s32.totalorder %s377, %s379
      %p386 = scmp.eq.s32.totalorder %s33, 1
      %p387 = por %p385, %p386
      %p388 = scmp.ne.s32.totalorder %s379, %s380
      %p389 = scmp.eq.s32.totalorder %s33, 0
      %p390 = por %p388, %p389
      %p391 = scmp.ne.s32.totalorder %s379, %s380
      %p392 = scmp.eq.s32.totalorder %s34, 1
      %p393 = por %p391, %p392
      %p395 = scmp.ne.s32.totalorder %s380, %s394
      %p396 = scmp.eq.s32.totalorder %s34, 0
      %p397 = por %p395, %p396
      %s399 = sadd.s32 %s398, 1
      %p402 = scmp.eq.s32.totalorder %s28, 1
      %p403 = scmp.ne.s32.totalorder %s398, %s400
      %p404 = scmp.eq.s32.totalorder %s28, 0
      %p405 = por %p403, %p404
      %p406 = scmp.ne.s32.totalorder %s398, %s400
      %p407 = scmp.eq.s32.totalorder %s33, 1
      %p408 = por %p406, %p407
      %p409 = scmp.ne.s32.totalorder %s400, %s401
      %p410 = scmp.eq.s32.totalorder %s33, 0
      %p411 = por %p409, %p410
      %p412 = scmp.ne.s32.totalorder %s400, %s401
      %p413 = scmp.eq.s32.totalorder %s34, 1
      %p414 = por %p412, %p413
      %p416 = scmp.ne.s32.totalorder %s401, %s415
      %p417 = scmp.eq.s32.totalorder %s34, 0
      %p418 = por %p416, %p417
      %s420 = sadd.s32 %s419, 1
      %p423 = scmp.eq.s32.totalorder %s28, 1
      %p424 = scmp.ne.s32.totalorder %s419, %s421
      %p425 = scmp.eq.s32.totalorder %s28, 0
      %p426 = por %p424, %p425
      %p427 = scmp.ne.s32.totalorder %s419, %s421
      %p428 = scmp.eq.s32.totalorder %s33, 1
      %p429 = por %p427, %p428
      %p430 = scmp.ne.s32.totalorder %s421, %s422
      %p431 = scmp.eq.s32.totalorder %s33, 0
      %p432 = por %p430, %p431
      %p433 = scmp.ne.s32.totalorder %s421, %s422
      %p434 = scmp.eq.s32.totalorder %s34, 1
      %p435 = por %p433, %p434
      %p437 = scmp.ne.s32.totalorder %s422, %s436
      %p438 = scmp.eq.s32.totalorder %s34, 0
      %p439 = por %p437, %p438
      %s440 = ssub.s32 %s28, %s35
      %p441 = scmp.eq.s32.totalorder %s440, 0
      %s443 = sadd.s32 %s442, 1
      %s444 = scalar_select %p441, %s442, %s443
      %p447 = pneg %p441
      %p448 = scmp.eq.s32.totalorder %s28, 1
      %p449 = por %p447, %p448
      %p450 = scmp.ne.s32.totalorder %s442, %s445
      %p451 = scmp.eq.s32.totalorder %s28, 0
      %p452 = por %p450, %p451
      %p453 = scmp.ne.s32.totalorder %s442, %s445
      %p454 = scmp.eq.s32.totalorder %s33, 1
      %p455 = por %p453, %p454
      %p456 = scmp.ne.s32.totalorder %s445, %s446
      %p457 = scmp.eq.s32.totalorder %s33, 0
      %p458 = por %p456, %p457
      %p459 = scmp.ne.s32.totalorder %s445, %s446
      %p460 = scmp.eq.s32.totalorder %s34, 1
      %p461 = por %p459, %p460
      %p463 = scmp.ne.s32.totalorder %s446, %s462
      %p464 = scmp.eq.s32.totalorder %s34, 0
      %p465 = por %p463, %p464
      %p466 = scmp.le.s32.totalorder 1, %s28
      %p467 = scmp.lt.s32.totalorder %s28, 3
      %p468 = pnand %p466, %p467
      %p469 = pneg %p468
      // Predicated region
      $region9: #{vit_forward.1} parent=5 // pred_check
        _
      $region10: #{vit_forward.1} parent=5 // pred_check_branch
        %471 = sbr.rel (%p468) target = $region12
      $region11: #{vit_forward.1} parent=5 // pred_region
        %s472 = ssub.s32 %s28, 1
        // Predicated region
        $region13: #{vit_forward.1} parent=11 // pred_check
          %p473 = pneg %p75
        $region14: #{vit_forward.1} parent=11 // pred_check_branch
          %475 = sbr.rel (%p473) target = $region16
        $region15: #{vit_forward.1} parent=11 // pred_region
          _
        $region16: #{vit_forward.1} parent=11 // pred_fallthru
          _
        // Predicated region
        $region17: #{vit_forward.1} parent=11 // pred_check
          %p476 = pneg %p96
        $region18: #{vit_forward.1} parent=11 // pred_check_branch
          %478 = sbr.rel (%p476) target = $region20
        $region19: #{vit_forward.1} parent=11 // pred_region
          _
        $region20: #{vit_forward.1} parent=11 // pred_fallthru
          _
        // Predicated region
        $region21: #{vit_forward.1} parent=11 // pred_check
          %p479 = pneg %p117
        $region22: #{vit_forward.1} parent=11 // pred_check_branch
          %481 = sbr.rel (%p479) target = $region24
        $region23: #{vit_forward.1} parent=11 // pred_region
          _
        $region24: #{vit_forward.1} parent=11 // pred_fallthru
          _
        // Predicated region
        $region25: #{vit_forward.1} parent=11 // pred_check
          %p482 = pneg %p138
        $region26: #{vit_forward.1} parent=11 // pred_check_branch
          %484 = sbr.rel (%p482) target = $region28
        $region27: #{vit_forward.1} parent=11 // pred_region
          _
        $region28: #{vit_forward.1} parent=11 // pred_fallthru
          _
        // Predicated region
        $region29: #{vit_forward.1} parent=11 // pred_check
          %p485 = pneg %p159
        $region30: #{vit_forward.1} parent=11 // pred_check_branch
          %487 = sbr.rel (%p485) target = $region32
        $region31: #{vit_forward.1} parent=11 // pred_region
          _
        $region32: #{vit_forward.1} parent=11 // pred_fallthru
          _
        // Predicated region
        $region33: #{vit_forward.1} parent=11 // pred_check
          %p488 = pneg %p180
        $region34: #{vit_forward.1} parent=11 // pred_check_branch
          %490 = sbr.rel (%p488) target = $region36
        $region35: #{vit_forward.1} parent=11 // pred_region
          _
        $region36: #{vit_forward.1} parent=11 // pred_fallthru
          _
        // Predicated region
        $region37: #{vit_forward.1} parent=11 // pred_check
          %p491 = pneg %p201
        $region38: #{vit_forward.1} parent=11 // pred_check_branch
          %493 = sbr.rel (%p491) target = $region40
        $region39: #{vit_forward.1} parent=11 // pred_region
          _
        $region40: #{vit_forward.1} parent=11 // pred_fallthru
          _
        // Predicated region
        $region41: #{vit_forward.1} parent=11 // pred_check
          %p494 = pneg %p222
        $region42: #{vit_forward.1} parent=11 // pred_check_branch
          %496 = sbr.rel (%p494) target = $region44
        $region43: #{vit_forward.1} parent=11 // pred_region
          _
        $region44: #{vit_forward.1} parent=11 // pred_fallthru
          _
        // Predicated region
        $region45: #{vit_forward.1} parent=11 // pred_check
          %p497 = pneg %p243
        $region46: #{vit_forward.1} parent=11 // pred_check_branch
          %499 = sbr.rel (%p497) target = $region48
        $region47: #{vit_forward.1} parent=11 // pred_region
          _
        $region48: #{vit_forward.1} parent=11 // pred_fallthru
          _
        // Predicated region
        $region49: #{vit_forward.1} parent=11 // pred_check
          %p500 = pneg %p264
        $region50: #{vit_forward.1} parent=11 // pred_check_branch
          %502 = sbr.rel (%p500) target = $region52
        $region51: #{vit_forward.1} parent=11 // pred_region
          _
        $region52: #{vit_forward.1} parent=11 // pred_fallthru
          _
        // Predicated region
        $region53: #{vit_forward.1} parent=11 // pred_check
          %p503 = pneg %p285
        $region54: #{vit_forward.1} parent=11 // pred_check_branch
          %505 = sbr.rel (%p503) target = $region56
        $region55: #{vit_forward.1} parent=11 // pred_region
          _
        $region56: #{vit_forward.1} parent=11 // pred_fallthru
          _
        // Predicated region
        $region57: #{vit_forward.1} parent=11 // pred_check
          %p506 = pneg %p306
        $region58: #{vit_forward.1} parent=11 // pred_check_branch
          %508 = sbr.rel (%p506) target = $region60
        $region59: #{vit_forward.1} parent=11 // pred_region
          _
        $region60: #{vit_forward.1} parent=11 // pred_fallthru
          _
        // Predicated region
        $region61: #{vit_forward.1} parent=11 // pred_check
          %p509 = pneg %p327
        $region62: #{vit_forward.1} parent=11 // pred_check_branch
          %511 = sbr.rel (%p509) target = $region64
        $region63: #{vit_forward.1} parent=11 // pred_region
          _
        $region64: #{vit_forward.1} parent=11 // pred_fallthru
          _
        // Predicated region
        $region65: #{vit_forward.1} parent=11 // pred_check
          %p512 = pneg %p348
        $region66: #{vit_forward.1} parent=11 // pred_check_branch
          %514 = sbr.rel (%p512) target = $region68
        $region67: #{vit_forward.1} parent=11 // pred_region
          _
        $region68: #{vit_forward.1} parent=11 // pred_fallthru
          _
        // Predicated region
        $region69: #{vit_forward.1} parent=11 // pred_check
          %p515 = pneg %p369
        $region70: #{vit_forward.1} parent=11 // pred_check_branch
          %517 = sbr.rel (%p515) target = $region72
        $region71: #{vit_forward.1} parent=11 // pred_region
          _
        $region72: #{vit_forward.1} parent=11 // pred_fallthru
          _
        // Predicated region
        $region73: #{vit_forward.1} parent=11 // pred_check
          %p518 = pneg %p390
        $region74: #{vit_forward.1} parent=11 // pred_check_branch
          %520 = sbr.rel (%p518) target = $region76
        $region75: #{vit_forward.1} parent=11 // pred_region
          _
        $region76: #{vit_forward.1} parent=11 // pred_fallthru
          _
        // Predicated region
        $region77: #{vit_forward.1} parent=11 // pred_check
          %p521 = pneg %p411
        $region78: #{vit_forward.1} parent=11 // pred_check_branch
          %523 = sbr.rel (%p521) target = $region80
        $region79: #{vit_forward.1} parent=11 // pred_region
          _
        $region80: #{vit_forward.1} parent=11 // pred_fallthru
          _
        // Predicated region
        $region81: #{vit_forward.1} parent=11 // pred_check
          %p524 = pneg %p432
        $region82: #{vit_forward.1} parent=11 // pred_check_branch
          %526 = sbr.rel (%p524) target = $region84
        $region83: #{vit_forward.1} parent=11 // pred_region
          _
        $region84: #{vit_forward.1} parent=11 // pred_fallthru
          _
      $region12: #{vit_forward.1} parent=5 // pred_fallthru
        _
      %p527 = scmp.lt.s32.totalorder %s28, 2
      // Predicated region
      $region85: #{vit_forward.1} parent=5 // pred_check
        %p528 = pneg %p527
      $region86: #{vit_forward.1} parent=5 // pred_check_branch
        %530 = sbr.rel (%p528) target = $region88
      $region87: #{vit_forward.1} parent=5 // pred_region
        // Predicated region
        $region89: #{vit_forward.1} parent=87 // pred_check
          %p531 = pneg %p48
        $region90: #{vit_forward.1} parent=87 // pred_check_branch
          %533 = sbr.rel (%p531) target = $region92
        $region91: #{vit_forward.1} parent=87 // pred_region
          %p534 = scmp.lt.s32.totalorder %s28, 1
          %s535 = scalar_select %p534, %s28, 1
          %s536 = smul.addr %s535, 6
          %s537 = smul.addr %s536, 8
          %s538 = scalar_lea.vmem %s0, %s537
        $region92: #{vit_forward.1} parent=87 // pred_fallthru
          _
      $region88: #{vit_forward.1} parent=5 // pred_fallthru
        _
      %p539 = scmp.le.s32.totalorder 1, %s28
      %p540 = scmp.lt.s32.totalorder %s28, 3
      %p541 = pnand %p539, %p540
      %p542 = pneg %p541
      // Predicated region
      $region93: #{vit_forward.1} parent=5 // pred_check
        _
      $region94: #{vit_forward.1} parent=5 // pred_check_branch
        %544 = sbr.rel (%p541) target = $region96
      $region95: #{vit_forward.1} parent=5 // pred_region
        %s545 = ssub.s32 %s28, 1
        %p546 = scmp.lt.s32.totalorder %s33, 1
        %s547 = scalar_select %p546, %s33, 1
        %s548 = smul.addr %s547, 6
        %s549 = smul.addr %s548, 8
        %s550 = scalar_lea.vmem %s0, %s549
        %p551 = pneg %p54
        %p552 = pneg %p51
        %p553 = pneg %p75
        %p554 = pneg %p72
        %p555 = pneg %p96
        %p556 = pneg %p93
        %p557 = pneg %p117
        %p558 = pneg %p114
        %p559 = pneg %p138
        %p560 = pneg %p135
        %p561 = pneg %p159
        %p562 = pneg %p156
        %p563 = pneg %p180
        %p564 = pneg %p177
        %p565 = pneg %p201
        %p566 = pneg %p198
        %p567 = pneg %p222
        %p568 = pneg %p219
        %p569 = pneg %p243
        %p570 = pneg %p240
        %p571 = pneg %p264
        %p572 = pneg %p261
        %p573 = pneg %p285
        %p574 = pneg %p282
        %p575 = pneg %p306
        %p576 = pneg %p303
        %p577 = pneg %p327
        %p578 = pneg %p324
        %p579 = pneg %p348
        %p580 = pneg %p345
        %p581 = pneg %p369
        %p582 = pneg %p366
        %p583 = pneg %p390
        %p584 = pneg %p387
        %p585 = pneg %p411
        %p586 = pneg %p408
        %p587 = pneg %p432
        %p588 = pneg %p429
        %p589 = pneg %p458
        %p590 = pneg %p455
        %s591 = sand.u32 %s445, 1
        %s592 = scalar_lea.sflag [#allocation3], %s591
        %s593 = sand.u32 %s445, 1
        %s594 = scalar_lea.vmem [#allocation2], %s593
        %p595 = scmp.lt.s32.totalorder %s33, 1
        %s596 = scalar_select %p595, %s33, 1
        %s597 = smul.addr %s596, 6
        %s598 = smul.addr %s597, 8
        %s599 = scalar_lea.vmem %s0, %s598
        %v600 = vld [vmem:[%s599] sm:$0xff]
        %v601 = vld [vmem:[%s599 + $0x8] sm:$0xff]
        %v602 = vld [vmem:[%s599 + $0x10] sm:$0xff]
        %v603 = vld [vmem:[%s599 + $0x18] sm:$0xff]
        %v604 = vld [vmem:[%s599 + $0x20] sm:$0xff]
        %v605 = vld [vmem:[%s599 + $0x28] sm:$0xff]
        %v606 = vld [vmem:[%s1] sm:$0xff]
        %v607 = vld [vmem:[%s1 + $0x8] sm:$0xff]
        %v608 = vld [vmem:[%s1 + $0x10] sm:$0xff]
        %v609 = vld [vmem:[%s1 + $0x18] sm:$0xff]
        %v610 = vld [vmem:[%s1 + $0x20] sm:$0xff]
        %v611 = vld [vmem:[%s1 + $0x28] sm:$0xff]
        %v612 = vld [vmem:[%s1 + $0x30] sm:$0xff]
        %v613 = vld [vmem:[%s1 + $0x38] sm:$0xff]
        %v614 = vld [vmem:[%s1 + $0x40] sm:$0xff]
        %v615 = vld [vmem:[%s1 + $0x48] sm:$0xff]
        %v616 = vld [vmem:[%s1 + $0x50] sm:$0xff]
        %v617 = vld [vmem:[%s1 + $0x58] sm:$0xff]
        %v618 = vld [vmem:[%s1 + $0x60] sm:$0xff]
        %v619 = vld [vmem:[%s1 + $0x68] sm:$0xff]
        %v620 = vld [vmem:[%s1 + $0x70] sm:$0xff]
        %v621 = vld [vmem:[%s1 + $0x78] sm:$0xff]
        %v622 = vld [vmem:[%s1 + $0x80] sm:$0xff]
        %v623 = vld [vmem:[%s1 + $0x88] sm:$0xff]
        %v624 = vld [vmem:[%s1 + $0x90] sm:$0xff]
        %v625 = vld [vmem:[%s1 + $0x98] sm:$0xff]
        %v626 = vld [vmem:[%s1 + $0xa0] sm:$0xff]
        %v627 = vld [vmem:[%s1 + $0xa8] sm:$0xff]
        %v628 = vld [vmem:[%s1 + $0xb0] sm:$0xff]
        %v629 = vld [vmem:[%s1 + $0xb8] sm:$0xff]
        %v630 = vld [vmem:[%s2] sm:$0xff]
        %v631 = vld [vmem:[%s2 + $0x8] sm:$0xff]
        %v632 = vld [vmem:[%s2 + $0x10] sm:$0xff]
        %vm633 = vcmask 523264
        %v635 = vsel %vm633, %v601, 0
        %v638 = vsel %vm633, %v603, 0
        %v641 = vsel %vm633, %v605, 0
        %643 = vmatprep.subr.mxu0 0.0
        %644 = vmatpush1.msra.mxu0 %v621
        %645 = vmatprep.subr.mxu0 0.0
        %646 = vmatpush1.msra.mxu0 %v620
        %647 = vmatprep.subr.mxu0 0.0
        %648 = vmatpush1.msra.mxu0 %v619
        %649 = vmatprep.subr.mxu0 0.0
        %650 = vmatpush1.msra.mxu0 %v618
        %651 = vmatprep.subr.mxu0 0.0
        %652 = vmatpush1.msra.mxu0 %v617
        %653 = vmatprep.subr.mxu0 0.0
        %654 = vmatpush1.msra.mxu0 %v616
        %655 = vmatprep.subr.mxu0 0.0
        %656 = vmatpush1.msra.mxu0 %v615
        %657 = vmatprep.subr.mxu0 0.0
        %658 = vmatpush1.msra.mxu0 %v614
        %659 = vmatprep.subr.mxu0 0.0
        %660 = vmatpush1.msra.mxu0 %v613
        %661 = vmatprep.subr.mxu0 0.0
        %662 = vmatpush1.msra.mxu0 %v612
        %663 = vmatprep.subr.mxu0 0.0
        %664 = vmatpush1.msra.mxu0 %v611
        %665 = vmatprep.subr.mxu0 0.0
        %666 = vmatpush1.msra.mxu0 %v610
        %667 = vmatprep.subr.mxu0 0.0
        %668 = vmatpush1.msra.mxu0 %v609
        %669 = vmatprep.subr.mxu0 0.0
        %670 = vmatpush1.msra.mxu0 %v608
        %671 = vmatprep.subr.mxu0 0.0
        %672 = vmatpush1.msra.mxu0 %v607
        %673 = vmatprep.subr.mxu0 0.0
        %674 = vmatpush1.msra.mxu0 %v606
        %675 = vmatprep.subr.mxu0 0.0
        %676 = vmatpush2.msra.mxu0 0.0
        %677 = vmatprep.subr.mxu0 0.0
        %678 = vmatpush2.msra.mxu0 0.0
        %679 = vmatprep.subr.mxu0 0.0
        %680 = vmatpush2.msra.mxu0 0.0
        %681 = vmatprep.subr.mxu0 0.0
        %682 = vmatpush2.msra.mxu0 0.0
        %683 = vmatprep.subr.mxu0 0.0
        %684 = vmatpush2.msra.mxu0 0.0
        %685 = vmatprep.subr.mxu0 0.0
        %686 = vmatpush2.msra.mxu0 0.0
        %687 = vmatprep.subr.mxu0 0.0
        %688 = vmatpush2.msra.mxu0 0.0
        %689 = vmatprep.subr.mxu0 0.0
        %690 = vmatpush2.msra.mxu0 0.0
        %691 = vmatprep.subr.mxu0 0.0
        %692 = vmatpush2.msra.mxu0 %v629
        %693 = vmatprep.subr.mxu0 0.0
        %694 = vmatpush2.msra.mxu0 %v628
        %695 = vmatprep.subr.mxu0 0.0
        %696 = vmatpush2.msra.mxu0 %v627
        %697 = vmatprep.subr.mxu0 0.0
        %698 = vmatpush2.msra.mxu0 %v626
        %699 = vmatprep.subr.mxu0 0.0
        %700 = vmatpush2.msra.mxu0 %v625
        %701 = vmatprep.subr.mxu0 0.0
        %702 = vmatpush2.msra.mxu0 %v624
        %703 = vmatprep.subr.mxu0 0.0
        %704 = vmatpush2.msra.mxu0 %v623
        %705 = vmatprep.subr.mxu0 0.0
        %706 = vmatpush2.msra.mxu0 %v622
        %707 = vmatprep.mubr.f32.mxu0 %v635
        %708 = vmatmul.mubr.f32.gmra.mxu0 %v600
        %v709 = vpop.f32.mrf.mxu0
        %v710 = vadd.f32 %v630, %v709
        %v711 = vpop.f32.mrf.mxu0
        %712 = vmatprep.mubr.f32.mxu0 %v638
        %713 = vmatmul.mubr.f32.gmra.mxu0 %v602
        %v714 = vpop.f32.mrf.mxu0
        %v715 = vadd.f32 %v631, %v714
        %v716 = vpop.f32.mrf.mxu0
        %717 = vmatprep.mubr.f32.mxu0 %v641
        %718 = vmatmul.mubr.f32.gmra.mxu0 %v604
        %v719 = vpop.f32.mrf.mxu0
        %v720 = vadd.f32 %v632, %v719
        %v721 = vpop.f32.mrf.mxu0
        %722 = vdwg.mxu0
        %v723 = vlaneseq
        %v724 = vand.u32 %v723, 127
        %vm725 = vcmp.ge.s32.totalorder %v724, 17
        %v726 = vsel %vm725, -1e+30, 0.0
        %v727 = vld [vmem:[%s3] sm:$0x1]
        %v728 = vld [vmem:[%s4] sm:$0x1]
        %v729 = vld [vmem:[%s5] sm:$0xff]
        %v730 = vld [vmem:[%s5 + $0x8] sm:$0xff]
        %v731 = vld [vmem:[%s5 + $0x10] sm:$0xff]
        %v732 = vld [vmem:[%s5 + $0x18] sm:$0xff]
        %v733 = vld [vmem:[%s5 + $0x20] sm:$0xff]
        %v734 = vld [vmem:[%s5 + $0x28] sm:$0xff]
        %v735 = vld [vmem:[%s5 + $0x30] sm:$0xff]
        %v736 = vld [vmem:[%s5 + $0x38] sm:$0xff]
        %v737 = vld [vmem:[%s5 + $0x40] sm:$0xff]
        %v738 = vld [vmem:[%s5 + $0x48] sm:$0xff]
        %v739 = vld [vmem:[%s5 + $0x50] sm:$0xff]
        %v740 = vld [vmem:[%s5 + $0x58] sm:$0xff]
        %v741 = vld [vmem:[%s5 + $0x60] sm:$0xff]
        %v742 = vld [vmem:[%s5 + $0x68] sm:$0xff]
        %v743 = vld [vmem:[%s5 + $0x70] sm:$0xff]
        %v744 = vld [vmem:[%s5 + $0x78] sm:$0xff]
        %v745 = vld [vmem:[%s5 + $0x80] sm:$0xff]
        %v746 = vld [vmem:[%s5 + $0x88] sm:$0xff]
        %v747 = vld [vmem:[%s5 + $0x90] sm:$0xff]
        %v748 = vld [vmem:[%s5 + $0x98] sm:$0xff]
        %v749 = vld [vmem:[%s5 + $0xa0] sm:$0xff]
        %v750 = vld [vmem:[%s5 + $0xa8] sm:$0xff]
        %v751 = vld [vmem:[%s5 + $0xb0] sm:$0xff]
        %v752 = vld [vmem:[%s5 + $0xb8] sm:$0xff]
        %v753 = vld [vmem:[%s5 + $0xc0] sm:$0xff]
        %v754 = vld [vmem:[%s5 + $0xc8] sm:$0xff]
        %v755 = vld [vmem:[%s5 + $0xd0] sm:$0xff]
        %v756 = vld [vmem:[%s5 + $0xd8] sm:$0xff]
        %v757 = vld [vmem:[%s5 + $0xe0] sm:$0xff]
        %v758 = vld [vmem:[%s5 + $0xe8] sm:$0xff]
        %v759 = vld [vmem:[%s5 + $0xf0] sm:$0xff]
        %v760 = vld [vmem:[%s5 + $0xf8] sm:$0xff]
        %v761 = vld [vmem:[%s5 + $0x100] sm:$0xff]
        %v762 = vld [vmem:[%s5 + $0x108] sm:$0xff]
        %v763 = vld [vmem:[%s5 + $0x110] sm:$0xff]
        %v764 = vld [vmem:[%s5 + $0x118] sm:$0xff]
        %v765 = vld [vmem:[%s5 + $0x120] sm:$0xff]
        %v766 = vld [vmem:[%s5 + $0x128] sm:$0xff]
        %v767 = vld [vmem:[%s5 + $0x130] sm:$0xff]
        %v768 = vld [vmem:[%s5 + $0x138] sm:$0xff]
        %v769 = vld [vmem:[%s5 + $0x140] sm:$0xff]
        %v770 = vld [vmem:[%s5 + $0x148] sm:$0xff]
        %v771 = vld [vmem:[%s5 + $0x150] sm:$0xff]
        %v772 = vld [vmem:[%s5 + $0x158] sm:$0xff]
        %v773 = vld [vmem:[%s5 + $0x160] sm:$0xff]
        %v774 = vld [vmem:[%s5 + $0x168] sm:$0xff]
        %v775 = vld [vmem:[%s5 + $0x170] sm:$0xff]
        %v776 = vld [vmem:[%s5 + $0x178] sm:$0xff]
        %v777 = vld [vmem:[%s6] sm:$0x7]
        %v778 = vld [vmem:[%s7] sm:$0xff]
        %v779 = vld [vmem:[%s7 + $0x8] sm:$0xff]
        %v780 = vld [vmem:[%s7 + $0x10] sm:$0xff]
        %v781 = vld [vmem:[%s7 + $0x18] sm:$0xff]
        %v782 = vld [vmem:[%s7 + $0x20] sm:$0xff]
        %v783 = vld [vmem:[%s7 + $0x28] sm:$0xff]
        %v784 = vld [vmem:[%s7 + $0x30] sm:$0xff]
        %v785 = vld [vmem:[%s7 + $0x38] sm:$0xff]
        %v786 = vld [vmem:[%s7 + $0x40] sm:$0xff]
        %v787 = vld [vmem:[%s7 + $0x48] sm:$0xff]
        %v788 = vld [vmem:[%s7 + $0x50] sm:$0xff]
        %v789 = vld [vmem:[%s7 + $0x58] sm:$0xff]
        %v790 = vld [vmem:[%s7 + $0x60] sm:$0xff]
        %v791 = vld [vmem:[%s7 + $0x68] sm:$0xff]
        %v792 = vld [vmem:[%s7 + $0x70] sm:$0xff]
        %v793 = vld [vmem:[%s7 + $0x78] sm:$0xff]
        %v794 = vld [vmem:[%s8] sm:$0x1]
        %v795 = vld [vmem:[%s9] sm:$0x1]
        %v796 = vld [vmem:[%s10] sm:$0x1]
        %v797 = vld [vmem:[%s11] sm:$0xff]
        %v798 = vld [vmem:[%s11 + $0x8] sm:$0xff]
        %v799 = vld [vmem:[%s11 + $0x10] sm:$0xff]
        %v800 = vld [vmem:[%s11 + $0x18] sm:$0xff]
        %v801 = vld [vmem:[%s11 + $0x20] sm:$0xff]
        %v802 = vld [vmem:[%s11 + $0x28] sm:$0xff]
        %v803 = vld [vmem:[%s11 + $0x30] sm:$0xff]
        %v804 = vld [vmem:[%s11 + $0x38] sm:$0xff]
        %v805 = vld [vmem:[%s11 + $0x40] sm:$0xff]
        %v806 = vld [vmem:[%s11 + $0x48] sm:$0xff]
        %v807 = vld [vmem:[%s11 + $0x50] sm:$0xff]
        %v808 = vld [vmem:[%s11 + $0x58] sm:$0xff]
        %v809 = vld [vmem:[%s11 + $0x60] sm:$0xff]
        %v810 = vld [vmem:[%s11 + $0x68] sm:$0xff]
        %v811 = vld [vmem:[%s11 + $0x70] sm:$0xff]
        %v812 = vld [vmem:[%s11 + $0x78] sm:$0xff]
        %v813 = vld [vmem:[%s11 + $0x80] sm:$0xff]
        %v814 = vld [vmem:[%s11 + $0x88] sm:$0xff]
        %v815 = vld [vmem:[%s11 + $0x90] sm:$0xff]
        %v816 = vld [vmem:[%s11 + $0x98] sm:$0xff]
        %v817 = vld [vmem:[%s11 + $0xa0] sm:$0xff]
        %v818 = vld [vmem:[%s11 + $0xa8] sm:$0xff]
        %v819 = vld [vmem:[%s11 + $0xb0] sm:$0xff]
        %v820 = vld [vmem:[%s11 + $0xb8] sm:$0xff]
        %v821 = vld [vmem:[%s11 + $0xc0] sm:$0xff]
        %v822 = vld [vmem:[%s11 + $0xc8] sm:$0xff]
        %v823 = vld [vmem:[%s11 + $0xd0] sm:$0xff]
        %v824 = vld [vmem:[%s11 + $0xd8] sm:$0xff]
        %v825 = vld [vmem:[%s11 + $0xe0] sm:$0xff]
        %v826 = vld [vmem:[%s11 + $0xe8] sm:$0xff]
        %v827 = vld [vmem:[%s11 + $0xf0] sm:$0xff]
        %v828 = vld [vmem:[%s11 + $0xf8] sm:$0xff]
        %v829 = vld [vmem:[%s12] sm:$0x3]
        %v830 = vld [vmem:[%s13] sm:$0xff]
        %v831 = vld [vmem:[%s13 + $0x8] sm:$0xff]
        %v832 = vld [vmem:[%s13 + $0x10] sm:$0xff]
        %v833 = vld [vmem:[%s13 + $0x18] sm:$0xff]
        %v834 = vld [vmem:[%s13 + $0x20] sm:$0xff]
        %v835 = vld [vmem:[%s13 + $0x28] sm:$0xff]
        %v836 = vld [vmem:[%s13 + $0x30] sm:$0xff]
        %v837 = vld [vmem:[%s13 + $0x38] sm:$0xff]
        %v838 = vld [vmem:[%s13 + $0x40] sm:$0xff]
        %v839 = vld [vmem:[%s13 + $0x48] sm:$0xff]
        %v840 = vld [vmem:[%s13 + $0x50] sm:$0xff]
        %v841 = vld [vmem:[%s13 + $0x58] sm:$0xff]
        %v842 = vld [vmem:[%s13 + $0x60] sm:$0xff]
        %v843 = vld [vmem:[%s13 + $0x68] sm:$0xff]
        %v844 = vld [vmem:[%s13 + $0x70] sm:$0xff]
        %v845 = vld [vmem:[%s13 + $0x78] sm:$0xff]
        %v846 = vld [vmem:[%s13 + $0x80] sm:$0xff]
        %v847 = vld [vmem:[%s13 + $0x88] sm:$0xff]
        %v848 = vld [vmem:[%s13 + $0x90] sm:$0xff]
        %v849 = vld [vmem:[%s13 + $0x98] sm:$0xff]
        %v850 = vld [vmem:[%s13 + $0xa0] sm:$0xff]
        %v851 = vld [vmem:[%s13 + $0xa8] sm:$0xff]
        %v852 = vld [vmem:[%s13 + $0xb0] sm:$0xff]
        %v853 = vld [vmem:[%s13 + $0xb8] sm:$0xff]
        %v854 = vld [vmem:[%s13 + $0xc0] sm:$0xff]
        %v855 = vld [vmem:[%s13 + $0xc8] sm:$0xff]
        %v856 = vld [vmem:[%s13 + $0xd0] sm:$0xff]
        %v857 = vld [vmem:[%s13 + $0xd8] sm:$0xff]
        %v858 = vld [vmem:[%s13 + $0xe0] sm:$0xff]
        %v859 = vld [vmem:[%s13 + $0xe8] sm:$0xff]
        %v860 = vld [vmem:[%s13 + $0xf0] sm:$0xff]
        %v861 = vld [vmem:[%s13 + $0xf8] sm:$0xff]
        %v862 = vld [vmem:[%s14] sm:$0x1]
        %863 = vadd.xlane.f32.xlu0 %v710
        %v864 = vpop.xlane.xlu0 %863
        %865 = vadd.xlane.f32.xlu0 %v715
        %v866 = vpop.xlane.xlu0 %865
        %867 = vadd.xlane.f32.xlu0 %v720
        %v868 = vpop.xlane.xlu0 %867
        %v869 = vrcp.pop 128.0
        %v870 = vmul.f32 %v864, %v869
        %v871 = vmul.f32 %v866, %v869
        %v872 = vmul.f32 %v868, %v869
        %v873 = vsub.f32 %v710, %v870
        %v874 = vsub.f32 %v715, %v871
        %v875 = vsub.f32 %v720, %v872
        %v876 = vmul.f32 %v873, %v873
        %v877 = vmul.f32 %v874, %v874
        %v878 = vmul.f32 %v875, %v875
        %879 = vadd.xlane.f32.xlu0 %v876
        %v880 = vpop.xlane.xlu0 %879
        %881 = vadd.xlane.f32.xlu0 %v877
        %v882 = vpop.xlane.xlu0 %881
        %883 = vadd.xlane.f32.xlu0 %v878
        %v884 = vpop.xlane.xlu0 %883
        %v885 = vmul.f32 %v880, %v869
        %v886 = vmul.f32 %v882, %v869
        %v887 = vmul.f32 %v884, %v869
        %v888 = vadd.f32 %v885, 1e-05
        %v889 = vadd.f32 %v886, 1e-05
        %v890 = vadd.f32 %v887, 1e-05
        %v891 = vrsqrt.pop %v888
        %v892 = vrsqrt.pop %v889
        %v893 = vrsqrt.pop %v890
        %v894 = vmul.f32 %v873, %v891
        %v895 = vmul.f32 %v874, %v892
        %v896 = vmul.f32 %v875, %v893
        %v898 = vlaneseq
        %v899 = vshrl.u32 %v898, 7
        %v900 = vsub.s32 0, %v899
        %v901 = vrot.slane %v727, %v900
        %v903 = vmul.f32 %v894, %v901
        %v904 = vmul.f32 %v895, %v901
        %v905 = vmul.f32 %v896, %v901
        %v907 = vlaneseq
        %v908 = vshrl.u32 %v907, 7
        %v909 = vsub.s32 0, %v908
        %v910 = vrot.slane %v728, %v909
        %v912 = vadd.f32 %v903, %v910
        %v913 = vadd.f32 %v904, %v910
        %v914 = vadd.f32 %v905, %v910
        %v916 = vlaneseq
        %v917 = vshrl.u32 %v916, 7
        %v918 = vsub.s32 0, %v917
        %v919 = vrot.slane %v777, %v918
        %v920 = vlaneseq
        %v921 = vshrl.u32 %v920, 7
        %v922 = vsub.s32 1, %v921
        %v923 = vrot.slane %v777, %v922
        %v924 = vlaneseq
        %v925 = vshrl.u32 %v924, 7
        %v926 = vsub.s32 2, %v925
        %v927 = vrot.slane %v777, %v926
        %931 = vmatprep.subr.mxu0 %v775
        %932 = vmatpush1.msra.mxu0 %v774
        %933 = vmatprep.subr.mxu0 %v772
        %934 = vmatpush1.msra.mxu0 %v771
        %935 = vmatprep.subr.mxu0 %v769
        %936 = vmatpush1.msra.mxu0 %v768
        %937 = vmatprep.subr.mxu0 %v766
        %938 = vmatpush1.msra.mxu0 %v765
        %939 = vmatprep.subr.mxu0 %v763
        %940 = vmatpush1.msra.mxu0 %v762
        %941 = vmatprep.subr.mxu0 %v760
        %942 = vmatpush1.msra.mxu0 %v759
        %943 = vmatprep.subr.mxu0 %v757
        %944 = vmatpush1.msra.mxu0 %v756
        %945 = vmatprep.subr.mxu0 %v754
        %946 = vmatpush1.msra.mxu0 %v753
        %947 = vmatprep.subr.mxu0 %v751
        %948 = vmatpush1.msra.mxu0 %v750
        %949 = vmatprep.subr.mxu0 %v748
        %950 = vmatpush1.msra.mxu0 %v747
        %951 = vmatprep.subr.mxu0 %v745
        %952 = vmatpush1.msra.mxu0 %v744
        %953 = vmatprep.subr.mxu0 %v742
        %954 = vmatpush1.msra.mxu0 %v741
        %955 = vmatprep.subr.mxu0 %v739
        %956 = vmatpush1.msra.mxu0 %v738
        %957 = vmatprep.subr.mxu0 %v736
        %958 = vmatpush1.msra.mxu0 %v735
        %959 = vmatprep.subr.mxu0 %v733
        %960 = vmatpush1.msra.mxu0 %v732
        %961 = vmatprep.subr.mxu0 %v730
        %962 = vmatpush1.msra.mxu0 %v729
        %963 = vmatprep.subr.mxu0 0.0
        %964 = vmatpush2.msra.mxu0 0.0
        %965 = vmatprep.subr.mxu0 0.0
        %966 = vmatpush2.msra.mxu0 0.0
        %967 = vmatprep.subr.mxu0 0.0
        %968 = vmatpush2.msra.mxu0 0.0
        %969 = vmatprep.subr.mxu0 0.0
        %970 = vmatpush2.msra.mxu0 0.0
        %971 = vmatprep.subr.mxu0 0.0
        %972 = vmatpush2.msra.mxu0 0.0
        %973 = vmatprep.subr.mxu0 0.0
        %974 = vmatpush2.msra.mxu0 0.0
        %975 = vmatprep.subr.mxu0 0.0
        %976 = vmatpush2.msra.mxu0 0.0
        %977 = vmatprep.subr.mxu0 0.0
        %978 = vmatpush2.msra.mxu0 0.0
        %979 = vmatprep.subr.mxu0 0.0
        %980 = vmatpush2.msra.mxu0 0.0
        %981 = vmatprep.subr.mxu0 0.0
        %982 = vmatpush2.msra.mxu0 0.0
        %983 = vmatprep.subr.mxu0 0.0
        %984 = vmatpush2.msra.mxu0 0.0
        %985 = vmatprep.subr.mxu0 0.0
        %986 = vmatpush2.msra.mxu0 0.0
        %987 = vmatprep.subr.mxu0 0.0
        %988 = vmatpush2.msra.mxu0 0.0
        %989 = vmatprep.subr.mxu0 0.0
        %990 = vmatpush2.msra.mxu0 0.0
        %991 = vmatprep.subr.mxu0 0.0
        %992 = vmatpush2.msra.mxu0 0.0
        %993 = vmatprep.subr.mxu0 0.0
        %994 = vmatpush2.msra.mxu0 0.0
        %995 = vmatprep.mubr.f32.mxu0 0.0
        %996 = vmatmul.mubr.f32.gmra.mxu0 %v912
        %v997 = vpop.f32.mrf.mxu0
        %v998 = vadd.f32 %v919, %v997
        %v999 = vpop.f32.mrf.mxu0
        %v1000 = vadd.f32 %v923, %v999
        %1001 = vmatprep.mubr.f32.mxu0 0.0
        %1002 = vmatmul.mubr.f32.gmra.mxu0 %v913
        %v1003 = vpop.f32.mrf.mxu0
        %v1004 = vadd.f32 %v919, %v1003
        %v1005 = vpop.f32.mrf.mxu0
        %v1006 = vadd.f32 %v923, %v1005
        %1007 = vmatprep.mubr.f32.mxu0 0.0
        %1008 = vmatmul.mubr.f32.gmra.mxu0 %v914
        %v1009 = vpop.f32.mrf.mxu0
        %v1010 = vadd.f32 %v919, %v1009
        %v1011 = vpop.f32.mrf.mxu0
        %v1012 = vadd.f32 %v923, %v1011
        %1013 = vdwg.mxu0
        %1014 = vmatprep.subr.mxu0 0.0
        %1015 = vmatpush1.msra.mxu0 %v776
        %1016 = vmatprep.subr.mxu0 0.0
        %1017 = vmatpush1.msra.mxu0 %v773
        %1018 = vmatprep.subr.mxu0 0.0
        %1019 = vmatpush1.msra.mxu0 %v770
        %1020 = vmatprep.subr.mxu0 0.0
        %1021 = vmatpush1.msra.mxu0 %v767
        %1022 = vmatprep.subr.mxu0 0.0
        %1023 = vmatpush1.msra.mxu0 %v764
        %1024 = vmatprep.subr.mxu0 0.0
        %1025 = vmatpush1.msra.mxu0 %v761
        %1026 = vmatprep.subr.mxu0 0.0
        %1027 = vmatpush1.msra.mxu0 %v758
        %1028 = vmatprep.subr.mxu0 0.0
        %1029 = vmatpush1.msra.mxu0 %v755
        %1030 = vmatprep.subr.mxu0 0.0
        %1031 = vmatpush1.msra.mxu0 %v752
        %1032 = vmatprep.subr.mxu0 0.0
        %1033 = vmatpush1.msra.mxu0 %v749
        %1034 = vmatprep.subr.mxu0 0.0
        %1035 = vmatpush1.msra.mxu0 %v746
        %1036 = vmatprep.subr.mxu0 0.0
        %1037 = vmatpush1.msra.mxu0 %v743
        %1038 = vmatprep.subr.mxu0 0.0
        %1039 = vmatpush1.msra.mxu0 %v740
        %1040 = vmatprep.subr.mxu0 0.0
        %1041 = vmatpush1.msra.mxu0 %v737
        %1042 = vmatprep.subr.mxu0 0.0
        %1043 = vmatpush1.msra.mxu0 %v734
        %1044 = vmatprep.subr.mxu0 0.0
        %1045 = vmatpush1.msra.mxu0 %v731
        %1046 = vmatprep.subr.mxu0 0.0
        %1047 = vmatpush2.msra.mxu0 0.0
        %1048 = vmatprep.subr.mxu0 0.0
        %1049 = vmatpush2.msra.mxu0 0.0
        %1050 = vmatprep.subr.mxu0 0.0
        %1051 = vmatpush2.msra.mxu0 0.0
        %1052 = vmatprep.subr.mxu0 0.0
        %1053 = vmatpush2.msra.mxu0 0.0
        %1054 = vmatprep.subr.mxu0 0.0
        %1055 = vmatpush2.msra.mxu0 0.0
        %1056 = vmatprep.subr.mxu0 0.0
        %1057 = vmatpush2.msra.mxu0 0.0
        %1058 = vmatprep.subr.mxu0 0.0
        %1059 = vmatpush2.msra.mxu0 0.0
        %1060 = vmatprep.subr.mxu0 0.0
        %1061 = vmatpush2.msra.mxu0 0.0
        %1062 = vmatprep.subr.mxu0 0.0
        %1063 = vmatpush2.msra.mxu0 0.0
        %1064 = vmatprep.subr.mxu0 0.0
        %1065 = vmatpush2.msra.mxu0 0.0
        %1066 = vmatprep.subr.mxu0 0.0
        %1067 = vmatpush2.msra.mxu0 0.0
        %1068 = vmatprep.subr.mxu0 0.0
        %1069 = vmatpush2.msra.mxu0 0.0
        %1070 = vmatprep.subr.mxu0 0.0
        %1071 = vmatpush2.msra.mxu0 0.0
        %1072 = vmatprep.subr.mxu0 0.0
        %1073 = vmatpush2.msra.mxu0 0.0
        %1074 = vmatprep.subr.mxu0 0.0
        %1075 = vmatpush2.msra.mxu0 0.0
        %1076 = vmatprep.subr.mxu0 0.0
        %1077 = vmatpush2.msra.mxu0 0.0
        %1078 = vmatprep.mubr.f32.mxu0 0.0
        %1079 = vmatmul.mubr.f32.gmra.mxu0 %v912
        %v1080 = vpop.f32.mrf.mxu0
        %v1081 = vadd.f32 %v927, %v1080
        %v1082 = vpop.f32.mrf.mxu0
        %1083 = vmatprep.mubr.f32.mxu0 0.0
        %1084 = vmatmul.mubr.f32.gmra.mxu0 %v913
        %v1085 = vpop.f32.mrf.mxu0
        %v1086 = vadd.f32 %v927, %v1085
        %v1087 = vpop.f32.mrf.mxu0
        %1088 = vmatprep.mubr.f32.mxu0 0.0
        %1089 = vmatmul.mubr.f32.gmra.mxu0 %v914
        %v1090 = vpop.f32.mrf.mxu0
        %v1091 = vadd.f32 %v927, %v1090
        %v1092 = vpop.f32.mrf.mxu0
        %1093 = vdwg.mxu0
        %vm1094 = vcmask 261120
        %v1096 = vsel %vm1094, %v998, 0
        %v1099 = vsel %vm1094, %v1004, 0
        %v1102 = vsel %vm1094, %v1010, 0
        %v1105 = vsel %vm1094, %v1000, 0
        %v1108 = vsel %vm1094, %v1006, 0
        %v1111 = vsel %vm1094, %v1012, 0
        %1113 = vmatprep.subr.mxu0 0.0
        %1114 = vmatpush1.xpose.msra.mxu0 0.0
        %1115 = vmatprep.subr.mxu0 0.0
        %1116 = vmatpush1.xpose.msra.mxu0 0.0
        %1117 = vmatprep.subr.mxu0 0.0
        %1118 = vmatpush1.xpose.msra.mxu0 0.0
        %1119 = vmatprep.subr.mxu0 0.0
        %1120 = vmatpush1.xpose.msra.mxu0 0.0
        %1121 = vmatprep.subr.mxu0 0.0
        %1122 = vmatpush1.xpose.msra.mxu0 0.0
        %1123 = vmatprep.subr.mxu0 0.0
        %1124 = vmatpush1.xpose.msra.mxu0 0.0
        %1125 = vmatprep.subr.mxu0 0.0
        %1126 = vmatpush1.xpose.msra.mxu0 0.0
        %1127 = vmatprep.subr.mxu0 0.0
        %1128 = vmatpush1.xpose.msra.mxu0 0.0
        %1129 = vmatprep.subr.mxu0 0.0
        %1130 = vmatpush1.xpose.msra.mxu0 0.0
        %1131 = vmatprep.subr.mxu0 0.0
        %1132 = vmatpush1.xpose.msra.mxu0 0.0
        %1133 = vmatprep.subr.mxu0 0.0
        %1134 = vmatpush1.xpose.msra.mxu0 0.0
        %1135 = vmatprep.subr.mxu0 0.0
        %1136 = vmatpush1.xpose.msra.mxu0 0.0
        %1137 = vmatprep.subr.mxu0 0.0
        %1138 = vmatpush1.xpose.msra.mxu0 0.0
        %1139 = vmatprep.subr.mxu0 0.0
        %1140 = vmatpush1.xpose.msra.mxu0 %v1111
        %1141 = vmatprep.subr.mxu0 0.0
        %1142 = vmatpush1.xpose.msra.mxu0 %v1108
        %1143 = vmatprep.subr.mxu0 0.0
        %1144 = vmatpush1.xpose.msra.mxu0 %v1105
        %1145 = vmatprep.subr.mxu0 0.0
        %1146 = vmatpush2.xpose.msra.mxu0 0.0
        %1147 = vmatprep.subr.mxu0 0.0
        %1148 = vmatpush2.xpose.msra.mxu0 0.0
        %1149 = vmatprep.subr.mxu0 0.0
        %1150 = vmatpush2.xpose.msra.mxu0 0.0
        %1151 = vmatprep.subr.mxu0 0.0
        %1152 = vmatpush2.xpose.msra.mxu0 0.0
        %1153 = vmatprep.subr.mxu0 0.0
        %1154 = vmatpush2.xpose.msra.mxu0 0.0
        %1155 = vmatprep.subr.mxu0 0.0
        %1156 = vmatpush2.xpose.msra.mxu0 0.0
        %1157 = vmatprep.subr.mxu0 0.0
        %1158 = vmatpush2.xpose.msra.mxu0 0.0
        %1159 = vmatprep.subr.mxu0 0.0
        %1160 = vmatpush2.xpose.msra.mxu0 0.0
        %1161 = vmatprep.subr.mxu0 0.0
        %1162 = vmatpush2.xpose.msra.mxu0 0.0
        %1163 = vmatprep.subr.mxu0 0.0
        %1164 = vmatpush2.xpose.msra.mxu0 0.0
        %1165 = vmatprep.subr.mxu0 0.0
        %1166 = vmatpush2.xpose.msra.mxu0 0.0
        %1167 = vmatprep.subr.mxu0 0.0
        %1168 = vmatpush2.xpose.msra.mxu0 0.0
        %1169 = vmatprep.subr.mxu0 0.0
        %1170 = vmatpush2.xpose.msra.mxu0 0.0
        %1171 = vmatprep.subr.mxu0 0.0
        %1172 = vmatpush2.xpose.msra.mxu0 0.0
        %1173 = vmatprep.subr.mxu0 0.0
        %1174 = vmatpush2.xpose.msra.mxu0 0.0
        %1175 = vmatprep.subr.mxu0 0.0
        %1176 = vmatpush2.xpose.msra.mxu0 0.0
        %1177 = vmatprep.mubr.f32.mxu0 0.0
        %1178 = vmatmul.mubr.f32.gmra.mxu0 %v1096
        %v1179 = vpop.f32.mrf.mxu0
        %v1180 = vadd.f32 0.0, %v1179
        %v1181 = vpop.f32.mrf.mxu0
        %1182 = vmatprep.mubr.f32.mxu0 0.0
        %1183 = vmatmul.mubr.f32.gmra.mxu0 %v1099
        %v1184 = vpop.f32.mrf.mxu0
        %v1185 = vadd.f32 0.0, %v1184
        %v1186 = vpop.f32.mrf.mxu0
        %1187 = vmatprep.mubr.f32.mxu0 0.0
        %1188 = vmatmul.mubr.f32.gmra.mxu0 %v1102
        %v1189 = vpop.f32.mrf.mxu0
        %v1190 = vadd.f32 0.0, %v1189
        %v1191 = vpop.f32.mrf.mxu0
        %1192 = vdwg.mxu0
        %v1193 = vmul.f32 %v1180, 0.17677669
        %v1194 = vmul.f32 %v1185, 0.17677669
        %v1195 = vmul.f32 %v1190, 0.17677669
        %v1196 = vadd.f32 %v1193, %v726
        %v1197 = vadd.f32 %v1194, %v726
        %v1198 = vadd.f32 %v1195, %v726
        %vm1199 = vcmask 195584
        %v1200 = vsel %vm1199, %v1196, -inf
        %1201 = vmax.xlane.f32.xlu0 %v1200
        %v1202 = vpop.xlane.xlu0 %1201
        %v1203 = vsel %vm1199, %v1197, -inf
        %1204 = vmax.xlane.f32.xlu0 %v1203
        %v1205 = vpop.xlane.xlu0 %1204
        %v1206 = vsel %vm1199, %v1198, -inf
        %1207 = vmax.xlane.f32.xlu0 %v1206
        %v1208 = vpop.xlane.xlu0 %1207
        %v1209 = vsub.f32 %v1196, %v1202
        %v1210 = vsub.f32 %v1197, %v1205
        %v1211 = vsub.f32 %v1198, %v1208
        %v1212 = vmul.f32 %v1209, 1.442695
        %v1213 = vpow.pop %v1212
        %v1214 = vmul.f32 %v1210, 1.442695
        %v1215 = vpow.pop %v1214
        %v1216 = vmul.f32 %v1211, 1.442695
        %v1217 = vpow.pop %v1216
        %v1218 = vsel %vm1199, %v1213, 0.0
        %1219 = vadd.xlane.f32.xlu0 %v1218
        %v1220 = vpop.xlane.xlu0 %1219
        %v1221 = vsel %vm1199, %v1215, 0.0
        %1222 = vadd.xlane.f32.xlu0 %v1221
        %v1223 = vpop.xlane.xlu0 %1222
        %v1224 = vsel %vm1199, %v1217, 0.0
        %1225 = vadd.xlane.f32.xlu0 %v1224
        %v1226 = vpop.xlane.xlu0 %1225
        %v1227 = vrcp.pop %v1220
        %v1228 = vrcp.pop %v1223
        %v1229 = vrcp.pop %v1226
        %v1230 = vmul.f32 %v1213, %v1227
        %v1231 = vmul.f32 %v1215, %v1228
        %v1232 = vmul.f32 %v1217, %v1229
        %v1234 = vsel %vm1199, %v1230, 0
        %v1237 = vsel %vm1199, %v1231, 0
        %v1240 = vsel %vm1199, %v1232, 0
        %1242 = vmatprep.subr.mxu0 0.0
        %1243 = vmatpush1.msra.mxu0 0.0
        %1244 = vmatprep.subr.mxu0 0.0
        %1245 = vmatpush1.msra.mxu0 0.0
        %1246 = vmatprep.subr.mxu0 0.0
        %1247 = vmatpush1.msra.mxu0 0.0
        %1248 = vmatprep.subr.mxu0 0.0
        %1249 = vmatpush1.msra.mxu0 0.0
        %1250 = vmatprep.subr.mxu0 0.0
        %1251 = vmatpush1.msra.mxu0 0.0
        %1252 = vmatprep.subr.mxu0 0.0
        %1253 = vmatpush1.msra.mxu0 0.0
        %1254 = vmatprep.subr.mxu0 0.0
        %1255 = vmatpush1.msra.mxu0 0.0
        %1256 = vmatprep.subr.mxu0 0.0
        %1257 = vmatpush1.msra.mxu0 0.0
        %1258 = vmatprep.subr.mxu0 0.0
        %1259 = vmatpush1.msra.mxu0 0.0
        %1260 = vmatprep.subr.mxu0 0.0
        %1261 = vmatpush1.msra.mxu0 0.0
        %1262 = vmatprep.subr.mxu0 0.0
        %1263 = vmatpush1.msra.mxu0 0.0
        %1264 = vmatprep.subr.mxu0 0.0
        %1265 = vmatpush1.msra.mxu0 0.0
        %1266 = vmatprep.subr.mxu0 0.0
        %1267 = vmatpush1.msra.mxu0 0.0
        %1268 = vmatprep.subr.mxu0 0.0
        %1269 = vmatpush1.msra.mxu0 %v1091
        %1270 = vmatprep.subr.mxu0 0.0
        %1271 = vmatpush1.msra.mxu0 %v1086
        %1272 = vmatprep.subr.mxu0 0.0
        %1273 = vmatpush1.msra.mxu0 %v1081
        %1274 = vmatprep.subr.mxu0 0.0
        %1275 = vmatpush2.msra.mxu0 0.0
        %1276 = vmatprep.subr.mxu0 0.0
        %1277 = vmatpush2.msra.mxu0 0.0
        %1278 = vmatprep.subr.mxu0 0.0
        %1279 = vmatpush2.msra.mxu0 0.0
        %1280 = vmatprep.subr.mxu0 0.0
        %1281 = vmatpush2.msra.mxu0 0.0
        %1282 = vmatprep.subr.mxu0 0.0
        %1283 = vmatpush2.msra.mxu0 0.0
        %1284 = vmatprep.subr.mxu0 0.0
        %1285 = vmatpush2.msra.mxu0 0.0
        %1286 = vmatprep.subr.mxu0 0.0
        %1287 = vmatpush2.msra.mxu0 0.0
        %1288 = vmatprep.subr.mxu0 0.0
        %1289 = vmatpush2.msra.mxu0 0.0
        %1290 = vmatprep.subr.mxu0 0.0
        %1291 = vmatpush2.msra.mxu0 0.0
        %1292 = vmatprep.subr.mxu0 0.0
        %1293 = vmatpush2.msra.mxu0 0.0
        %1294 = vmatprep.subr.mxu0 0.0
        %1295 = vmatpush2.msra.mxu0 0.0
        %1296 = vmatprep.subr.mxu0 0.0
        %1297 = vmatpush2.msra.mxu0 0.0
        %1298 = vmatprep.subr.mxu0 0.0
        %1299 = vmatpush2.msra.mxu0 0.0
        %1300 = vmatprep.subr.mxu0 0.0
        %1301 = vmatpush2.msra.mxu0 0.0
        %1302 = vmatprep.subr.mxu0 0.0
        %1303 = vmatpush2.msra.mxu0 0.0
        %1304 = vmatprep.subr.mxu0 0.0
        %1305 = vmatpush2.msra.mxu0 0.0
        %1306 = vmatprep.mubr.f32.mxu0 0.0
        %1307 = vmatmul.mubr.f32.gmra.mxu0 %v1234
        %v1308 = vpop.f32.mrf.mxu0
        %v1309 = vadd.f32 0.0, %v1308
        %v1310 = vpop.f32.mrf.mxu0
        %1311 = vmatprep.mubr.f32.mxu0 0.0
        %1312 = vmatmul.mubr.f32.gmra.mxu0 %v1237
        %v1313 = vpop.f32.mrf.mxu0
        %v1314 = vadd.f32 0.0, %v1313
        %v1315 = vpop.f32.mrf.mxu0
        %1316 = vmatprep.mubr.f32.mxu0 0.0
        %1317 = vmatmul.mubr.f32.gmra.mxu0 %v1240
        %v1318 = vpop.f32.mrf.mxu0
        %v1319 = vadd.f32 0.0, %v1318
        %v1320 = vpop.f32.mrf.mxu0
        %1321 = vdwg.mxu0
        %1322 = vrot.lane.b32.xlu0 %v998, 96
        %v1323 = vpop.permute.xlu0 %1322
        %1324 = vrot.lane.b32.xlu0 %v1004, 96
        %v1325 = vpop.permute.xlu0 %1324
        %1326 = vrot.lane.b32.xlu0 %v1010, 96
        %v1327 = vpop.permute.xlu0 %1326
        %1328 = vrot.lane.b32.xlu0 %v1000, 96
        %v1329 = vpop.permute.xlu0 %1328
        %1330 = vrot.lane.b32.xlu0 %v1006, 96
        %v1331 = vpop.permute.xlu0 %1330
        %1332 = vrot.lane.b32.xlu0 %v1012, 96
        %v1333 = vpop.permute.xlu0 %1332
        %v1334 = vsel %vm1094, %v1323, 0
        %v1336 = vsel %vm1094, %v1325, 0
        %v1338 = vsel %vm1094, %v1327, 0
        %v1340 = vsel %vm1094, %v1329, 0
        %v1342 = vsel %vm1094, %v1331, 0
        %v1344 = vsel %vm1094, %v1333, 0
        %1346 = vmatprep.subr.mxu0 0.0
        %1347 = vmatpush1.xpose.msra.mxu0 0.0
        %1348 = vmatprep.subr.mxu0 0.0
        %1349 = vmatpush1.xpose.msra.mxu0 0.0
        %1350 = vmatprep.subr.mxu0 0.0
        %1351 = vmatpush1.xpose.msra.mxu0 0.0
        %1352 = vmatprep.subr.mxu0 0.0
        %1353 = vmatpush1.xpose.msra.mxu0 0.0
        %1354 = vmatprep.subr.mxu0 0.0
        %1355 = vmatpush1.xpose.msra.mxu0 0.0
        %1356 = vmatprep.subr.mxu0 0.0
        %1357 = vmatpush1.xpose.msra.mxu0 0.0
        %1358 = vmatprep.subr.mxu0 0.0
        %1359 = vmatpush1.xpose.msra.mxu0 0.0
        %1360 = vmatprep.subr.mxu0 0.0
        %1361 = vmatpush1.xpose.msra.mxu0 0.0
        %1362 = vmatprep.subr.mxu0 0.0
        %1363 = vmatpush1.xpose.msra.mxu0 0.0
        %1364 = vmatprep.subr.mxu0 0.0
        %1365 = vmatpush1.xpose.msra.mxu0 0.0
        %1366 = vmatprep.subr.mxu0 0.0
        %1367 = vmatpush1.xpose.msra.mxu0 0.0
        %1368 = vmatprep.subr.mxu0 0.0
        %1369 = vmatpush1.xpose.msra.mxu0 0.0
        %1370 = vmatprep.subr.mxu0 0.0
        %1371 = vmatpush1.xpose.msra.mxu0 0.0
        %1372 = vmatprep.subr.mxu0 0.0
        %1373 = vmatpush1.xpose.msra.mxu0 %v1344
        %1374 = vmatprep.subr.mxu0 0.0
        %1375 = vmatpush1.xpose.msra.mxu0 %v1342
        %1376 = vmatprep.subr.mxu0 0.0
        %1377 = vmatpush1.xpose.msra.mxu0 %v1340
        %1378 = vmatprep.subr.mxu0 0.0
        %1379 = vmatpush2.xpose.msra.mxu0 0.0
        %1380 = vmatprep.subr.mxu0 0.0
        %1381 = vmatpush2.xpose.msra.mxu0 0.0
        %1382 = vmatprep.subr.mxu0 0.0
        %1383 = vmatpush2.xpose.msra.mxu0 0.0
        %1384 = vmatprep.subr.mxu0 0.0
        %1385 = vmatpush2.xpose.msra.mxu0 0.0
        %1386 = vmatprep.subr.mxu0 0.0
        %1387 = vmatpush2.xpose.msra.mxu0 0.0
        %1388 = vmatprep.subr.mxu0 0.0
        %1389 = vmatpush2.xpose.msra.mxu0 0.0
        %1390 = vmatprep.subr.mxu0 0.0
        %1391 = vmatpush2.xpose.msra.mxu0 0.0
        %1392 = vmatprep.subr.mxu0 0.0
        %1393 = vmatpush2.xpose.msra.mxu0 0.0
        %1394 = vmatprep.subr.mxu0 0.0
        %1395 = vmatpush2.xpose.msra.mxu0 0.0
        %1396 = vmatprep.subr.mxu0 0.0
        %1397 = vmatpush2.xpose.msra.mxu0 0.0
        %1398 = vmatprep.subr.mxu0 0.0
        %1399 = vmatpush2.xpose.msra.mxu0 0.0
        %1400 = vmatprep.subr.mxu0 0.0
        %1401 = vmatpush2.xpose.msra.mxu0 0.0
        %1402 = vmatprep.subr.mxu0 0.0
        %1403 = vmatpush2.xpose.msra.mxu0 0.0
        %1404 = vmatprep.subr.mxu0 0.0
        %1405 = vmatpush2.xpose.msra.mxu0 0.0
        %1406 = vmatprep.subr.mxu0 0.0
        %1407 = vmatpush2.xpose.msra.mxu0 0.0
        %1408 = vmatprep.subr.mxu0 0.0
        %1409 = vmatpush2.xpose.msra.mxu0 0.0
        %1410 = vmatprep.mubr.f32.mxu0 0.0
        %1411 = vmatmul.mubr.f32.gmra.mxu0 %v1334
        %v1412 = vpop.f32.mrf.mxu0
        %v1413 = vadd.f32 0.0, %v1412
        %v1414 = vpop.f32.mrf.mxu0
        %1415 = vmatprep.mubr.f32.mxu0 0.0
        %1416 = vmatmul.mubr.f32.gmra.mxu0 %v1336
        %v1417 = vpop.f32.mrf.mxu0
        %v1418 = vadd.f32 0.0, %v1417
        %v1419 = vpop.f32.mrf.mxu0
        %1420 = vmatprep.mubr.f32.mxu0 0.0
        %1421 = vmatmul.mubr.f32.gmra.mxu0 %v1338
        %v1422 = vpop.f32.mrf.mxu0
        %v1423 = vadd.f32 0.0, %v1422
        %v1424 = vpop.f32.mrf.mxu0
        %1425 = vdwg.mxu0
        %v1426 = vmul.f32 %v1413, 0.17677669
        %v1427 = vmul.f32 %v1418, 0.17677669
        %v1428 = vmul.f32 %v1423, 0.17677669
        %v1429 = vadd.f32 %v1426, %v726
        %v1430 = vadd.f32 %v1427, %v726
        %v1431 = vadd.f32 %v1428, %v726
        %v1432 = vsel %vm1199, %v1429, -inf
        %1433 = vmax.xlane.f32.xlu0 %v1432
        %v1434 = vpop.xlane.xlu0 %1433
        %v1435 = vsel %vm1199, %v1430, -inf
        %1436 = vmax.xlane.f32.xlu0 %v1435
        %v1437 = vpop.xlane.xlu0 %1436
        %v1438 = vsel %vm1199, %v1431, -inf
        %1439 = vmax.xlane.f32.xlu0 %v1438
        %v1440 = vpop.xlane.xlu0 %1439
        %v1441 = vsub.f32 %v1429, %v1434
        %v1442 = vsub.f32 %v1430, %v1437
        %v1443 = vsub.f32 %v1431, %v1440
        %v1444 = vmul.f32 %v1441, 1.442695
        %v1445 = vpow.pop %v1444
        %v1446 = vmul.f32 %v1442, 1.442695
        %v1447 = vpow.pop %v1446
        %v1448 = vmul.f32 %v1443, 1.442695
        %v1449 = vpow.pop %v1448
        %v1450 = vsel %vm1199, %v1445, 0.0
        %1451 = vadd.xlane.f32.xlu0 %v1450
        %v1452 = vpop.xlane.xlu0 %1451
        %v1453 = vsel %vm1199, %v1447, 0.0
        %1454 = vadd.xlane.f32.xlu0 %v1453
        %v1455 = vpop.xlane.xlu0 %1454
        %v1456 = vsel %vm1199, %v1449, 0.0
        %1457 = vadd.xlane.f32.xlu0 %v1456
        %v1458 = vpop.xlane.xlu0 %1457
        %v1459 = vrcp.pop %v1452
        %v1460 = vrcp.pop %v1455
        %v1461 = vrcp.pop %v1458
        %v1462 = vmul.f32 %v1445, %v1459
        %v1463 = vmul.f32 %v1447, %v1460
        %v1464 = vmul.f32 %v1449, %v1461
        %1468 = vrot.lane.b32.xlu0 %v1081, 96
        %v1469 = vpop.permute.xlu0 %1468
        %1470 = vrot.lane.b32.xlu0 %v1086, 96
        %v1471 = vpop.permute.xlu0 %1470
        %1472 = vrot.lane.b32.xlu0 %v1091, 96
        %v1473 = vpop.permute.xlu0 %1472
        %v1478 = vsel %vm1199, %v1462, 0
        %v1481 = vsel %vm1199, %v1463, 0
        %v1484 = vsel %vm1199, %v1464, 0
        %1486 = vmatprep.subr.mxu0 0.0
        %1487 = vmatpush1.msra.mxu0 0.0
        %1488 = vmatprep.subr.mxu0 0.0
        %1489 = vmatpush1.msra.mxu0 0.0
        %1490 = vmatprep.subr.mxu0 0.0
        %1491 = vmatpush1.msra.mxu0 0.0
        %1492 = vmatprep.subr.mxu0 0.0
        %1493 = vmatpush1.msra.mxu0 0.0
        %1494 = vmatprep.subr.mxu0 0.0
        %1495 = vmatpush1.msra.mxu0 0.0
        %1496 = vmatprep.subr.mxu0 0.0
        %1497 = vmatpush1.msra.mxu0 0.0
        %1498 = vmatprep.subr.mxu0 0.0
        %1499 = vmatpush1.msra.mxu0 0.0
        %1500 = vmatprep.subr.mxu0 0.0
        %1501 = vmatpush1.msra.mxu0 0.0
        %1502 = vmatprep.subr.mxu0 0.0
        %1503 = vmatpush1.msra.mxu0 0.0
        %1504 = vmatprep.subr.mxu0 0.0
        %1505 = vmatpush1.msra.mxu0 0.0
        %1506 = vmatprep.subr.mxu0 0.0
        %1507 = vmatpush1.msra.mxu0 0.0
        %1508 = vmatprep.subr.mxu0 0.0
        %1509 = vmatpush1.msra.mxu0 0.0
        %1510 = vmatprep.subr.mxu0 0.0
        %1511 = vmatpush1.msra.mxu0 0.0
        %1512 = vmatprep.subr.mxu0 0.0
        %1513 = vmatpush1.msra.mxu0 %v1473
        %1514 = vmatprep.subr.mxu0 0.0
        %1515 = vmatpush1.msra.mxu0 %v1471
        %1516 = vmatprep.subr.mxu0 0.0
        %1517 = vmatpush1.msra.mxu0 %v1469
        %1518 = vmatprep.subr.mxu0 0.0
        %1519 = vmatpush2.msra.mxu0 0.0
        %1520 = vmatprep.subr.mxu0 0.0
        %1521 = vmatpush2.msra.mxu0 0.0
        %1522 = vmatprep.subr.mxu0 0.0
        %1523 = vmatpush2.msra.mxu0 0.0
        %1524 = vmatprep.subr.mxu0 0.0
        %1525 = vmatpush2.msra.mxu0 0.0
        %1526 = vmatprep.subr.mxu0 0.0
        %1527 = vmatpush2.msra.mxu0 0.0
        %1528 = vmatprep.subr.mxu0 0.0
        %1529 = vmatpush2.msra.mxu0 0.0
        %1530 = vmatprep.subr.mxu0 0.0
        %1531 = vmatpush2.msra.mxu0 0.0
        %1532 = vmatprep.subr.mxu0 0.0
        %1533 = vmatpush2.msra.mxu0 0.0
        %1534 = vmatprep.subr.mxu0 0.0
        %1535 = vmatpush2.msra.mxu0 0.0
        %1536 = vmatprep.subr.mxu0 0.0
        %1537 = vmatpush2.msra.mxu0 0.0
        %1538 = vmatprep.subr.mxu0 0.0
        %1539 = vmatpush2.msra.mxu0 0.0
        %1540 = vmatprep.subr.mxu0 0.0
        %1541 = vmatpush2.msra.mxu0 0.0
        %1542 = vmatprep.subr.mxu0 0.0
        %1543 = vmatpush2.msra.mxu0 0.0
        %1544 = vmatprep.subr.mxu0 0.0
        %1545 = vmatpush2.msra.mxu0 0.0
        %1546 = vmatprep.subr.mxu0 0.0
        %1547 = vmatpush2.msra.mxu0 0.0
        %1548 = vmatprep.subr.mxu0 0.0
        %1549 = vmatpush2.msra.mxu0 0.0
        %1550 = vmatprep.mubr.f32.mxu0 0.0
        %1551 = vmatmul.mubr.f32.gmra.mxu0 %v1478
        %v1552 = vpop.f32.mrf.mxu0
        %v1553 = vadd.f32 0.0, %v1552
        %v1554 = vpop.f32.mrf.mxu0
        %1555 = vmatprep.mubr.f32.mxu0 0.0
        %1556 = vmatmul.mubr.f32.gmra.mxu0 %v1481
        %v1557 = vpop.f32.mrf.mxu0
        %v1558 = vadd.f32 0.0, %v1557
        %v1559 = vpop.f32.mrf.mxu0
        %1560 = vmatprep.mubr.f32.mxu0 0.0
        %1561 = vmatmul.mubr.f32.gmra.mxu0 %v1484
        %v1562 = vpop.f32.mrf.mxu0
        %v1563 = vadd.f32 0.0, %v1562
        %v1564 = vpop.f32.mrf.mxu0
        %1565 = vdwg.mxu0
        %v1567 = vsel %vm1094, %v1553, 0
        %v1570 = vsel %vm1094, %v1558, 0
        %v1573 = vsel %vm1094, %v1563, 0
        %1575 = vmatprep.subr.mxu0 0.0
        %1576 = vmatpush1.msra.mxu0 0.0
        %1577 = vmatprep.subr.mxu0 0.0
        %1578 = vmatpush1.msra.mxu0 0.0
        %1579 = vmatprep.subr.mxu0 0.0
        %1580 = vmatpush1.msra.mxu0 0.0
        %1581 = vmatprep.subr.mxu0 0.0
        %1582 = vmatpush1.msra.mxu0 0.0
        %1583 = vmatprep.subr.mxu0 0.0
        %1584 = vmatpush1.msra.mxu0 0.0
        %1585 = vmatprep.subr.mxu0 0.0
        %1586 = vmatpush1.msra.mxu0 0.0
        %1587 = vmatprep.subr.mxu0 0.0
        %1588 = vmatpush1.msra.mxu0 0.0
        %1589 = vmatprep.subr.mxu0 0.0
        %1590 = vmatpush1.msra.mxu0 0.0
        %1591 = vmatprep.subr.mxu0 0.0
        %1592 = vmatpush1.msra.mxu0 0.0
        %1593 = vmatprep.subr.mxu0 0.0
        %1594 = vmatpush1.msra.mxu0 0.0
        %1595 = vmatprep.subr.mxu0 0.0
        %1596 = vmatpush1.msra.mxu0 0.0
        %1597 = vmatprep.subr.mxu0 0.0
        %1598 = vmatpush1.msra.mxu0 0.0
        %1599 = vmatprep.subr.mxu0 0.0
        %1600 = vmatpush1.msra.mxu0 %v785
        %1601 = vmatprep.subr.mxu0 0.0
        %1602 = vmatpush1.msra.mxu0 %v784
        %1603 = vmatprep.subr.mxu0 0.0
        %1604 = vmatpush1.msra.mxu0 %v783
        %1605 = vmatprep.subr.mxu0 0.0
        %1606 = vmatpush1.msra.mxu0 %v782
        %1607 = vmatprep.subr.mxu0 0.0
        %1608 = vmatpush2.msra.mxu0 0.0
        %1609 = vmatprep.subr.mxu0 0.0
        %1610 = vmatpush2.msra.mxu0 0.0
        %1611 = vmatprep.subr.mxu0 0.0
        %1612 = vmatpush2.msra.mxu0 0.0
        %1613 = vmatprep.subr.mxu0 0.0
        %1614 = vmatpush2.msra.mxu0 0.0
        %1615 = vmatprep.subr.mxu0 0.0
        %1616 = vmatpush2.msra.mxu0 0.0
        %1617 = vmatprep.subr.mxu0 0.0
        %1618 = vmatpush2.msra.mxu0 0.0
        %1619 = vmatprep.subr.mxu0 0.0
        %1620 = vmatpush2.msra.mxu0 0.0
        %1621 = vmatprep.subr.mxu0 0.0
        %1622 = vmatpush2.msra.mxu0 0.0
        %1623 = vmatprep.subr.mxu0 0.0
        %1624 = vmatpush2.msra.mxu0 0.0
        %1625 = vmatprep.subr.mxu0 0.0
        %1626 = vmatpush2.msra.mxu0 0.0
        %1627 = vmatprep.subr.mxu0 0.0
        %1628 = vmatpush2.msra.mxu0 0.0
        %1629 = vmatprep.subr.mxu0 0.0
        %1630 = vmatpush2.msra.mxu0 0.0
        %1631 = vmatprep.subr.mxu0 0.0
        %1632 = vmatpush2.msra.mxu0 0.0
        %1633 = vmatprep.subr.mxu0 0.0
        %1634 = vmatpush2.msra.mxu0 0.0
        %1635 = vmatprep.subr.mxu0 0.0
        %1636 = vmatpush2.msra.mxu0 0.0
        %1637 = vmatprep.subr.mxu0 0.0
        %1638 = vmatpush2.msra.mxu0 0.0
        %1639 = vmatprep.mubr.f32.mxu0 0.0
        %1640 = vmatmul.mubr.f32.gmra.mxu0 %v1567
        %v1641 = vpop.f32.mrf.mxu0
        %v1642 = vadd.f32 0.0, %v1641
        %v1643 = vpop.f32.mrf.mxu0
        %1644 = vmatprep.mubr.f32.mxu0 0.0
        %1645 = vmatmul.mubr.f32.gmra.mxu0 %v1570
        %v1646 = vpop.f32.mrf.mxu0
        %v1647 = vadd.f32 0.0, %v1646
        %v1648 = vpop.f32.mrf.mxu0
        %1649 = vmatprep.mubr.f32.mxu0 0.0
        %1650 = vmatmul.mubr.f32.gmra.mxu0 %v1573
        %v1651 = vpop.f32.mrf.mxu0
        %v1652 = vadd.f32 0.0, %v1651
        %v1653 = vpop.f32.mrf.mxu0
        %1654 = vdwg.mxu0
        %v1656 = vsel %vm1094, %v1309, 0
        %v1659 = vsel %vm1094, %v1314, 0
        %v1662 = vsel %vm1094, %v1319, 0
        %1664 = vmatprep.subr.mxu0 0.0
        %1665 = vmatpush1.msra.mxu0 0.0
        %1666 = vmatprep.subr.mxu0 0.0
        %1667 = vmatpush1.msra.mxu0 0.0
        %1668 = vmatprep.subr.mxu0 0.0
        %1669 = vmatpush1.msra.mxu0 0.0
        %1670 = vmatprep.subr.mxu0 0.0
        %1671 = vmatpush1.msra.mxu0 0.0
        %1672 = vmatprep.subr.mxu0 0.0
        %1673 = vmatpush1.msra.mxu0 0.0
        %1674 = vmatprep.subr.mxu0 0.0
        %1675 = vmatpush1.msra.mxu0 0.0
        %1676 = vmatprep.subr.mxu0 0.0
        %1677 = vmatpush1.msra.mxu0 0.0
        %1678 = vmatprep.subr.mxu0 0.0
        %1679 = vmatpush1.msra.mxu0 0.0
        %1680 = vmatprep.subr.mxu0 0.0
        %1681 = vmatpush1.msra.mxu0 0.0
        %1682 = vmatprep.subr.mxu0 0.0
        %1683 = vmatpush1.msra.mxu0 0.0
        %1684 = vmatprep.subr.mxu0 0.0
        %1685 = vmatpush1.msra.mxu0 0.0
        %1686 = vmatprep.subr.mxu0 0.0
        %1687 = vmatpush1.msra.mxu0 0.0
        %1688 = vmatprep.subr.mxu0 0.0
        %1689 = vmatpush1.msra.mxu0 %v781
        %1690 = vmatprep.subr.mxu0 0.0
        %1691 = vmatpush1.msra.mxu0 %v780
        %1692 = vmatprep.subr.mxu0 0.0
        %1693 = vmatpush1.msra.mxu0 %v779
        %1694 = vmatprep.subr.mxu0 0.0
        %1695 = vmatpush1.msra.mxu0 %v778
        %1696 = vmatprep.subr.mxu0 0.0
        %1697 = vmatpush2.msra.mxu0 0.0
        %1698 = vmatprep.subr.mxu0 0.0
        %1699 = vmatpush2.msra.mxu0 0.0
        %1700 = vmatprep.subr.mxu0 0.0
        %1701 = vmatpush2.msra.mxu0 0.0
        %1702 = vmatprep.subr.mxu0 0.0
        %1703 = vmatpush2.msra.mxu0 0.0
        %1704 = vmatprep.subr.mxu0 0.0
        %1705 = vmatpush2.msra.mxu0 0.0
        %1706 = vmatprep.subr.mxu0 0.0
        %1707 = vmatpush2.msra.mxu0 0.0
        %1708 = vmatprep.subr.mxu0 0.0
        %1709 = vmatpush2.msra.mxu0 0.0
        %1710 = vmatprep.subr.mxu0 0.0
        %1711 = vmatpush2.msra.mxu0 0.0
        %1712 = vmatprep.subr.mxu0 0.0
        %1713 = vmatpush2.msra.mxu0 0.0
        %1714 = vmatprep.subr.mxu0 0.0
        %1715 = vmatpush2.msra.mxu0 0.0
        %1716 = vmatprep.subr.mxu0 0.0
        %1717 = vmatpush2.msra.mxu0 0.0
        %1718 = vmatprep.subr.mxu0 0.0
        %1719 = vmatpush2.msra.mxu0 0.0
        %1720 = vmatprep.subr.mxu0 0.0
        %1721 = vmatpush2.msra.mxu0 0.0
        %1722 = vmatprep.subr.mxu0 0.0
        %1723 = vmatpush2.msra.mxu0 0.0
        %1724 = vmatprep.subr.mxu0 0.0
        %1725 = vmatpush2.msra.mxu0 0.0
        %1726 = vmatprep.subr.mxu0 0.0
        %1727 = vmatpush2.msra.mxu0 0.0
        %1728 = vmatprep.mubr.f32.mxu0 0.0
        %1729 = vmatmul.mubr.f32.gmra.mxu0 %v1656
        %v1730 = vpop.f32.mrf.mxu0
        %v1731 = vadd.f32 %v1642, %v1730
        %v1732 = vpop.f32.mrf.mxu0
        %1733 = vmatprep.mubr.f32.mxu0 0.0
        %1734 = vmatmul.mubr.f32.gmra.mxu0 %v1659
        %v1735 = vpop.f32.mrf.mxu0
        %v1736 = vadd.f32 %v1647, %v1735
        %v1737 = vpop.f32.mrf.mxu0
        %1738 = vmatprep.mubr.f32.mxu0 0.0
        %1739 = vmatmul.mubr.f32.gmra.mxu0 %v1662
        %v1740 = vpop.f32.mrf.mxu0
        %v1741 = vadd.f32 %v1652, %v1740
        %v1742 = vpop.f32.mrf.mxu0
        %1743 = vdwg.mxu0
        %1744 = vrot.lane.b32.xlu0 %v998, 64
        %v1745 = vpop.permute.xlu0 %1744
        %1746 = vrot.lane.b32.xlu0 %v1004, 64
        %v1747 = vpop.permute.xlu0 %1746
        %1748 = vrot.lane.b32.xlu0 %v1010, 64
        %v1749 = vpop.permute.xlu0 %1748
        %1750 = vrot.lane.b32.xlu0 %v1000, 64
        %v1751 = vpop.permute.xlu0 %1750
        %1752 = vrot.lane.b32.xlu0 %v1006, 64
        %v1753 = vpop.permute.xlu0 %1752
        %1754 = vrot.lane.b32.xlu0 %v1012, 64
        %v1755 = vpop.permute.xlu0 %1754
        %v1756 = vsel %vm1094, %v1745, 0
        %v1758 = vsel %vm1094, %v1747, 0
        %v1760 = vsel %vm1094, %v1749, 0
        %v1762 = vsel %vm1094, %v1751, 0
        %v1764 = vsel %vm1094, %v1753, 0
        %v1766 = vsel %vm1094, %v1755, 0
        %1768 = vmatprep.subr.mxu0 0.0
        %1769 = vmatpush1.xpose.msra.mxu0 0.0
        %1770 = vmatprep.subr.mxu0 0.0
        %1771 = vmatpush1.xpose.msra.mxu0 0.0
        %1772 = vmatprep.subr.mxu0 0.0
        %1773 = vmatpush1.xpose.msra.mxu0 0.0
        %1774 = vmatprep.subr.mxu0 0.0
        %1775 = vmatpush1.xpose.msra.mxu0 0.0
        %1776 = vmatprep.subr.mxu0 0.0
        %1777 = vmatpush1.xpose.msra.mxu0 0.0
        %1778 = vmatprep.subr.mxu0 0.0
        %1779 = vmatpush1.xpose.msra.mxu0 0.0
        %1780 = vmatprep.subr.mxu0 0.0
        %1781 = vmatpush1.xpose.msra.mxu0 0.0
        %1782 = vmatprep.subr.mxu0 0.0
        %1783 = vmatpush1.xpose.msra.mxu0 0.0
        %1784 = vmatprep.subr.mxu0 0.0
        %1785 = vmatpush1.xpose.msra.mxu0 0.0
        %1786 = vmatprep.subr.mxu0 0.0
        %1787 = vmatpush1.xpose.msra.mxu0 0.0
        %1788 = vmatprep.subr.mxu0 0.0
        %1789 = vmatpush1.xpose.msra.mxu0 0.0
        %1790 = vmatprep.subr.mxu0 0.0
        %1791 = vmatpush1.xpose.msra.mxu0 0.0
        %1792 = vmatprep.subr.mxu0 0.0
        %1793 = vmatpush1.xpose.msra.mxu0 0.0
        %1794 = vmatprep.subr.mxu0 0.0
        %1795 = vmatpush1.xpose.msra.mxu0 %v1766
        %1796 = vmatprep.subr.mxu0 0.0
        %1797 = vmatpush1.xpose.msra.mxu0 %v1764
        %1798 = vmatprep.subr.mxu0 0.0
        %1799 = vmatpush1.xpose.msra.mxu0 %v1762
        %1800 = vmatprep.subr.mxu0 0.0
        %1801 = vmatpush2.xpose.msra.mxu0 0.0
        %1802 = vmatprep.subr.mxu0 0.0
        %1803 = vmatpush2.xpose.msra.mxu0 0.0
        %1804 = vmatprep.subr.mxu0 0.0
        %1805 = vmatpush2.xpose.msra.mxu0 0.0
        %1806 = vmatprep.subr.mxu0 0.0
        %1807 = vmatpush2.xpose.msra.mxu0 0.0
        %1808 = vmatprep.subr.mxu0 0.0
        %1809 = vmatpush2.xpose.msra.mxu0 0.0
        %1810 = vmatprep.subr.mxu0 0.0
        %1811 = vmatpush2.xpose.msra.mxu0 0.0
        %1812 = vmatprep.subr.mxu0 0.0
        %1813 = vmatpush2.xpose.msra.mxu0 0.0
        %1814 = vmatprep.subr.mxu0 0.0
        %1815 = vmatpush2.xpose.msra.mxu0 0.0
        %1816 = vmatprep.subr.mxu0 0.0
        %1817 = vmatpush2.xpose.msra.mxu0 0.0
        %1818 = vmatprep.subr.mxu0 0.0
        %1819 = vmatpush2.xpose.msra.mxu0 0.0
        %1820 = vmatprep.subr.mxu0 0.0
        %1821 = vmatpush2.xpose.msra.mxu0 0.0
        %1822 = vmatprep.subr.mxu0 0.0
        %1823 = vmatpush2.xpose.msra.mxu0 0.0
        %1824 = vmatprep.subr.mxu0 0.0
        %1825 = vmatpush2.xpose.msra.mxu0 0.0
        %1826 = vmatprep.subr.mxu0 0.0
        %1827 = vmatpush2.xpose.msra.mxu0 0.0
        %1828 = vmatprep.subr.mxu0 0.0
        %1829 = vmatpush2.xpose.msra.mxu0 0.0
        %1830 = vmatprep.subr.mxu0 0.0
        %1831 = vmatpush2.xpose.msra.mxu0 0.0
        %1832 = vmatprep.mubr.f32.mxu0 0.0
        %1833 = vmatmul.mubr.f32.gmra.mxu0 %v1756
        %v1834 = vpop.f32.mrf.mxu0
        %v1835 = vadd.f32 0.0, %v1834
        %v1836 = vpop.f32.mrf.mxu0
        %1837 = vmatprep.mubr.f32.mxu0 0.0
        %1838 = vmatmul.mubr.f32.gmra.mxu0 %v1758
        %v1839 = vpop.f32.mrf.mxu0
        %v1840 = vadd.f32 0.0, %v1839
        %v1841 = vpop.f32.mrf.mxu0
        %1842 = vmatprep.mubr.f32.mxu0 0.0
        %1843 = vmatmul.mubr.f32.gmra.mxu0 %v1760
        %v1844 = vpop.f32.mrf.mxu0
        %v1845 = vadd.f32 0.0, %v1844
        %v1846 = vpop.f32.mrf.mxu0
        %1847 = vdwg.mxu0
        %v1848 = vmul.f32 %v1835, 0.17677669
        %v1849 = vmul.f32 %v1840, 0.17677669
        %v1850 = vmul.f32 %v1845, 0.17677669
        %v1851 = vadd.f32 %v1848, %v726
        %v1852 = vadd.f32 %v1849, %v726
        %v1853 = vadd.f32 %v1850, %v726
        %v1854 = vsel %vm1199, %v1851, -inf
        %1855 = vmax.xlane.f32.xlu0 %v1854
        %v1856 = vpop.xlane.xlu0 %1855
        %v1857 = vsel %vm1199, %v1852, -inf
        %1858 = vmax.xlane.f32.xlu0 %v1857
        %v1859 = vpop.xlane.xlu0 %1858
        %v1860 = vsel %vm1199, %v1853, -inf
        %1861 = vmax.xlane.f32.xlu0 %v1860
        %v1862 = vpop.xlane.xlu0 %1861
        %v1863 = vsub.f32 %v1851, %v1856
        %v1864 = vsub.f32 %v1852, %v1859
        %v1865 = vsub.f32 %v1853, %v1862
        %v1866 = vmul.f32 %v1863, 1.442695
        %v1867 = vpow.pop %v1866
        %v1868 = vmul.f32 %v1864, 1.442695
        %v1869 = vpow.pop %v1868
        %v1870 = vmul.f32 %v1865, 1.442695
        %v1871 = vpow.pop %v1870
        %v1872 = vsel %vm1199, %v1867, 0.0
        %1873 = vadd.xlane.f32.xlu0 %v1872
        %v1874 = vpop.xlane.xlu0 %1873
        %v1875 = vsel %vm1199, %v1869, 0.0
        %1876 = vadd.xlane.f32.xlu0 %v1875
        %v1877 = vpop.xlane.xlu0 %1876
        %v1878 = vsel %vm1199, %v1871, 0.0
        %1879 = vadd.xlane.f32.xlu0 %v1878
        %v1880 = vpop.xlane.xlu0 %1879
        %v1881 = vrcp.pop %v1874
        %v1882 = vrcp.pop %v1877
        %v1883 = vrcp.pop %v1880
        %v1884 = vmul.f32 %v1867, %v1881
        %v1885 = vmul.f32 %v1869, %v1882
        %v1886 = vmul.f32 %v1871, %v1883
        %1887 = vrot.lane.b32.xlu0 %v1081, 64
        %v1888 = vpop.permute.xlu0 %1887
        %1889 = vrot.lane.b32.xlu0 %v1086, 64
        %v1890 = vpop.permute.xlu0 %1889
        %1891 = vrot.lane.b32.xlu0 %v1091, 64
        %v1892 = vpop.permute.xlu0 %1891
        %v1897 = vsel %vm1199, %v1884, 0
        %v1900 = vsel %vm1199, %v1885, 0
        %v1903 = vsel %vm1199, %v1886, 0
        %1905 = vmatprep.subr.mxu0 0.0
        %1906 = vmatpush1.msra.mxu0 0.0
        %1907 = vmatprep.subr.mxu0 0.0
        %1908 = vmatpush1.msra.mxu0 0.0
        %1909 = vmatprep.subr.mxu0 0.0
        %1910 = vmatpush1.msra.mxu0 0.0
        %1911 = vmatprep.subr.mxu0 0.0
        %1912 = vmatpush1.msra.mxu0 0.0
        %1913 = vmatprep.subr.mxu0 0.0
        %1914 = vmatpush1.msra.mxu0 0.0
        %1915 = vmatprep.subr.mxu0 0.0
        %1916 = vmatpush1.msra.mxu0 0.0
        %1917 = vmatprep.subr.mxu0 0.0
        %1918 = vmatpush1.msra.mxu0 0.0
        %1919 = vmatprep.subr.mxu0 0.0
        %1920 = vmatpush1.msra.mxu0 0.0
        %1921 = vmatprep.subr.mxu0 0.0
        %1922 = vmatpush1.msra.mxu0 0.0
        %1923 = vmatprep.subr.mxu0 0.0
        %1924 = vmatpush1.msra.mxu0 0.0
        %1925 = vmatprep.subr.mxu0 0.0
        %1926 = vmatpush1.msra.mxu0 0.0
        %1927 = vmatprep.subr.mxu0 0.0
        %1928 = vmatpush1.msra.mxu0 0.0
        %1929 = vmatprep.subr.mxu0 0.0
        %1930 = vmatpush1.msra.mxu0 0.0
        %1931 = vmatprep.subr.mxu0 0.0
        %1932 = vmatpush1.msra.mxu0 %v1892
        %1933 = vmatprep.subr.mxu0 0.0
        %1934 = vmatpush1.msra.mxu0 %v1890
        %1935 = vmatprep.subr.mxu0 0.0
        %1936 = vmatpush1.msra.mxu0 %v1888
        %1937 = vmatprep.subr.mxu0 0.0
        %1938 = vmatpush2.msra.mxu0 0.0
        %1939 = vmatprep.subr.mxu0 0.0
        %1940 = vmatpush2.msra.mxu0 0.0
        %1941 = vmatprep.subr.mxu0 0.0
        %1942 = vmatpush2.msra.mxu0 0.0
        %1943 = vmatprep.subr.mxu0 0.0
        %1944 = vmatpush2.msra.mxu0 0.0
        %1945 = vmatprep.subr.mxu0 0.0
        %1946 = vmatpush2.msra.mxu0 0.0
        %1947 = vmatprep.subr.mxu0 0.0
        %1948 = vmatpush2.msra.mxu0 0.0
        %1949 = vmatprep.subr.mxu0 0.0
        %1950 = vmatpush2.msra.mxu0 0.0
        %1951 = vmatprep.subr.mxu0 0.0
        %1952 = vmatpush2.msra.mxu0 0.0
        %1953 = vmatprep.subr.mxu0 0.0
        %1954 = vmatpush2.msra.mxu0 0.0
        %1955 = vmatprep.subr.mxu0 0.0
        %1956 = vmatpush2.msra.mxu0 0.0
        %1957 = vmatprep.subr.mxu0 0.0
        %1958 = vmatpush2.msra.mxu0 0.0
        %1959 = vmatprep.subr.mxu0 0.0
        %1960 = vmatpush2.msra.mxu0 0.0
        %1961 = vmatprep.subr.mxu0 0.0
        %1962 = vmatpush2.msra.mxu0 0.0
        %1963 = vmatprep.subr.mxu0 0.0
        %1964 = vmatpush2.msra.mxu0 0.0
        %1965 = vmatprep.subr.mxu0 0.0
        %1966 = vmatpush2.msra.mxu0 0.0
        %1967 = vmatprep.subr.mxu0 0.0
        %1968 = vmatpush2.msra.mxu0 0.0
        %1969 = vmatprep.mubr.f32.mxu0 0.0
        %1970 = vmatmul.mubr.f32.gmra.mxu0 %v1897
        %v1971 = vpop.f32.mrf.mxu0
        %v1972 = vadd.f32 0.0, %v1971
        %v1973 = vpop.f32.mrf.mxu0
        %1974 = vmatprep.mubr.f32.mxu0 0.0
        %1975 = vmatmul.mubr.f32.gmra.mxu0 %v1900
        %v1976 = vpop.f32.mrf.mxu0
        %v1977 = vadd.f32 0.0, %v1976
        %v1978 = vpop.f32.mrf.mxu0
        %1979 = vmatprep.mubr.f32.mxu0 0.0
        %1980 = vmatmul.mubr.f32.gmra.mxu0 %v1903
        %v1981 = vpop.f32.mrf.mxu0
        %v1982 = vadd.f32 0.0, %v1981
        %v1983 = vpop.f32.mrf.mxu0
        %1984 = vdwg.mxu0
        %v1986 = vsel %vm1094, %v1972, 0
        %v1989 = vsel %vm1094, %v1977, 0
        %v1992 = vsel %vm1094, %v1982, 0
        %1994 = vmatprep.subr.mxu0 0.0
        %1995 = vmatpush1.msra.mxu0 0.0
        %1996 = vmatprep.subr.mxu0 0.0
        %1997 = vmatpush1.msra.mxu0 0.0
        %1998 = vmatprep.subr.mxu0 0.0
        %1999 = vmatpush1.msra.mxu0 0.0
        %2000 = vmatprep.subr.mxu0 0.0
        %2001 = vmatpush1.msra.mxu0 0.0
        %2002 = vmatprep.subr.mxu0 0.0
        %2003 = vmatpush1.msra.mxu0 0.0
        %2004 = vmatprep.subr.mxu0 0.0
        %2005 = vmatpush1.msra.mxu0 0.0
        %2006 = vmatprep.subr.mxu0 0.0
        %2007 = vmatpush1.msra.mxu0 0.0
        %2008 = vmatprep.subr.mxu0 0.0
        %2009 = vmatpush1.msra.mxu0 0.0
        %2010 = vmatprep.subr.mxu0 0.0
        %2011 = vmatpush1.msra.mxu0 0.0
        %2012 = vmatprep.subr.mxu0 0.0
        %2013 = vmatpush1.msra.mxu0 0.0
        %2014 = vmatprep.subr.mxu0 0.0
        %2015 = vmatpush1.msra.mxu0 0.0
        %2016 = vmatprep.subr.mxu0 0.0
        %2017 = vmatpush1.msra.mxu0 0.0
        %2018 = vmatprep.subr.mxu0 0.0
        %2019 = vmatpush1.msra.mxu0 %v789
        %2020 = vmatprep.subr.mxu0 0.0
        %2021 = vmatpush1.msra.mxu0 %v788
        %2022 = vmatprep.subr.mxu0 0.0
        %2023 = vmatpush1.msra.mxu0 %v787
        %2024 = vmatprep.subr.mxu0 0.0
        %2025 = vmatpush1.msra.mxu0 %v786
        %2026 = vmatprep.subr.mxu0 0.0
        %2027 = vmatpush2.msra.mxu0 0.0
        %2028 = vmatprep.subr.mxu0 0.0
        %2029 = vmatpush2.msra.mxu0 0.0
        %2030 = vmatprep.subr.mxu0 0.0
        %2031 = vmatpush2.msra.mxu0 0.0
        %2032 = vmatprep.subr.mxu0 0.0
        %2033 = vmatpush2.msra.mxu0 0.0
        %2034 = vmatprep.subr.mxu0 0.0
        %2035 = vmatpush2.msra.mxu0 0.0
        %2036 = vmatprep.subr.mxu0 0.0
        %2037 = vmatpush2.msra.mxu0 0.0
        %2038 = vmatprep.subr.mxu0 0.0
        %2039 = vmatpush2.msra.mxu0 0.0
        %2040 = vmatprep.subr.mxu0 0.0
        %2041 = vmatpush2.msra.mxu0 0.0
        %2042 = vmatprep.subr.mxu0 0.0
        %2043 = vmatpush2.msra.mxu0 0.0
        %2044 = vmatprep.subr.mxu0 0.0
        %2045 = vmatpush2.msra.mxu0 0.0
        %2046 = vmatprep.subr.mxu0 0.0
        %2047 = vmatpush2.msra.mxu0 0.0
        %2048 = vmatprep.subr.mxu0 0.0
        %2049 = vmatpush2.msra.mxu0 0.0
        %2050 = vmatprep.subr.mxu0 0.0
        %2051 = vmatpush2.msra.mxu0 0.0
        %2052 = vmatprep.subr.mxu0 0.0
        %2053 = vmatpush2.msra.mxu0 0.0
        %2054 = vmatprep.subr.mxu0 0.0
        %2055 = vmatpush2.msra.mxu0 0.0
        %2056 = vmatprep.subr.mxu0 0.0
        %2057 = vmatpush2.msra.mxu0 0.0
        %2058 = vmatprep.mubr.f32.mxu0 0.0
        %2059 = vmatmul.mubr.f32.gmra.mxu0 %v1986
        %v2060 = vpop.f32.mrf.mxu0
        %v2061 = vadd.f32 0.0, %v2060
        %v2062 = vpop.f32.mrf.mxu0
        %2063 = vmatprep.mubr.f32.mxu0 0.0
        %2064 = vmatmul.mubr.f32.gmra.mxu0 %v1989
        %v2065 = vpop.f32.mrf.mxu0
        %v2066 = vadd.f32 0.0, %v2065
        %v2067 = vpop.f32.mrf.mxu0
        %2068 = vmatprep.mubr.f32.mxu0 0.0
        %2069 = vmatmul.mubr.f32.gmra.mxu0 %v1992
        %v2070 = vpop.f32.mrf.mxu0
        %v2071 = vadd.f32 0.0, %v2070
        %v2072 = vpop.f32.mrf.mxu0
        %2073 = vdwg.mxu0
        %v2074 = vadd.f32 %v1731, %v2061
        %v2075 = vadd.f32 %v1736, %v2066
        %v2076 = vadd.f32 %v1741, %v2071
        %2077 = vrot.lane.b32.xlu0 %v998, 32
        %v2078 = vpop.permute.xlu0 %2077
        %2079 = vrot.lane.b32.xlu0 %v1004, 32
        %v2080 = vpop.permute.xlu0 %2079
        %2081 = vrot.lane.b32.xlu0 %v1010, 32
        %v2082 = vpop.permute.xlu0 %2081
        %2083 = vrot.lane.b32.xlu0 %v1000, 32
        %v2084 = vpop.permute.xlu0 %2083
        %2085 = vrot.lane.b32.xlu0 %v1006, 32
        %v2086 = vpop.permute.xlu0 %2085
        %2087 = vrot.lane.b32.xlu0 %v1012, 32
        %v2088 = vpop.permute.xlu0 %2087
        %v2089 = vsel %vm1094, %v2078, 0
        %v2091 = vsel %vm1094, %v2080, 0
        %v2093 = vsel %vm1094, %v2082, 0
        %v2095 = vsel %vm1094, %v2084, 0
        %v2097 = vsel %vm1094, %v2086, 0
        %v2099 = vsel %vm1094, %v2088, 0
        %2101 = vmatprep.subr.mxu0 0.0
        %2102 = vmatpush1.xpose.msra.mxu0 0.0
        %2103 = vmatprep.subr.mxu0 0.0
        %2104 = vmatpush1.xpose.msra.mxu0 0.0
        %2105 = vmatprep.subr.mxu0 0.0
        %2106 = vmatpush1.xpose.msra.mxu0 0.0
        %2107 = vmatprep.subr.mxu0 0.0
        %2108 = vmatpush1.xpose.msra.mxu0 0.0
        %2109 = vmatprep.subr.mxu0 0.0
        %2110 = vmatpush1.xpose.msra.mxu0 0.0
        %2111 = vmatprep.subr.mxu0 0.0
        %2112 = vmatpush1.xpose.msra.mxu0 0.0
        %2113 = vmatprep.subr.mxu0 0.0
        %2114 = vmatpush1.xpose.msra.mxu0 0.0
        %2115 = vmatprep.subr.mxu0 0.0
        %2116 = vmatpush1.xpose.msra.mxu0 0.0
        %2117 = vmatprep.subr.mxu0 0.0
        %2118 = vmatpush1.xpose.msra.mxu0 0.0
        %2119 = vmatprep.subr.mxu0 0.0
        %2120 = vmatpush1.xpose.msra.mxu0 0.0
        %2121 = vmatprep.subr.mxu0 0.0
        %2122 = vmatpush1.xpose.msra.mxu0 0.0
        %2123 = vmatprep.subr.mxu0 0.0
        %2124 = vmatpush1.xpose.msra.mxu0 0.0
        %2125 = vmatprep.subr.mxu0 0.0
        %2126 = vmatpush1.xpose.msra.mxu0 0.0
        %2127 = vmatprep.subr.mxu0 0.0
        %2128 = vmatpush1.xpose.msra.mxu0 %v2099
        %2129 = vmatprep.subr.mxu0 0.0
        %2130 = vmatpush1.xpose.msra.mxu0 %v2097
        %2131 = vmatprep.subr.mxu0 0.0
        %2132 = vmatpush1.xpose.msra.mxu0 %v2095
        %2133 = vmatprep.subr.mxu0 0.0
        %2134 = vmatpush2.xpose.msra.mxu0 0.0
        %2135 = vmatprep.subr.mxu0 0.0
        %2136 = vmatpush2.xpose.msra.mxu0 0.0
        %2137 = vmatprep.subr.mxu0 0.0
        %2138 = vmatpush2.xpose.msra.mxu0 0.0
        %2139 = vmatprep.subr.mxu0 0.0
        %2140 = vmatpush2.xpose.msra.mxu0 0.0
        %2141 = vmatprep.subr.mxu0 0.0
        %2142 = vmatpush2.xpose.msra.mxu0 0.0
        %2143 = vmatprep.subr.mxu0 0.0
        %2144 = vmatpush2.xpose.msra.mxu0 0.0
        %2145 = vmatprep.subr.mxu0 0.0
        %2146 = vmatpush2.xpose.msra.mxu0 0.0
        %2147 = vmatprep.subr.mxu0 0.0
        %2148 = vmatpush2.xpose.msra.mxu0 0.0
        %2149 = vmatprep.subr.mxu0 0.0
        %2150 = vmatpush2.xpose.msra.mxu0 0.0
        %2151 = vmatprep.subr.mxu0 0.0
        %2152 = vmatpush2.xpose.msra.mxu0 0.0
        %2153 = vmatprep.subr.mxu0 0.0
        %2154 = vmatpush2.xpose.msra.mxu0 0.0
        %2155 = vmatprep.subr.mxu0 0.0
        %2156 = vmatpush2.xpose.msra.mxu0 0.0
        %2157 = vmatprep.subr.mxu0 0.0
        %2158 = vmatpush2.xpose.msra.mxu0 0.0
        %2159 = vmatprep.subr.mxu0 0.0
        %2160 = vmatpush2.xpose.msra.mxu0 0.0
        %2161 = vmatprep.subr.mxu0 0.0
        %2162 = vmatpush2.xpose.msra.mxu0 0.0
        %2163 = vmatprep.subr.mxu0 0.0
        %2164 = vmatpush2.xpose.msra.mxu0 0.0
        %2165 = vmatprep.mubr.f32.mxu0 0.0
        %2166 = vmatmul.mubr.f32.gmra.mxu0 %v2089
        %v2167 = vpop.f32.mrf.mxu0
        %v2168 = vadd.f32 0.0, %v2167
        %v2169 = vpop.f32.mrf.mxu0
        %2170 = vmatprep.mubr.f32.mxu0 0.0
        %2171 = vmatmul.mubr.f32.gmra.mxu0 %v2091
        %v2172 = vpop.f32.mrf.mxu0
        %v2173 = vadd.f32 0.0, %v2172
        %v2174 = vpop.f32.mrf.mxu0
        %2175 = vmatprep.mubr.f32.mxu0 0.0
        %2176 = vmatmul.mubr.f32.gmra.mxu0 %v2093
        %v2177 = vpop.f32.mrf.mxu0
        %v2178 = vadd.f32 0.0, %v2177
        %v2179 = vpop.f32.mrf.mxu0
        %2180 = vdwg.mxu0
        %v2181 = vmul.f32 %v2168, 0.17677669
        %v2182 = vmul.f32 %v2173, 0.17677669
        %v2183 = vmul.f32 %v2178, 0.17677669
        %v2184 = vadd.f32 %v2181, %v726
        %v2185 = vadd.f32 %v2182, %v726
        %v2186 = vadd.f32 %v2183, %v726
        %v2187 = vsel %vm1199, %v2184, -inf
        %2188 = vmax.xlane.f32.xlu0 %v2187
        %v2189 = vpop.xlane.xlu0 %2188
        %v2190 = vsel %vm1199, %v2185, -inf
        %2191 = vmax.xlane.f32.xlu0 %v2190
        %v2192 = vpop.xlane.xlu0 %2191
        %v2193 = vsel %vm1199, %v2186, -inf
        %2194 = vmax.xlane.f32.xlu0 %v2193
        %v2195 = vpop.xlane.xlu0 %2194
        %v2196 = vsub.f32 %v2184, %v2189
        %v2197 = vsub.f32 %v2185, %v2192
        %v2198 = vsub.f32 %v2186, %v2195
        %v2199 = vmul.f32 %v2196, 1.442695
        %v2200 = vpow.pop %v2199
        %v2201 = vmul.f32 %v2197, 1.442695
        %v2202 = vpow.pop %v2201
        %v2203 = vmul.f32 %v2198, 1.442695
        %v2204 = vpow.pop %v2203
        %v2205 = vsel %vm1199, %v2200, 0.0
        %2206 = vadd.xlane.f32.xlu0 %v2205
        %v2207 = vpop.xlane.xlu0 %2206
        %v2208 = vsel %vm1199, %v2202, 0.0
        %2209 = vadd.xlane.f32.xlu0 %v2208
        %v2210 = vpop.xlane.xlu0 %2209
        %v2211 = vsel %vm1199, %v2204, 0.0
        %2212 = vadd.xlane.f32.xlu0 %v2211
        %v2213 = vpop.xlane.xlu0 %2212
        %v2214 = vrcp.pop %v2207
        %v2215 = vrcp.pop %v2210
        %v2216 = vrcp.pop %v2213
        %v2217 = vmul.f32 %v2200, %v2214
        %v2218 = vmul.f32 %v2202, %v2215
        %v2219 = vmul.f32 %v2204, %v2216
        %2220 = vrot.lane.b32.xlu0 %v1081, 32
        %v2221 = vpop.permute.xlu0 %2220
        %2222 = vrot.lane.b32.xlu0 %v1086, 32
        %v2223 = vpop.permute.xlu0 %2222
        %2224 = vrot.lane.b32.xlu0 %v1091, 32
        %v2225 = vpop.permute.xlu0 %2224
        %v2230 = vsel %vm1199, %v2217, 0
        %v2233 = vsel %vm1199, %v2218, 0
        %v2236 = vsel %vm1199, %v2219, 0
        %2238 = vmatprep.subr.mxu0 0.0
        %2239 = vmatpush1.msra.mxu0 0.0
        %2240 = vmatprep.subr.mxu0 0.0
        %2241 = vmatpush1.msra.mxu0 0.0
        %2242 = vmatprep.subr.mxu0 0.0
        %2243 = vmatpush1.msra.mxu0 0.0
        %2244 = vmatprep.subr.mxu0 0.0
        %2245 = vmatpush1.msra.mxu0 0.0
        %2246 = vmatprep.subr.mxu0 0.0
        %2247 = vmatpush1.msra.mxu0 0.0
        %2248 = vmatprep.subr.mxu0 0.0
        %2249 = vmatpush1.msra.mxu0 0.0
        %2250 = vmatprep.subr.mxu0 0.0
        %2251 = vmatpush1.msra.mxu0 0.0
        %2252 = vmatprep.subr.mxu0 0.0
        %2253 = vmatpush1.msra.mxu0 0.0
        %2254 = vmatprep.subr.mxu0 0.0
        %2255 = vmatpush1.msra.mxu0 0.0
        %2256 = vmatprep.subr.mxu0 0.0
        %2257 = vmatpush1.msra.mxu0 0.0
        %2258 = vmatprep.subr.mxu0 0.0
        %2259 = vmatpush1.msra.mxu0 0.0
        %2260 = vmatprep.subr.mxu0 0.0
        %2261 = vmatpush1.msra.mxu0 0.0
        %2262 = vmatprep.subr.mxu0 0.0
        %2263 = vmatpush1.msra.mxu0 0.0
        %2264 = vmatprep.subr.mxu0 0.0
        %2265 = vmatpush1.msra.mxu0 %v2225
        %2266 = vmatprep.subr.mxu0 0.0
        %2267 = vmatpush1.msra.mxu0 %v2223
        %2268 = vmatprep.subr.mxu0 0.0
        %2269 = vmatpush1.msra.mxu0 %v2221
        %2270 = vmatprep.subr.mxu0 0.0
        %2271 = vmatpush2.msra.mxu0 0.0
        %2272 = vmatprep.subr.mxu0 0.0
        %2273 = vmatpush2.msra.mxu0 0.0
        %2274 = vmatprep.subr.mxu0 0.0
        %2275 = vmatpush2.msra.mxu0 0.0
        %2276 = vmatprep.subr.mxu0 0.0
        %2277 = vmatpush2.msra.mxu0 0.0
        %2278 = vmatprep.subr.mxu0 0.0
        %2279 = vmatpush2.msra.mxu0 0.0
        %2280 = vmatprep.subr.mxu0 0.0
        %2281 = vmatpush2.msra.mxu0 0.0
        %2282 = vmatprep.subr.mxu0 0.0
        %2283 = vmatpush2.msra.mxu0 0.0
        %2284 = vmatprep.subr.mxu0 0.0
        %2285 = vmatpush2.msra.mxu0 0.0
        %2286 = vmatprep.subr.mxu0 0.0
        %2287 = vmatpush2.msra.mxu0 0.0
        %2288 = vmatprep.subr.mxu0 0.0
        %2289 = vmatpush2.msra.mxu0 0.0
        %2290 = vmatprep.subr.mxu0 0.0
        %2291 = vmatpush2.msra.mxu0 0.0
        %2292 = vmatprep.subr.mxu0 0.0
        %2293 = vmatpush2.msra.mxu0 0.0
        %2294 = vmatprep.subr.mxu0 0.0
        %2295 = vmatpush2.msra.mxu0 0.0
        %2296 = vmatprep.subr.mxu0 0.0
        %2297 = vmatpush2.msra.mxu0 0.0
        %2298 = vmatprep.subr.mxu0 0.0
        %2299 = vmatpush2.msra.mxu0 0.0
        %2300 = vmatprep.subr.mxu0 0.0
        %2301 = vmatpush2.msra.mxu0 0.0
        %2302 = vmatprep.mubr.f32.mxu0 0.0
        %2303 = vmatmul.mubr.f32.gmra.mxu0 %v2230
        %v2304 = vpop.f32.mrf.mxu0
        %v2305 = vadd.f32 0.0, %v2304
        %v2306 = vpop.f32.mrf.mxu0
        %2307 = vmatprep.mubr.f32.mxu0 0.0
        %2308 = vmatmul.mubr.f32.gmra.mxu0 %v2233
        %v2309 = vpop.f32.mrf.mxu0
        %v2310 = vadd.f32 0.0, %v2309
        %v2311 = vpop.f32.mrf.mxu0
        %2312 = vmatprep.mubr.f32.mxu0 0.0
        %2313 = vmatmul.mubr.f32.gmra.mxu0 %v2236
        %v2314 = vpop.f32.mrf.mxu0
        %v2315 = vadd.f32 0.0, %v2314
        %v2316 = vpop.f32.mrf.mxu0
        %2317 = vdwg.mxu0
        %v2319 = vsel %vm1094, %v2305, 0
        %v2322 = vsel %vm1094, %v2310, 0
        %v2325 = vsel %vm1094, %v2315, 0
        %2327 = vmatprep.subr.mxu0 0.0
        %2328 = vmatpush1.msra.mxu0 0.0
        %2329 = vmatprep.subr.mxu0 0.0
        %2330 = vmatpush1.msra.mxu0 0.0
        %2331 = vmatprep.subr.mxu0 0.0
        %2332 = vmatpush1.msra.mxu0 0.0
        %2333 = vmatprep.subr.mxu0 0.0
        %2334 = vmatpush1.msra.mxu0 0.0
        %2335 = vmatprep.subr.mxu0 0.0
        %2336 = vmatpush1.msra.mxu0 0.0
        %2337 = vmatprep.subr.mxu0 0.0
        %2338 = vmatpush1.msra.mxu0 0.0
        %2339 = vmatprep.subr.mxu0 0.0
        %2340 = vmatpush1.msra.mxu0 0.0
        %2341 = vmatprep.subr.mxu0 0.0
        %2342 = vmatpush1.msra.mxu0 0.0
        %2343 = vmatprep.subr.mxu0 0.0
        %2344 = vmatpush1.msra.mxu0 0.0
        %2345 = vmatprep.subr.mxu0 0.0
        %2346 = vmatpush1.msra.mxu0 0.0
        %2347 = vmatprep.subr.mxu0 0.0
        %2348 = vmatpush1.msra.mxu0 0.0
        %2349 = vmatprep.subr.mxu0 0.0
        %2350 = vmatpush1.msra.mxu0 0.0
        %2351 = vmatprep.subr.mxu0 0.0
        %2352 = vmatpush1.msra.mxu0 %v793
        %2353 = vmatprep.subr.mxu0 0.0
        %2354 = vmatpush1.msra.mxu0 %v792
        %2355 = vmatprep.subr.mxu0 0.0
        %2356 = vmatpush1.msra.mxu0 %v791
        %2357 = vmatprep.subr.mxu0 0.0
        %2358 = vmatpush1.msra.mxu0 %v790
        %2359 = vmatprep.subr.mxu0 0.0
        %2360 = vmatpush2.msra.mxu0 0.0
        %2361 = vmatprep.subr.mxu0 0.0
        %2362 = vmatpush2.msra.mxu0 0.0
        %2363 = vmatprep.subr.mxu0 0.0
        %2364 = vmatpush2.msra.mxu0 0.0
        %2365 = vmatprep.subr.mxu0 0.0
        %2366 = vmatpush2.msra.mxu0 0.0
        %2367 = vmatprep.subr.mxu0 0.0
        %2368 = vmatpush2.msra.mxu0 0.0
        %2369 = vmatprep.subr.mxu0 0.0
        %2370 = vmatpush2.msra.mxu0 0.0
        %2371 = vmatprep.subr.mxu0 0.0
        %2372 = vmatpush2.msra.mxu0 0.0
        %2373 = vmatprep.subr.mxu0 0.0
        %2374 = vmatpush2.msra.mxu0 0.0
        %2375 = vmatprep.subr.mxu0 0.0
        %2376 = vmatpush2.msra.mxu0 0.0
        %2377 = vmatprep.subr.mxu0 0.0
        %2378 = vmatpush2.msra.mxu0 0.0
        %2379 = vmatprep.subr.mxu0 0.0
        %2380 = vmatpush2.msra.mxu0 0.0
        %2381 = vmatprep.subr.mxu0 0.0
        %2382 = vmatpush2.msra.mxu0 0.0
        %2383 = vmatprep.subr.mxu0 0.0
        %2384 = vmatpush2.msra.mxu0 0.0
        %2385 = vmatprep.subr.mxu0 0.0
        %2386 = vmatpush2.msra.mxu0 0.0
        %2387 = vmatprep.subr.mxu0 0.0
        %2388 = vmatpush2.msra.mxu0 0.0
        %2389 = vmatprep.subr.mxu0 0.0
        %2390 = vmatpush2.msra.mxu0 0.0
        %2391 = vmatprep.mubr.f32.mxu0 0.0
        %2392 = vmatmul.mubr.f32.gmra.mxu0 %v2319
        %v2393 = vpop.f32.mrf.mxu0
        %v2394 = vadd.f32 0.0, %v2393
        %v2395 = vpop.f32.mrf.mxu0
        %2396 = vmatprep.mubr.f32.mxu0 0.0
        %2397 = vmatmul.mubr.f32.gmra.mxu0 %v2322
        %v2398 = vpop.f32.mrf.mxu0
        %v2399 = vadd.f32 0.0, %v2398
        %v2400 = vpop.f32.mrf.mxu0
        %2401 = vmatprep.mubr.f32.mxu0 0.0
        %2402 = vmatmul.mubr.f32.gmra.mxu0 %v2325
        %v2403 = vpop.f32.mrf.mxu0
        %v2404 = vadd.f32 0.0, %v2403
        %v2405 = vpop.f32.mrf.mxu0
        %2406 = vdwg.mxu0
        %v2407 = vadd.f32 %v2074, %v2394
        %v2408 = vadd.f32 %v2075, %v2399
        %v2409 = vadd.f32 %v2076, %v2404
        %v2411 = vlaneseq
        %v2412 = vshrl.u32 %v2411, 7
        %v2413 = vsub.s32 0, %v2412
        %v2414 = vrot.slane %v794, %v2413
        %v2416 = vadd.f32 %v2407, %v2414
        %v2417 = vadd.f32 %v2408, %v2414
        %v2418 = vadd.f32 %v2409, %v2414
        %v2419 = vadd.f32 %v710, %v2416
        %v2420 = vadd.f32 %v715, %v2417
        %v2421 = vadd.f32 %v720, %v2418
        %2422 = vadd.xlane.f32.xlu0 %v2419
        %v2423 = vpop.xlane.xlu0 %2422
        %2424 = vadd.xlane.f32.xlu0 %v2420
        %v2425 = vpop.xlane.xlu0 %2424
        %2426 = vadd.xlane.f32.xlu0 %v2421
        %v2427 = vpop.xlane.xlu0 %2426
        %v2428 = vmul.f32 %v2423, %v869
        %v2429 = vmul.f32 %v2425, %v869
        %v2430 = vmul.f32 %v2427, %v869
        %v2431 = vsub.f32 %v2419, %v2428
        %v2432 = vsub.f32 %v2420, %v2429
        %v2433 = vsub.f32 %v2421, %v2430
        %v2434 = vmul.f32 %v2431, %v2431
        %v2435 = vmul.f32 %v2432, %v2432
        %v2436 = vmul.f32 %v2433, %v2433
        %2437 = vadd.xlane.f32.xlu0 %v2434
        %v2438 = vpop.xlane.xlu0 %2437
        %2439 = vadd.xlane.f32.xlu0 %v2435
        %v2440 = vpop.xlane.xlu0 %2439
        %2441 = vadd.xlane.f32.xlu0 %v2436
        %v2442 = vpop.xlane.xlu0 %2441
        %v2443 = vmul.f32 %v2438, %v869
        %v2444 = vmul.f32 %v2440, %v869
        %v2445 = vmul.f32 %v2442, %v869
        %v2446 = vadd.f32 %v2443, 1e-05
        %v2447 = vadd.f32 %v2444, 1e-05
        %v2448 = vadd.f32 %v2445, 1e-05
        %v2449 = vrsqrt.pop %v2446
        %v2450 = vrsqrt.pop %v2447
        %v2451 = vrsqrt.pop %v2448
        %v2452 = vmul.f32 %v2431, %v2449
        %v2453 = vmul.f32 %v2432, %v2450
        %v2454 = vmul.f32 %v2433, %v2451
        %v2456 = vlaneseq
        %v2457 = vshrl.u32 %v2456, 7
        %v2458 = vsub.s32 0, %v2457
        %v2459 = vrot.slane %v795, %v2458
        %v2461 = vmul.f32 %v2452, %v2459
        %v2462 = vmul.f32 %v2453, %v2459
        %v2463 = vmul.f32 %v2454, %v2459
        %v2465 = vlaneseq
        %v2466 = vshrl.u32 %v2465, 7
        %v2467 = vsub.s32 0, %v2466
        %v2468 = vrot.slane %v796, %v2467
        %v2470 = vadd.f32 %v2461, %v2468
        %v2471 = vadd.f32 %v2462, %v2468
        %v2472 = vadd.f32 %v2463, %v2468
        %v2474 = vlaneseq
        %v2475 = vshrl.u32 %v2474, 7
        %v2476 = vsub.s32 0, %v2475
        %v2477 = vrot.slane %v829, %v2476
        %v2478 = vlaneseq
        %v2479 = vshrl.u32 %v2478, 7
        %v2480 = vsub.s32 1, %v2479
        %v2481 = vrot.slane %v829, %v2480
        %2484 = vmatprep.subr.mxu0 %v828
        %2485 = vmatpush1.msra.mxu0 %v827
        %2486 = vmatprep.subr.mxu0 %v826
        %2487 = vmatpush1.msra.mxu0 %v825
        %2488 = vmatprep.subr.mxu0 %v824
        %2489 = vmatpush1.msra.mxu0 %v823
        %2490 = vmatprep.subr.mxu0 %v822
        %2491 = vmatpush1.msra.mxu0 %v821
        %2492 = vmatprep.subr.mxu0 %v820
        %2493 = vmatpush1.msra.mxu0 %v819
        %2494 = vmatprep.subr.mxu0 %v818
        %2495 = vmatpush1.msra.mxu0 %v817
        %2496 = vmatprep.subr.mxu0 %v816
        %2497 = vmatpush1.msra.mxu0 %v815
        %2498 = vmatprep.subr.mxu0 %v814
        %2499 = vmatpush1.msra.mxu0 %v813
        %2500 = vmatprep.subr.mxu0 %v812
        %2501 = vmatpush1.msra.mxu0 %v811
        %2502 = vmatprep.subr.mxu0 %v810
        %2503 = vmatpush1.msra.mxu0 %v809
        %2504 = vmatprep.subr.mxu0 %v808
        %2505 = vmatpush1.msra.mxu0 %v807
        %2506 = vmatprep.subr.mxu0 %v806
        %2507 = vmatpush1.msra.mxu0 %v805
        %2508 = vmatprep.subr.mxu0 %v804
        %2509 = vmatpush1.msra.mxu0 %v803
        %2510 = vmatprep.subr.mxu0 %v802
        %2511 = vmatpush1.msra.mxu0 %v801
        %2512 = vmatprep.subr.mxu0 %v800
        %2513 = vmatpush1.msra.mxu0 %v799
        %2514 = vmatprep.subr.mxu0 %v798
        %2515 = vmatpush1.msra.mxu0 %v797
        %2516 = vmatprep.subr.mxu0 0.0
        %2517 = vmatpush2.msra.mxu0 0.0
        %2518 = vmatprep.subr.mxu0 0.0
        %2519 = vmatpush2.msra.mxu0 0.0
        %2520 = vmatprep.subr.mxu0 0.0
        %2521 = vmatpush2.msra.mxu0 0.0
        %2522 = vmatprep.subr.mxu0 0.0
        %2523 = vmatpush2.msra.mxu0 0.0
        %2524 = vmatprep.subr.mxu0 0.0
        %2525 = vmatpush2.msra.mxu0 0.0
        %2526 = vmatprep.subr.mxu0 0.0
        %2527 = vmatpush2.msra.mxu0 0.0
        %2528 = vmatprep.subr.mxu0 0.0
        %2529 = vmatpush2.msra.mxu0 0.0
        %2530 = vmatprep.subr.mxu0 0.0
        %2531 = vmatpush2.msra.mxu0 0.0
        %2532 = vmatprep.subr.mxu0 0.0
        %2533 = vmatpush2.msra.mxu0 0.0
        %2534 = vmatprep.subr.mxu0 0.0
        %2535 = vmatpush2.msra.mxu0 0.0
        %2536 = vmatprep.subr.mxu0 0.0
        %2537 = vmatpush2.msra.mxu0 0.0
        %2538 = vmatprep.subr.mxu0 0.0
        %2539 = vmatpush2.msra.mxu0 0.0
        %2540 = vmatprep.subr.mxu0 0.0
        %2541 = vmatpush2.msra.mxu0 0.0
        %2542 = vmatprep.subr.mxu0 0.0
        %2543 = vmatpush2.msra.mxu0 0.0
        %2544 = vmatprep.subr.mxu0 0.0
        %2545 = vmatpush2.msra.mxu0 0.0
        %2546 = vmatprep.subr.mxu0 0.0
        %2547 = vmatpush2.msra.mxu0 0.0
        %2548 = vmatprep.mubr.f32.mxu0 0.0
        %2549 = vmatmul.mubr.f32.gmra.mxu0 %v2470
        %v2550 = vpop.f32.mrf.mxu0
        %v2551 = vadd.f32 %v2477, %v2550
        %v2552 = vpop.f32.mrf.mxu0
        %v2553 = vadd.f32 %v2481, %v2552
        %2554 = vmatprep.mubr.f32.mxu0 0.0
        %2555 = vmatmul.mubr.f32.gmra.mxu0 %v2471
        %v2556 = vpop.f32.mrf.mxu0
        %v2557 = vadd.f32 %v2477, %v2556
        %v2558 = vpop.f32.mrf.mxu0
        %v2559 = vadd.f32 %v2481, %v2558
        %2560 = vmatprep.mubr.f32.mxu0 0.0
        %2561 = vmatmul.mubr.f32.gmra.mxu0 %v2472
        %v2562 = vpop.f32.mrf.mxu0
        %v2563 = vadd.f32 %v2477, %v2562
        %v2564 = vpop.f32.mrf.mxu0
        %v2565 = vadd.f32 %v2481, %v2564
        %2566 = vdwg.mxu0
        %v2567 = vmul.f32 %v2551, 0.5
        %v2568 = vmul.f32 %v2553, 0.5
        %v2569 = vmul.f32 %v2557, 0.5
        %v2570 = vmul.f32 %v2559, 0.5
        %v2571 = vmul.f32 %v2563, 0.5
        %v2572 = vmul.f32 %v2565, 0.5
        %v2573 = vmul.f32 %v2551, 0.70710677
        %v2574 = vmul.f32 %v2553, 0.70710677
        %v2575 = vmul.f32 %v2557, 0.70710677
        %v2576 = vmul.f32 %v2559, 0.70710677
        %v2577 = vmul.f32 %v2563, 0.70710677
        %v2578 = vmul.f32 %v2565, 0.70710677
        %v2579 = vand.u32 2147483647, %v2573
        %v2580 = vand.u32 2147483647, %v2574
        %v2581 = vand.u32 2147483647, %v2575
        %v2582 = vand.u32 2147483647, %v2576
        %v2583 = vand.u32 2147483647, %v2577
        %v2584 = vand.u32 2147483647, %v2578
        %v2585 = vmul.f32 %v2579, 0.3275911
        %v2586 = vmul.f32 %v2580, 0.3275911
        %v2587 = vmul.f32 %v2581, 0.3275911
        %v2588 = vmul.f32 %v2582, 0.3275911
        %v2589 = vmul.f32 %v2583, 0.3275911
        %v2590 = vmul.f32 %v2584, 0.3275911
        %v2591 = vadd.f32 %v2585, 1.0
        %v2592 = vadd.f32 %v2586, 1.0
        %v2593 = vadd.f32 %v2587, 1.0
        %v2594 = vadd.f32 %v2588, 1.0
        %v2595 = vadd.f32 %v2589, 1.0
        %v2596 = vadd.f32 %v2590, 1.0
        %v2597 = vrcp.pop %v2591
        %v2598 = vmul.f32 1.0, %v2597
        %v2599 = vrcp.pop %v2592
        %v2600 = vmul.f32 1.0, %v2599
        %v2601 = vrcp.pop %v2593
        %v2602 = vmul.f32 1.0, %v2601
        %v2603 = vrcp.pop %v2594
        %v2604 = vmul.f32 1.0, %v2603
        %v2605 = vrcp.pop %v2595
        %v2606 = vmul.f32 1.0, %v2605
        %v2607 = vrcp.pop %v2596
        %v2608 = vmul.f32 1.0, %v2607
        %v2609 = vmul.f32 %v2598, 1.0614054
        %v2610 = vmul.f32 %v2600, 1.0614054
        %v2611 = vmul.f32 %v2602, 1.0614054
        %v2612 = vmul.f32 %v2604, 1.0614054
        %v2613 = vmul.f32 %v2606, 1.0614054
        %v2614 = vmul.f32 %v2608, 1.0614054
        %v2615 = vadd.f32 %v2609, -1.4531521
        %v2616 = vadd.f32 %v2610, -1.4531521
        %v2617 = vadd.f32 %v2611, -1.4531521
        %v2618 = vadd.f32 %v2612, -1.4531521
        %v2619 = vadd.f32 %v2613, -1.4531521
        %v2620 = vadd.f32 %v2614, -1.4531521
        %v2621 = vmul.f32 %v2615, %v2598
        %v2622 = vmul.f32 %v2616, %v2600
        %v2623 = vmul.f32 %v2617, %v2602
        %v2624 = vmul.f32 %v2618, %v2604
        %v2625 = vmul.f32 %v2619, %v2606
        %v2626 = vmul.f32 %v2620, %v2608
        %v2627 = vadd.f32 %v2621, 1.4214138
        %v2628 = vadd.f32 %v2622, 1.4214138
        %v2629 = vadd.f32 %v2623, 1.4214138
        %v2630 = vadd.f32 %v2624, 1.4214138
        %v2631 = vadd.f32 %v2625, 1.4214138
        %v2632 = vadd.f32 %v2626, 1.4214138
        %v2633 = vmul.f32 %v2627, %v2598
        %v2634 = vmul.f32 %v2628, %v2600
        %v2635 = vmul.f32 %v2629, %v2602
        %v2636 = vmul.f32 %v2630, %v2604
        %v2637 = vmul.f32 %v2631, %v2606
        %v2638 = vmul.f32 %v2632, %v2608
        %v2639 = vadd.f32 %v2633, -0.28449672
        %v2640 = vadd.f32 %v2634, -0.28449672
        %v2641 = vadd.f32 %v2635, -0.28449672
        %v2642 = vadd.f32 %v2636, -0.28449672
        %v2643 = vadd.f32 %v2637, -0.28449672
        %v2644 = vadd.f32 %v2638, -0.28449672
        %v2645 = vmul.f32 %v2639, %v2598
        %v2646 = vmul.f32 %v2640, %v2600
        %v2647 = vmul.f32 %v2641, %v2602
        %v2648 = vmul.f32 %v2642, %v2604
        %v2649 = vmul.f32 %v2643, %v2606
        %v2650 = vmul.f32 %v2644, %v2608
        %v2651 = vadd.f32 %v2645, 0.2548296
        %v2652 = vadd.f32 %v2646, 0.2548296
        %v2653 = vadd.f32 %v2647, 0.2548296
        %v2654 = vadd.f32 %v2648, 0.2548296
        %v2655 = vadd.f32 %v2649, 0.2548296
        %v2656 = vadd.f32 %v2650, 0.2548296
        %v2657 = vmul.f32 %v2651, %v2598
        %v2658 = vmul.f32 %v2652, %v2600
        %v2659 = vmul.f32 %v2653, %v2602
        %v2660 = vmul.f32 %v2654, %v2604
        %v2661 = vmul.f32 %v2655, %v2606
        %v2662 = vmul.f32 %v2656, %v2608
        %v2663 = vsub.f32 0.0, %v2579
        %v2664 = vsub.f32 0.0, %v2580
        %v2665 = vsub.f32 0.0, %v2581
        %v2666 = vsub.f32 0.0, %v2582
        %v2667 = vsub.f32 0.0, %v2583
        %v2668 = vsub.f32 0.0, %v2584
        %v2669 = vmul.f32 %v2663, %v2579
        %v2670 = vmul.f32 %v2664, %v2580
        %v2671 = vmul.f32 %v2665, %v2581
        %v2672 = vmul.f32 %v2666, %v2582
        %v2673 = vmul.f32 %v2667, %v2583
        %v2674 = vmul.f32 %v2668, %v2584
        %v2675 = vmul.f32 %v2669, 1.442695
        %v2676 = vpow.pop %v2675
        %v2677 = vmul.f32 %v2670, 1.442695
        %v2678 = vpow.pop %v2677
        %v2679 = vmul.f32 %v2671, 1.442695
        %v2680 = vpow.pop %v2679
        %v2681 = vmul.f32 %v2672, 1.442695
        %v2682 = vpow.pop %v2681
        %v2683 = vmul.f32 %v2673, 1.442695
        %v2684 = vpow.pop %v2683
        %v2685 = vmul.f32 %v2674, 1.442695
        %v2686 = vpow.pop %v2685
        %v2687 = vmul.f32 %v2657, %v2676
        %v2688 = vmul.f32 %v2658, %v2678
        %v2689 = vmul.f32 %v2659, %v2680
        %v2690 = vmul.f32 %v2660, %v2682
        %v2691 = vmul.f32 %v2661, %v2684
        %v2692 = vmul.f32 %v2662, %v2686
        %v2693 = vsub.f32 1.0, %v2687
        %v2694 = vsub.f32 1.0, %v2688
        %v2695 = vsub.f32 1.0, %v2689
        %v2696 = vsub.f32 1.0, %v2690
        %v2697 = vsub.f32 1.0, %v2691
        %v2698 = vsub.f32 1.0, %v2692
        %vm2699 = vcmp.ge.f32.partialorder %v2573, 0.0
        %vm2700 = vcmp.ge.f32.partialorder %v2574, 0.0
        %vm2701 = vcmp.ge.f32.partialorder %v2575, 0.0
        %vm2702 = vcmp.ge.f32.partialorder %v2576, 0.0
        %vm2703 = vcmp.ge.f32.partialorder %v2577, 0.0
        %vm2704 = vcmp.ge.f32.partialorder %v2578, 0.0
        %v2705 = vsub.f32 0.0, %v2693
        %v2706 = vsub.f32 0.0, %v2694
        %v2707 = vsub.f32 0.0, %v2695
        %v2708 = vsub.f32 0.0, %v2696
        %v2709 = vsub.f32 0.0, %v2697
        %v2710 = vsub.f32 0.0, %v2698
        %v2711 = vsel %vm2699, %v2693, %v2705
        %v2712 = vsel %vm2700, %v2694, %v2706
        %v2713 = vsel %vm2701, %v2695, %v2707
        %v2714 = vsel %vm2702, %v2696, %v2708
        %v2715 = vsel %vm2703, %v2697, %v2709
        %v2716 = vsel %vm2704, %v2698, %v2710
        %v2717 = vadd.f32 %v2711, 1.0
        %v2718 = vadd.f32 %v2712, 1.0
        %v2719 = vadd.f32 %v2713, 1.0
        %v2720 = vadd.f32 %v2714, 1.0
        %v2721 = vadd.f32 %v2715, 1.0
        %v2722 = vadd.f32 %v2716, 1.0
        %v2723 = vmul.f32 %v2567, %v2717
        %v2724 = vmul.f32 %v2568, %v2718
        %v2725 = vmul.f32 %v2569, %v2719
        %v2726 = vmul.f32 %v2570, %v2720
        %v2727 = vmul.f32 %v2571, %v2721
        %v2728 = vmul.f32 %v2572, %v2722
        %v2730 = vlaneseq
        %v2731 = vshrl.u32 %v2730, 7
        %v2732 = vsub.s32 0, %v2731
        %v2733 = vrot.slane %v862, %v2732
        %2735 = vmatprep.subr.mxu0 0.0
        %2736 = vmatpush1.msra.mxu0 %v845
        %2737 = vmatprep.subr.mxu0 0.0
        %2738 = vmatpush1.msra.mxu0 %v844
        %2739 = vmatprep.subr.mxu0 0.0
        %2740 = vmatpush1.msra.mxu0 %v843
        %2741 = vmatprep.subr.mxu0 0.0
        %2742 = vmatpush1.msra.mxu0 %v842
        %2743 = vmatprep.subr.mxu0 0.0
        %2744 = vmatpush1.msra.mxu0 %v841
        %2745 = vmatprep.subr.mxu0 0.0
        %2746 = vmatpush1.msra.mxu0 %v840
        %2747 = vmatprep.subr.mxu0 0.0
        %2748 = vmatpush1.msra.mxu0 %v839
        %2749 = vmatprep.subr.mxu0 0.0
        %2750 = vmatpush1.msra.mxu0 %v838
        %2751 = vmatprep.subr.mxu0 0.0
        %2752 = vmatpush1.msra.mxu0 %v837
        %2753 = vmatprep.subr.mxu0 0.0
        %2754 = vmatpush1.msra.mxu0 %v836
        %2755 = vmatprep.subr.mxu0 0.0
        %2756 = vmatpush1.msra.mxu0 %v835
        %2757 = vmatprep.subr.mxu0 0.0
        %2758 = vmatpush1.msra.mxu0 %v834
        %2759 = vmatprep.subr.mxu0 0.0
        %2760 = vmatpush1.msra.mxu0 %v833
        %2761 = vmatprep.subr.mxu0 0.0
        %2762 = vmatpush1.msra.mxu0 %v832
        %2763 = vmatprep.subr.mxu0 0.0
        %2764 = vmatpush1.msra.mxu0 %v831
        %2765 = vmatprep.subr.mxu0 0.0
        %2766 = vmatpush1.msra.mxu0 %v830
        %2767 = vmatprep.subr.mxu0 0.0
        %2768 = vmatpush2.msra.mxu0 %v861
        %2769 = vmatprep.subr.mxu0 0.0
        %2770 = vmatpush2.msra.mxu0 %v860
        %2771 = vmatprep.subr.mxu0 0.0
        %2772 = vmatpush2.msra.mxu0 %v859
        %2773 = vmatprep.subr.mxu0 0.0
        %2774 = vmatpush2.msra.mxu0 %v858
        %2775 = vmatprep.subr.mxu0 0.0
        %2776 = vmatpush2.msra.mxu0 %v857
        %2777 = vmatprep.subr.mxu0 0.0
        %2778 = vmatpush2.msra.mxu0 %v856
        %2779 = vmatprep.subr.mxu0 0.0
        %2780 = vmatpush2.msra.mxu0 %v855
        %2781 = vmatprep.subr.mxu0 0.0
        %2782 = vmatpush2.msra.mxu0 %v854
        %2783 = vmatprep.subr.mxu0 0.0
        %2784 = vmatpush2.msra.mxu0 %v853
        %2785 = vmatprep.subr.mxu0 0.0
        %2786 = vmatpush2.msra.mxu0 %v852
        %2787 = vmatprep.subr.mxu0 0.0
        %2788 = vmatpush2.msra.mxu0 %v851
        %2789 = vmatprep.subr.mxu0 0.0
        %2790 = vmatpush2.msra.mxu0 %v850
        %2791 = vmatprep.subr.mxu0 0.0
        %2792 = vmatpush2.msra.mxu0 %v849
        %2793 = vmatprep.subr.mxu0 0.0
        %2794 = vmatpush2.msra.mxu0 %v848
        %2795 = vmatprep.subr.mxu0 0.0
        %2796 = vmatpush2.msra.mxu0 %v847
        %2797 = vmatprep.subr.mxu0 0.0
        %2798 = vmatpush2.msra.mxu0 %v846
        %2799 = vmatprep.mubr.f32.mxu0 %v2724
        %2800 = vmatmul.mubr.f32.gmra.mxu0 %v2723
        %v2801 = vpop.f32.mrf.mxu0
        %v2802 = vadd.f32 %v2733, %v2801
        %v2803 = vpop.f32.mrf.mxu0
        %2804 = vmatprep.mubr.f32.mxu0 %v2726
        %2805 = vmatmul.mubr.f32.gmra.mxu0 %v2725
        %v2806 = vpop.f32.mrf.mxu0
        %v2807 = vadd.f32 %v2733, %v2806
        %v2808 = vpop.f32.mrf.mxu0
        %2809 = vmatprep.mubr.f32.mxu0 %v2728
        %2810 = vmatmul.mubr.f32.gmra.mxu0 %v2727
        %v2811 = vpop.f32.mrf.mxu0
        %v2812 = vadd.f32 %v2733, %v2811
        %v2813 = vpop.f32.mrf.mxu0
        %2814 = vdwg.mxu0
        %v2815 = vadd.f32 %v2419, %v2802
        %v2816 = vadd.f32 %v2420, %v2807
        %v2817 = vadd.f32 %v2421, %v2812
        %s2818 = scalar_lea.vmem %s3, 1
        %v2819 = vld [vmem:[%s2818] sm:$0x1]
        %s2820 = scalar_lea.vmem %s4, 1
        %v2821 = vld [vmem:[%s2820] sm:$0x1]
        %s2822 = scalar_lea.vmem %s5, 384
        %v2823 = vld [vmem:[%s2822] sm:$0xff]
        %v2824 = vld [vmem:[%s2822 + $0x8] sm:$0xff]
        %v2825 = vld [vmem:[%s2822 + $0x10] sm:$0xff]
        %v2826 = vld [vmem:[%s2822 + $0x18] sm:$0xff]
        %v2827 = vld [vmem:[%s2822 + $0x20] sm:$0xff]
        %v2828 = vld [vmem:[%s2822 + $0x28] sm:$0xff]
        %v2829 = vld [vmem:[%s2822 + $0x30] sm:$0xff]
        %v2830 = vld [vmem:[%s2822 + $0x38] sm:$0xff]
        %v2831 = vld [vmem:[%s2822 + $0x40] sm:$0xff]
        %v2832 = vld [vmem:[%s2822 + $0x48] sm:$0xff]
        %v2833 = vld [vmem:[%s2822 + $0x50] sm:$0xff]
        %v2834 = vld [vmem:[%s2822 + $0x58] sm:$0xff]
        %v2835 = vld [vmem:[%s2822 + $0x60] sm:$0xff]
        %v2836 = vld [vmem:[%s2822 + $0x68] sm:$0xff]
        %v2837 = vld [vmem:[%s2822 + $0x70] sm:$0xff]
        %v2838 = vld [vmem:[%s2822 + $0x78] sm:$0xff]
        %v2839 = vld [vmem:[%s2822 + $0x80] sm:$0xff]
        %v2840 = vld [vmem:[%s2822 + $0x88] sm:$0xff]
        %v2841 = vld [vmem:[%s2822 + $0x90] sm:$0xff]
        %v2842 = vld [vmem:[%s2822 + $0x98] sm:$0xff]
        %v2843 = vld [vmem:[%s2822 + $0xa0] sm:$0xff]
        %v2844 = vld [vmem:[%s2822 + $0xa8] sm:$0xff]
        %v2845 = vld [vmem:[%s2822 + $0xb0] sm:$0xff]
        %v2846 = vld [vmem:[%s2822 + $0xb8] sm:$0xff]
        %v2847 = vld [vmem:[%s2822 + $0xc0] sm:$0xff]
        %v2848 = vld [vmem:[%s2822 + $0xc8] sm:$0xff]
        %v2849 = vld [vmem:[%s2822 + $0xd0] sm:$0xff]
        %v2850 = vld [vmem:[%s2822 + $0xd8] sm:$0xff]
        %v2851 = vld [vmem:[%s2822 + $0xe0] sm:$0xff]
        %v2852 = vld [vmem:[%s2822 + $0xe8] sm:$0xff]
        %v2853 = vld [vmem:[%s2822 + $0xf0] sm:$0xff]
        %v2854 = vld [vmem:[%s2822 + $0xf8] sm:$0xff]
        %v2855 = vld [vmem:[%s2822 + $0x100] sm:$0xff]
        %v2856 = vld [vmem:[%s2822 + $0x108] sm:$0xff]
        %v2857 = vld [vmem:[%s2822 + $0x110] sm:$0xff]
        %v2858 = vld [vmem:[%s2822 + $0x118] sm:$0xff]
        %v2859 = vld [vmem:[%s2822 + $0x120] sm:$0xff]
        %v2860 = vld [vmem:[%s2822 + $0x128] sm:$0xff]
        %v2861 = vld [vmem:[%s2822 + $0x130] sm:$0xff]
        %v2862 = vld [vmem:[%s2822 + $0x138] sm:$0xff]
        %v2863 = vld [vmem:[%s2822 + $0x140] sm:$0xff]
        %v2864 = vld [vmem:[%s2822 + $0x148] sm:$0xff]
        %v2865 = vld [vmem:[%s2822 + $0x150] sm:$0xff]
        %v2866 = vld [vmem:[%s2822 + $0x158] sm:$0xff]
        %v2867 = vld [vmem:[%s2822 + $0x160] sm:$0xff]
        %v2868 = vld [vmem:[%s2822 + $0x168] sm:$0xff]
        %v2869 = vld [vmem:[%s2822 + $0x170] sm:$0xff]
        %v2870 = vld [vmem:[%s2822 + $0x178] sm:$0xff]
        %s2871 = scalar_lea.vmem %s6, 3
        %v2872 = vld [vmem:[%s2871] sm:$0x7]
        %s2873 = scalar_lea.vmem %s7, 128
        %v2874 = vld [vmem:[%s2873] sm:$0xff]
        %v2875 = vld [vmem:[%s2873 + $0x8] sm:$0xff]
        %v2876 = vld [vmem:[%s2873 + $0x10] sm:$0xff]
        %v2877 = vld [vmem:[%s2873 + $0x18] sm:$0xff]
        %v2878 = vld [vmem:[%s2873 + $0x20] sm:$0xff]
        %v2879 = vld [vmem:[%s2873 + $0x28] sm:$0xff]
        %v2880 = vld [vmem:[%s2873 + $0x30] sm:$0xff]
        %v2881 = vld [vmem:[%s2873 + $0x38] sm:$0xff]
        %v2882 = vld [vmem:[%s2873 + $0x40] sm:$0xff]
        %v2883 = vld [vmem:[%s2873 + $0x48] sm:$0xff]
        %v2884 = vld [vmem:[%s2873 + $0x50] sm:$0xff]
        %v2885 = vld [vmem:[%s2873 + $0x58] sm:$0xff]
        %v2886 = vld [vmem:[%s2873 + $0x60] sm:$0xff]
        %v2887 = vld [vmem:[%s2873 + $0x68] sm:$0xff]
        %v2888 = vld [vmem:[%s2873 + $0x70] sm:$0xff]
        %v2889 = vld [vmem:[%s2873 + $0x78] sm:$0xff]
        %s2890 = scalar_lea.vmem %s8, 1
        %v2891 = vld [vmem:[%s2890] sm:$0x1]
        %s2892 = scalar_lea.vmem %s9, 1
        %v2893 = vld [vmem:[%s2892] sm:$0x1]
        %s2894 = scalar_lea.vmem %s10, 1
        %v2895 = vld [vmem:[%s2894] sm:$0x1]
        %s2896 = scalar_lea.vmem %s11, 256
        %v2897 = vld [vmem:[%s2896] sm:$0xff]
        %v2898 = vld [vmem:[%s2896 + $0x8] sm:$0xff]
        %v2899 = vld [vmem:[%s2896 + $0x10] sm:$0xff]
        %v2900 = vld [vmem:[%s2896 + $0x18] sm:$0xff]
        %v2901 = vld [vmem:[%s2896 + $0x20] sm:$0xff]
        %v2902 = vld [vmem:[%s2896 + $0x28] sm:$0xff]
        %v2903 = vld [vmem:[%s2896 + $0x30] sm:$0xff]
        %v2904 = vld [vmem:[%s2896 + $0x38] sm:$0xff]
        %v2905 = vld [vmem:[%s2896 + $0x40] sm:$0xff]
        %v2906 = vld [vmem:[%s2896 + $0x48] sm:$0xff]
        %v2907 = vld [vmem:[%s2896 + $0x50] sm:$0xff]
        %v2908 = vld [vmem:[%s2896 + $0x58] sm:$0xff]
        %v2909 = vld [vmem:[%s2896 + $0x60] sm:$0xff]
        %v2910 = vld [vmem:[%s2896 + $0x68] sm:$0xff]
        %v2911 = vld [vmem:[%s2896 + $0x70] sm:$0xff]
        %v2912 = vld [vmem:[%s2896 + $0x78] sm:$0xff]
        %v2913 = vld [vmem:[%s2896 + $0x80] sm:$0xff]
        %v2914 = vld [vmem:[%s2896 + $0x88] sm:$0xff]
        %v2915 = vld [vmem:[%s2896 + $0x90] sm:$0xff]
        %v2916 = vld [vmem:[%s2896 + $0x98] sm:$0xff]
        %v2917 = vld [vmem:[%s2896 + $0xa0] sm:$0xff]
        %v2918 = vld [vmem:[%s2896 + $0xa8] sm:$0xff]
        %v2919 = vld [vmem:[%s2896 + $0xb0] sm:$0xff]
        %v2920 = vld [vmem:[%s2896 + $0xb8] sm:$0xff]
        %v2921 = vld [vmem:[%s2896 + $0xc0] sm:$0xff]
        %v2922 = vld [vmem:[%s2896 + $0xc8] sm:$0xff]
        %v2923 = vld [vmem:[%s2896 + $0xd0] sm:$0xff]
        %v2924 = vld [vmem:[%s2896 + $0xd8] sm:$0xff]
        %v2925 = vld [vmem:[%s2896 + $0xe0] sm:$0xff]
        %v2926 = vld [vmem:[%s2896 + $0xe8] sm:$0xff]
        %v2927 = vld [vmem:[%s2896 + $0xf0] sm:$0xff]
        %v2928 = vld [vmem:[%s2896 + $0xf8] sm:$0xff]
        %s2929 = scalar_lea.vmem %s12, 2
        %v2930 = vld [vmem:[%s2929] sm:$0x3]
        %s2931 = scalar_lea.vmem %s13, 256
        %v2932 = vld [vmem:[%s2931] sm:$0xff]
        %v2933 = vld [vmem:[%s2931 + $0x8] sm:$0xff]
        %v2934 = vld [vmem:[%s2931 + $0x10] sm:$0xff]
        %v2935 = vld [vmem:[%s2931 + $0x18] sm:$0xff]
        %v2936 = vld [vmem:[%s2931 + $0x20] sm:$0xff]
        %v2937 = vld [vmem:[%s2931 + $0x28] sm:$0xff]
        %v2938 = vld [vmem:[%s2931 + $0x30] sm:$0xff]
        %v2939 = vld [vmem:[%s2931 + $0x38] sm:$0xff]
        %v2940 = vld [vmem:[%s2931 + $0x40] sm:$0xff]
        %v2941 = vld [vmem:[%s2931 + $0x48] sm:$0xff]
        %v2942 = vld [vmem:[%s2931 + $0x50] sm:$0xff]
        %v2943 = vld [vmem:[%s2931 + $0x58] sm:$0xff]
        %v2944 = vld [vmem:[%s2931 + $0x60] sm:$0xff]
        %v2945 = vld [vmem:[%s2931 + $0x68] sm:$0xff]
        %v2946 = vld [vmem:[%s2931 + $0x70] sm:$0xff]
        %v2947 = vld [vmem:[%s2931 + $0x78] sm:$0xff]
        %v2948 = vld [vmem:[%s2931 + $0x80] sm:$0xff]
        %v2949 = vld [vmem:[%s2931 + $0x88] sm:$0xff]
        %v2950 = vld [vmem:[%s2931 + $0x90] sm:$0xff]
        %v2951 = vld [vmem:[%s2931 + $0x98] sm:$0xff]
        %v2952 = vld [vmem:[%s2931 + $0xa0] sm:$0xff]
        %v2953 = vld [vmem:[%s2931 + $0xa8] sm:$0xff]
        %v2954 = vld [vmem:[%s2931 + $0xb0] sm:$0xff]
        %v2955 = vld [vmem:[%s2931 + $0xb8] sm:$0xff]
        %v2956 = vld [vmem:[%s2931 + $0xc0] sm:$0xff]
        %v2957 = vld [vmem:[%s2931 + $0xc8] sm:$0xff]
        %v2958 = vld [vmem:[%s2931 + $0xd0] sm:$0xff]
        %v2959 = vld [vmem:[%s2931 + $0xd8] sm:$0xff]
        %v2960 = vld [vmem:[%s2931 + $0xe0] sm:$0xff]
        %v2961 = vld [vmem:[%s2931 + $0xe8] sm:$0xff]
        %v2962 = vld [vmem:[%s2931 + $0xf0] sm:$0xff]
        %v2963 = vld [vmem:[%s2931 + $0xf8] sm:$0xff]
        %s2964 = scalar_lea.vmem %s14, 1
        %v2965 = vld [vmem:[%s2964] sm:$0x1]
        %2966 = vadd.xlane.f32.xlu0 %v2815
        %v2967 = vpop.xlane.xlu0 %2966
        %2968 = vadd.xlane.f32.xlu0 %v2816
        %v2969 = vpop.xlane.xlu0 %2968
        %2970 = vadd.xlane.f32.xlu0 %v2817
        %v2971 = vpop.xlane.xlu0 %2970
        %v2972 = vmul.f32 %v2967, %v869
        %v2973 = vmul.f32 %v2969, %v869
        %v2974 = vmul.f32 %v2971, %v869
        %v2975 = vsub.f32 %v2815, %v2972
        %v2976 = vsub.f32 %v2816, %v2973
        %v2977 = vsub.f32 %v2817, %v2974
        %v2978 = vmul.f32 %v2975, %v2975
        %v2979 = vmul.f32 %v2976, %v2976
        %v2980 = vmul.f32 %v2977, %v2977
        %2981 = vadd.xlane.f32.xlu0 %v2978
        %v2982 = vpop.xlane.xlu0 %2981
        %2983 = vadd.xlane.f32.xlu0 %v2979
        %v2984 = vpop.xlane.xlu0 %2983
        %2985 = vadd.xlane.f32.xlu0 %v2980
        %v2986 = vpop.xlane.xlu0 %2985
        %v2987 = vmul.f32 %v2982, %v869
        %v2988 = vmul.f32 %v2984, %v869
        %v2989 = vmul.f32 %v2986, %v869
        %v2990 = vadd.f32 %v2987, 1e-05
        %v2991 = vadd.f32 %v2988, 1e-05
        %v2992 = vadd.f32 %v2989, 1e-05
        %v2993 = vrsqrt.pop %v2990
        %v2994 = vrsqrt.pop %v2991
        %v2995 = vrsqrt.pop %v2992
        %v2996 = vmul.f32 %v2975, %v2993
        %v2997 = vmul.f32 %v2976, %v2994
        %v2998 = vmul.f32 %v2977, %v2995
        %v3000 = vlaneseq
        %v3001 = vshrl.u32 %v3000, 7
        %v3002 = vsub.s32 0, %v3001
        %v3003 = vrot.slane %v2819, %v3002
        %v3005 = vmul.f32 %v2996, %v3003
        %v3006 = vmul.f32 %v2997, %v3003
        %v3007 = vmul.f32 %v2998, %v3003
        %v3009 = vlaneseq
        %v3010 = vshrl.u32 %v3009, 7
        %v3011 = vsub.s32 0, %v3010
        %v3012 = vrot.slane %v2821, %v3011
        %v3014 = vadd.f32 %v3005, %v3012
        %v3015 = vadd.f32 %v3006, %v3012
        %v3016 = vadd.f32 %v3007, %v3012
        %v3018 = vlaneseq
        %v3019 = vshrl.u32 %v3018, 7
        %v3020 = vsub.s32 0, %v3019
        %v3021 = vrot.slane %v2872, %v3020
        %v3022 = vlaneseq
        %v3023 = vshrl.u32 %v3022, 7
        %v3024 = vsub.s32 1, %v3023
        %v3025 = vrot.slane %v2872, %v3024
        %v3026 = vlaneseq
        %v3027 = vshrl.u32 %v3026, 7
        %v3028 = vsub.s32 2, %v3027
        %v3029 = vrot.slane %v2872, %v3028
        %3033 = vmatprep.subr.mxu0 %v2869
        %3034 = vmatpush1.msra.mxu0 %v2868
        %3035 = vmatprep.subr.mxu0 %v2866
        %3036 = vmatpush1.msra.mxu0 %v2865
        %3037 = vmatprep.subr.mxu0 %v2863
        %3038 = vmatpush1.msra.mxu0 %v2862
        %3039 = vmatprep.subr.mxu0 %v2860
        %3040 = vmatpush1.msra.mxu0 %v2859
        %3041 = vmatprep.subr.mxu0 %v2857
        %3042 = vmatpush1.msra.mxu0 %v2856
        %3043 = vmatprep.subr.mxu0 %v2854
        %3044 = vmatpush1.msra.mxu0 %v2853
        %3045 = vmatprep.subr.mxu0 %v2851
        %3046 = vmatpush1.msra.mxu0 %v2850
        %3047 = vmatprep.subr.mxu0 %v2848
        %3048 = vmatpush1.msra.mxu0 %v2847
        %3049 = vmatprep.subr.mxu0 %v2845
        %3050 = vmatpush1.msra.mxu0 %v2844
        %3051 = vmatprep.subr.mxu0 %v2842
        %3052 = vmatpush1.msra.mxu0 %v2841
        %3053 = vmatprep.subr.mxu0 %v2839
        %3054 = vmatpush1.msra.mxu0 %v2838
        %3055 = vmatprep.subr.mxu0 %v2836
        %3056 = vmatpush1.msra.mxu0 %v2835
        %3057 = vmatprep.subr.mxu0 %v2833
        %3058 = vmatpush1.msra.mxu0 %v2832
        %3059 = vmatprep.subr.mxu0 %v2830
        %3060 = vmatpush1.msra.mxu0 %v2829
        %3061 = vmatprep.subr.mxu0 %v2827
        %3062 = vmatpush1.msra.mxu0 %v2826
        %3063 = vmatprep.subr.mxu0 %v2824
        %3064 = vmatpush1.msra.mxu0 %v2823
        %3065 = vmatprep.subr.mxu0 0.0
        %3066 = vmatpush2.msra.mxu0 0.0
        %3067 = vmatprep.subr.mxu0 0.0
        %3068 = vmatpush2.msra.mxu0 0.0
        %3069 = vmatprep.subr.mxu0 0.0
        %3070 = vmatpush2.msra.mxu0 0.0
        %3071 = vmatprep.subr.mxu0 0.0
        %3072 = vmatpush2.msra.mxu0 0.0
        %3073 = vmatprep.subr.mxu0 0.0
        %3074 = vmatpush2.msra.mxu0 0.0
        %3075 = vmatprep.subr.mxu0 0.0
        %3076 = vmatpush2.msra.mxu0 0.0
        %3077 = vmatprep.subr.mxu0 0.0
        %3078 = vmatpush2.msra.mxu0 0.0
        %3079 = vmatprep.subr.mxu0 0.0
        %3080 = vmatpush2.msra.mxu0 0.0
        %3081 = vmatprep.subr.mxu0 0.0
        %3082 = vmatpush2.msra.mxu0 0.0
        %3083 = vmatprep.subr.mxu0 0.0
        %3084 = vmatpush2.msra.mxu0 0.0
        %3085 = vmatprep.subr.mxu0 0.0
        %3086 = vmatpush2.msra.mxu0 0.0
        %3087 = vmatprep.subr.mxu0 0.0
        %3088 = vmatpush2.msra.mxu0 0.0
        %3089 = vmatprep.subr.mxu0 0.0
        %3090 = vmatpush2.msra.mxu0 0.0
        %3091 = vmatprep.subr.mxu0 0.0
        %3092 = vmatpush2.msra.mxu0 0.0
        %3093 = vmatprep.subr.mxu0 0.0
        %3094 = vmatpush2.msra.mxu0 0.0
        %3095 = vmatprep.subr.mxu0 0.0
        %3096 = vmatpush2.msra.mxu0 0.0
        %3097 = vmatprep.mubr.f32.mxu0 0.0
        %3098 = vmatmul.mubr.f32.gmra.mxu0 %v3014
        %v3099 = vpop.f32.mrf.mxu0
        %v3100 = vadd.f32 %v3021, %v3099
        %v3101 = vpop.f32.mrf.mxu0
        %v3102 = vadd.f32 %v3025, %v3101
        %3103 = vmatprep.mubr.f32.mxu0 0.0
        %3104 = vmatmul.mubr.f32.gmra.mxu0 %v3015
        %v3105 = vpop.f32.mrf.mxu0
        %v3106 = vadd.f32 %v3021, %v3105
        %v3107 = vpop.f32.mrf.mxu0
        %v3108 = vadd.f32 %v3025, %v3107
        %3109 = vmatprep.mubr.f32.mxu0 0.0
        %3110 = vmatmul.mubr.f32.gmra.mxu0 %v3016
        %v3111 = vpop.f32.mrf.mxu0
        %v3112 = vadd.f32 %v3021, %v3111
        %v3113 = vpop.f32.mrf.mxu0
        %v3114 = vadd.f32 %v3025, %v3113
        %3115 = vdwg.mxu0
        %3116 = vmatprep.subr.mxu0 0.0
        %3117 = vmatpush1.msra.mxu0 %v2870
        %3118 = vmatprep.subr.mxu0 0.0
        %3119 = vmatpush1.msra.mxu0 %v2867
        %3120 = vmatprep.subr.mxu0 0.0
        %3121 = vmatpush1.msra.mxu0 %v2864
        %3122 = vmatprep.subr.mxu0 0.0
        %3123 = vmatpush1.msra.mxu0 %v2861
        %3124 = vmatprep.subr.mxu0 0.0
        %3125 = vmatpush1.msra.mxu0 %v2858
        %3126 = vmatprep.subr.mxu0 0.0
        %3127 = vmatpush1.msra.mxu0 %v2855
        %3128 = vmatprep.subr.mxu0 0.0
        %3129 = vmatpush1.msra.mxu0 %v2852
        %3130 = vmatprep.subr.mxu0 0.0
        %3131 = vmatpush1.msra.mxu0 %v2849
        %3132 = vmatprep.subr.mxu0 0.0
        %3133 = vmatpush1.msra.mxu0 %v2846
        %3134 = vmatprep.subr.mxu0 0.0
        %3135 = vmatpush1.msra.mxu0 %v2843
        %3136 = vmatprep.subr.mxu0 0.0
        %3137 = vmatpush1.msra.mxu0 %v2840
        %3138 = vmatprep.subr.mxu0 0.0
        %3139 = vmatpush1.msra.mxu0 %v2837
        %3140 = vmatprep.subr.mxu0 0.0
        %3141 = vmatpush1.msra.mxu0 %v2834
        %3142 = vmatprep.subr.mxu0 0.0
        %3143 = vmatpush1.msra.mxu0 %v2831
        %3144 = vmatprep.subr.mxu0 0.0
        %3145 = vmatpush1.msra.mxu0 %v2828
        %3146 = vmatprep.subr.mxu0 0.0
        %3147 = vmatpush1.msra.mxu0 %v2825
        %3148 = vmatprep.subr.mxu0 0.0
        %3149 = vmatpush2.msra.mxu0 0.0
        %3150 = vmatprep.subr.mxu0 0.0
        %3151 = vmatpush2.msra.mxu0 0.0
        %3152 = vmatprep.subr.mxu0 0.0
        %3153 = vmatpush2.msra.mxu0 0.0
        %3154 = vmatprep.subr.mxu0 0.0
        %3155 = vmatpush2.msra.mxu0 0.0
        %3156 = vmatprep.subr.mxu0 0.0
        %3157 = vmatpush2.msra.mxu0 0.0
        %3158 = vmatprep.subr.mxu0 0.0
        %3159 = vmatpush2.msra.mxu0 0.0
        %3160 = vmatprep.subr.mxu0 0.0
        %3161 = vmatpush2.msra.mxu0 0.0
        %3162 = vmatprep.subr.mxu0 0.0
        %3163 = vmatpush2.msra.mxu0 0.0
        %3164 = vmatprep.subr.mxu0 0.0
        %3165 = vmatpush2.msra.mxu0 0.0
        %3166 = vmatprep.subr.mxu0 0.0
        %3167 = vmatpush2.msra.mxu0 0.0
        %3168 = vmatprep.subr.mxu0 0.0
        %3169 = vmatpush2.msra.mxu0 0.0
        %3170 = vmatprep.subr.mxu0 0.0
        %3171 = vmatpush2.msra.mxu0 0.0
        %3172 = vmatprep.subr.mxu0 0.0
        %3173 = vmatpush2.msra.mxu0 0.0
        %3174 = vmatprep.subr.mxu0 0.0
        %3175 = vmatpush2.msra.mxu0 0.0
        %3176 = vmatprep.subr.mxu0 0.0
        %3177 = vmatpush2.msra.mxu0 0.0
        %3178 = vmatprep.subr.mxu0 0.0
        %3179 = vmatpush2.msra.mxu0 0.0
        %3180 = vmatprep.mubr.f32.mxu0 0.0
        %3181 = vmatmul.mubr.f32.gmra.mxu0 %v3014
        %v3182 = vpop.f32.mrf.mxu0
        %v3183 = vadd.f32 %v3029, %v3182
        %v3184 = vpop.f32.mrf.mxu0
        %3185 = vmatprep.mubr.f32.mxu0 0.0
        %3186 = vmatmul.mubr.f32.gmra.mxu0 %v3015
        %v3187 = vpop.f32.mrf.mxu0
        %v3188 = vadd.f32 %v3029, %v3187
        %v3189 = vpop.f32.mrf.mxu0
        %3190 = vmatprep.mubr.f32.mxu0 0.0
        %3191 = vmatmul.mubr.f32.gmra.mxu0 %v3016
        %v3192 = vpop.f32.mrf.mxu0
        %v3193 = vadd.f32 %v3029, %v3192
        %v3194 = vpop.f32.mrf.mxu0
        %3195 = vdwg.mxu0
        %v3197 = vsel %vm1094, %v3100, 0
        %v3200 = vsel %vm1094, %v3106, 0
        %v3203 = vsel %vm1094, %v3112, 0
        %v3206 = vsel %vm1094, %v3102, 0
        %v3209 = vsel %vm1094, %v3108, 0
        %v3212 = vsel %vm1094, %v3114, 0
        %3214 = vmatprep.subr.mxu0 0.0
        %3215 = vmatpush1.xpose.msra.mxu0 0.0
        %3216 = vmatprep.subr.mxu0 0.0
        %3217 = vmatpush1.xpose.msra.mxu0 0.0
        %3218 = vmatprep.subr.mxu0 0.0
        %3219 = vmatpush1.xpose.msra.mxu0 0.0
        %3220 = vmatprep.subr.mxu0 0.0
        %3221 = vmatpush1.xpose.msra.mxu0 0.0
        %3222 = vmatprep.subr.mxu0 0.0
        %3223 = vmatpush1.xpose.msra.mxu0 0.0
        %3224 = vmatprep.subr.mxu0 0.0
        %3225 = vmatpush1.xpose.msra.mxu0 0.0
        %3226 = vmatprep.subr.mxu0 0.0
        %3227 = vmatpush1.xpose.msra.mxu0 0.0
        %3228 = vmatprep.subr.mxu0 0.0
        %3229 = vmatpush1.xpose.msra.mxu0 0.0
        %3230 = vmatprep.subr.mxu0 0.0
        %3231 = vmatpush1.xpose.msra.mxu0 0.0
        %3232 = vmatprep.subr.mxu0 0.0
        %3233 = vmatpush1.xpose.msra.mxu0 0.0
        %3234 = vmatprep.subr.mxu0 0.0
        %3235 = vmatpush1.xpose.msra.mxu0 0.0
        %3236 = vmatprep.subr.mxu0 0.0
        %3237 = vmatpush1.xpose.msra.mxu0 0.0
        %3238 = vmatprep.subr.mxu0 0.0
        %3239 = vmatpush1.xpose.msra.mxu0 0.0
        %3240 = vmatprep.subr.mxu0 0.0
        %3241 = vmatpush1.xpose.msra.mxu0 %v3212
        %3242 = vmatprep.subr.mxu0 0.0
        %3243 = vmatpush1.xpose.msra.mxu0 %v3209
        %3244 = vmatprep.subr.mxu0 0.0
        %3245 = vmatpush1.xpose.msra.mxu0 %v3206
        %3246 = vmatprep.subr.mxu0 0.0
        %3247 = vmatpush2.xpose.msra.mxu0 0.0
        %3248 = vmatprep.subr.mxu0 0.0
        %3249 = vmatpush2.xpose.msra.mxu0 0.0
        %3250 = vmatprep.subr.mxu0 0.0
        %3251 = vmatpush2.xpose.msra.mxu0 0.0
        %3252 = vmatprep.subr.mxu0 0.0
        %3253 = vmatpush2.xpose.msra.mxu0 0.0
        %3254 = vmatprep.subr.mxu0 0.0
        %3255 = vmatpush2.xpose.msra.mxu0 0.0
        %3256 = vmatprep.subr.mxu0 0.0
        %3257 = vmatpush2.xpose.msra.mxu0 0.0
        %3258 = vmatprep.subr.mxu0 0.0
        %3259 = vmatpush2.xpose.msra.mxu0 0.0
        %3260 = vmatprep.subr.mxu0 0.0
        %3261 = vmatpush2.xpose.msra.mxu0 0.0
        %3262 = vmatprep.subr.mxu0 0.0
        %3263 = vmatpush2.xpose.msra.mxu0 0.0
        %3264 = vmatprep.subr.mxu0 0.0
        %3265 = vmatpush2.xpose.msra.mxu0 0.0
        %3266 = vmatprep.subr.mxu0 0.0
        %3267 = vmatpush2.xpose.msra.mxu0 0.0
        %3268 = vmatprep.subr.mxu0 0.0
        %3269 = vmatpush2.xpose.msra.mxu0 0.0
        %3270 = vmatprep.subr.mxu0 0.0
        %3271 = vmatpush2.xpose.msra.mxu0 0.0
        %3272 = vmatprep.subr.mxu0 0.0
        %3273 = vmatpush2.xpose.msra.mxu0 0.0
        %3274 = vmatprep.subr.mxu0 0.0
        %3275 = vmatpush2.xpose.msra.mxu0 0.0
        %3276 = vmatprep.subr.mxu0 0.0
        %3277 = vmatpush2.xpose.msra.mxu0 0.0
        %3278 = vmatprep.mubr.f32.mxu0 0.0
        %3279 = vmatmul.mubr.f32.gmra.mxu0 %v3197
        %v3280 = vpop.f32.mrf.mxu0
        %v3281 = vadd.f32 0.0, %v3280
        %v3282 = vpop.f32.mrf.mxu0
        %3283 = vmatprep.mubr.f32.mxu0 0.0
        %3284 = vmatmul.mubr.f32.gmra.mxu0 %v3200
        %v3285 = vpop.f32.mrf.mxu0
        %v3286 = vadd.f32 0.0, %v3285
        %v3287 = vpop.f32.mrf.mxu0
        %3288 = vmatprep.mubr.f32.mxu0 0.0
        %3289 = vmatmul.mubr.f32.gmra.mxu0 %v3203
        %v3290 = vpop.f32.mrf.mxu0
        %v3291 = vadd.f32 0.0, %v3290
        %v3292 = vpop.f32.mrf.mxu0
        %3293 = vdwg.mxu0
        %v3294 = vmul.f32 %v3281, 0.17677669
        %v3295 = vmul.f32 %v3286, 0.17677669
        %v3296 = vmul.f32 %v3291, 0.17677669
        %v3297 = vadd.f32 %v3294, %v726
        %v3298 = vadd.f32 %v3295, %v726
        %v3299 = vadd.f32 %v3296, %v726
        %v3300 = vsel %vm1199, %v3297, -inf
        %3301 = vmax.xlane.f32.xlu0 %v3300
        %v3302 = vpop.xlane.xlu0 %3301
        %v3303 = vsel %vm1199, %v3298, -inf
        %3304 = vmax.xlane.f32.xlu0 %v3303
        %v3305 = vpop.xlane.xlu0 %3304
        %v3306 = vsel %vm1199, %v3299, -inf
        %3307 = vmax.xlane.f32.xlu0 %v3306
        %v3308 = vpop.xlane.xlu0 %3307
        %v3309 = vsub.f32 %v3297, %v3302
        %v3310 = vsub.f32 %v3298, %v3305
        %v3311 = vsub.f32 %v3299, %v3308
        %v3312 = vmul.f32 %v3309, 1.442695
        %v3313 = vpow.pop %v3312
        %v3314 = vmul.f32 %v3310, 1.442695
        %v3315 = vpow.pop %v3314
        %v3316 = vmul.f32 %v3311, 1.442695
        %v3317 = vpow.pop %v3316
        %v3318 = vsel %vm1199, %v3313, 0.0
        %3319 = vadd.xlane.f32.xlu0 %v3318
        %v3320 = vpop.xlane.xlu0 %3319
        %v3321 = vsel %vm1199, %v3315, 0.0
        %3322 = vadd.xlane.f32.xlu0 %v3321
        %v3323 = vpop.xlane.xlu0 %3322
        %v3324 = vsel %vm1199, %v3317, 0.0
        %3325 = vadd.xlane.f32.xlu0 %v3324
        %v3326 = vpop.xlane.xlu0 %3325
        %v3327 = vrcp.pop %v3320
        %v3328 = vrcp.pop %v3323
        %v3329 = vrcp.pop %v3326
        %v3330 = vmul.f32 %v3313, %v3327
        %v3331 = vmul.f32 %v3315, %v3328
        %v3332 = vmul.f32 %v3317, %v3329
        %v3334 = vsel %vm1199, %v3330, 0
        %v3337 = vsel %vm1199, %v3331, 0
        %v3340 = vsel %vm1199, %v3332, 0
        %3342 = vmatprep.subr.mxu0 0.0
        %3343 = vmatpush1.msra.mxu0 0.0
        %3344 = vmatprep.subr.mxu0 0.0
        %3345 = vmatpush1.msra.mxu0 0.0
        %3346 = vmatprep.subr.mxu0 0.0
        %3347 = vmatpush1.msra.mxu0 0.0
        %3348 = vmatprep.subr.mxu0 0.0
        %3349 = vmatpush1.msra.mxu0 0.0
        %3350 = vmatprep.subr.mxu0 0.0
        %3351 = vmatpush1.msra.mxu0 0.0
        %3352 = vmatprep.subr.mxu0 0.0
        %3353 = vmatpush1.msra.mxu0 0.0
        %3354 = vmatprep.subr.mxu0 0.0
        %3355 = vmatpush1.msra.mxu0 0.0
        %3356 = vmatprep.subr.mxu0 0.0
        %3357 = vmatpush1.msra.mxu0 0.0
        %3358 = vmatprep.subr.mxu0 0.0
        %3359 = vmatpush1.msra.mxu0 0.0
        %3360 = vmatprep.subr.mxu0 0.0
        %3361 = vmatpush1.msra.mxu0 0.0
        %3362 = vmatprep.subr.mxu0 0.0
        %3363 = vmatpush1.msra.mxu0 0.0
        %3364 = vmatprep.subr.mxu0 0.0
        %3365 = vmatpush1.msra.mxu0 0.0
        %3366 = vmatprep.subr.mxu0 0.0
        %3367 = vmatpush1.msra.mxu0 0.0
        %3368 = vmatprep.subr.mxu0 0.0
        %3369 = vmatpush1.msra.mxu0 %v3193
        %3370 = vmatprep.subr.mxu0 0.0
        %3371 = vmatpush1.msra.mxu0 %v3188
        %3372 = vmatprep.subr.mxu0 0.0
        %3373 = vmatpush1.msra.mxu0 %v3183
        %3374 = vmatprep.subr.mxu0 0.0
        %3375 = vmatpush2.msra.mxu0 0.0
        %3376 = vmatprep.subr.mxu0 0.0
        %3377 = vmatpush2.msra.mxu0 0.0
        %3378 = vmatprep.subr.mxu0 0.0
        %3379 = vmatpush2.msra.mxu0 0.0
        %3380 = vmatprep.subr.mxu0 0.0
        %3381 = vmatpush2.msra.mxu0 0.0
        %3382 = vmatprep.subr.mxu0 0.0
        %3383 = vmatpush2.msra.mxu0 0.0
        %3384 = vmatprep.subr.mxu0 0.0
        %3385 = vmatpush2.msra.mxu0 0.0
        %3386 = vmatprep.subr.mxu0 0.0
        %3387 = vmatpush2.msra.mxu0 0.0
        %3388 = vmatprep.subr.mxu0 0.0
        %3389 = vmatpush2.msra.mxu0 0.0
        %3390 = vmatprep.subr.mxu0 0.0
        %3391 = vmatpush2.msra.mxu0 0.0
        %3392 = vmatprep.subr.mxu0 0.0
        %3393 = vmatpush2.msra.mxu0 0.0
        %3394 = vmatprep.subr.mxu0 0.0
        %3395 = vmatpush2.msra.mxu0 0.0
        %3396 = vmatprep.subr.mxu0 0.0
        %3397 = vmatpush2.msra.mxu0 0.0
        %3398 = vmatprep.subr.mxu0 0.0
        %3399 = vmatpush2.msra.mxu0 0.0
        %3400 = vmatprep.subr.mxu0 0.0
        %3401 = vmatpush2.msra.mxu0 0.0
        %3402 = vmatprep.subr.mxu0 0.0
        %3403 = vmatpush2.msra.mxu0 0.0
        %3404 = vmatprep.subr.mxu0 0.0
        %3405 = vmatpush2.msra.mxu0 0.0
        %3406 = vmatprep.mubr.f32.mxu0 0.0
        %3407 = vmatmul.mubr.f32.gmra.mxu0 %v3334
        %v3408 = vpop.f32.mrf.mxu0
        %v3409 = vadd.f32 0.0, %v3408
        %v3410 = vpop.f32.mrf.mxu0
        %3411 = vmatprep.mubr.f32.mxu0 0.0
        %3412 = vmatmul.mubr.f32.gmra.mxu0 %v3337
        %v3413 = vpop.f32.mrf.mxu0
        %v3414 = vadd.f32 0.0, %v3413
        %v3415 = vpop.f32.mrf.mxu0
        %3416 = vmatprep.mubr.f32.mxu0 0.0
        %3417 = vmatmul.mubr.f32.gmra.mxu0 %v3340
        %v3418 = vpop.f32.mrf.mxu0
        %v3419 = vadd.f32 0.0, %v3418
        %v3420 = vpop.f32.mrf.mxu0
        %3421 = vdwg.mxu0
        %3422 = vrot.lane.b32.xlu0 %v3100, 96
        %v3423 = vpop.permute.xlu0 %3422
        %3424 = vrot.lane.b32.xlu0 %v3106, 96
        %v3425 = vpop.permute.xlu0 %3424
        %3426 = vrot.lane.b32.xlu0 %v3112, 96
        %v3427 = vpop.permute.xlu0 %3426
        %3428 = vrot.lane.b32.xlu0 %v3102, 96
        %v3429 = vpop.permute.xlu0 %3428
        %3430 = vrot.lane.b32.xlu0 %v3108, 96
        %v3431 = vpop.permute.xlu0 %3430
        %3432 = vrot.lane.b32.xlu0 %v3114, 96
        %v3433 = vpop.permute.xlu0 %3432
        %v3434 = vsel %vm1094, %v3423, 0
        %v3436 = vsel %vm1094, %v3425, 0
        %v3438 = vsel %vm1094, %v3427, 0
        %v3440 = vsel %vm1094, %v3429, 0
        %v3442 = vsel %vm1094, %v3431, 0
        %v3444 = vsel %vm1094, %v3433, 0
        %3446 = vmatprep.subr.mxu0 0.0
        %3447 = vmatpush1.xpose.msra.mxu0 0.0
        %3448 = vmatprep.subr.mxu0 0.0
        %3449 = vmatpush1.xpose.msra.mxu0 0.0
        %3450 = vmatprep.subr.mxu0 0.0
        %3451 = vmatpush1.xpose.msra.mxu0 0.0
        %3452 = vmatprep.subr.mxu0 0.0
        %3453 = vmatpush1.xpose.msra.mxu0 0.0
        %3454 = vmatprep.subr.mxu0 0.0
        %3455 = vmatpush1.xpose.msra.mxu0 0.0
        %3456 = vmatprep.subr.mxu0 0.0
        %3457 = vmatpush1.xpose.msra.mxu0 0.0
        %3458 = vmatprep.subr.mxu0 0.0
        %3459 = vmatpush1.xpose.msra.mxu0 0.0
        %3460 = vmatprep.subr.mxu0 0.0
        %3461 = vmatpush1.xpose.msra.mxu0 0.0
        %3462 = vmatprep.subr.mxu0 0.0
        %3463 = vmatpush1.xpose.msra.mxu0 0.0
        %3464 = vmatprep.subr.mxu0 0.0
        %3465 = vmatpush1.xpose.msra.mxu0 0.0
        %3466 = vmatprep.subr.mxu0 0.0
        %3467 = vmatpush1.xpose.msra.mxu0 0.0
        %3468 = vmatprep.subr.mxu0 0.0
        %3469 = vmatpush1.xpose.msra.mxu0 0.0
        %3470 = vmatprep.subr.mxu0 0.0
        %3471 = vmatpush1.xpose.msra.mxu0 0.0
        %3472 = vmatprep.subr.mxu0 0.0
        %3473 = vmatpush1.xpose.msra.mxu0 %v3444
        %3474 = vmatprep.subr.mxu0 0.0
        %3475 = vmatpush1.xpose.msra.mxu0 %v3442
        %3476 = vmatprep.subr.mxu0 0.0
        %3477 = vmatpush1.xpose.msra.mxu0 %v3440
        %3478 = vmatprep.subr.mxu0 0.0
        %3479 = vmatpush2.xpose.msra.mxu0 0.0
        %3480 = vmatprep.subr.mxu0 0.0
        %3481 = vmatpush2.xpose.msra.mxu0 0.0
        %3482 = vmatprep.subr.mxu0 0.0
        %3483 = vmatpush2.xpose.msra.mxu0 0.0
        %3484 = vmatprep.subr.mxu0 0.0
        %3485 = vmatpush2.xpose.msra.mxu0 0.0
        %3486 = vmatprep.subr.mxu0 0.0
        %3487 = vmatpush2.xpose.msra.mxu0 0.0
        %3488 = vmatprep.subr.mxu0 0.0
        %3489 = vmatpush2.xpose.msra.mxu0 0.0
        %3490 = vmatprep.subr.mxu0 0.0
        %3491 = vmatpush2.xpose.msra.mxu0 0.0
        %3492 = vmatprep.subr.mxu0 0.0
        %3493 = vmatpush2.xpose.msra.mxu0 0.0
        %3494 = vmatprep.subr.mxu0 0.0
        %3495 = vmatpush2.xpose.msra.mxu0 0.0
        %3496 = vmatprep.subr.mxu0 0.0
        %3497 = vmatpush2.xpose.msra.mxu0 0.0
        %3498 = vmatprep.subr.mxu0 0.0
        %3499 = vmatpush2.xpose.msra.mxu0 0.0
        %3500 = vmatprep.subr.mxu0 0.0
        %3501 = vmatpush2.xpose.msra.mxu0 0.0
        %3502 = vmatprep.subr.mxu0 0.0
        %3503 = vmatpush2.xpose.msra.mxu0 0.0
        %3504 = vmatprep.subr.mxu0 0.0
        %3505 = vmatpush2.xpose.msra.mxu0 0.0
        %3506 = vmatprep.subr.mxu0 0.0
        %3507 = vmatpush2.xpose.msra.mxu0 0.0
        %3508 = vmatprep.subr.mxu0 0.0
        %3509 = vmatpush2.xpose.msra.mxu0 0.0
        %3510 = vmatprep.mubr.f32.mxu0 0.0
        %3511 = vmatmul.mubr.f32.gmra.mxu0 %v3434
        %v3512 = vpop.f32.mrf.mxu0
        %v3513 = vadd.f32 0.0, %v3512
        %v3514 = vpop.f32.mrf.mxu0
        %3515 = vmatprep.mubr.f32.mxu0 0.0
        %3516 = vmatmul.mubr.f32.gmra.mxu0 %v3436
        %v3517 = vpop.f32.mrf.mxu0
        %v3518 = vadd.f32 0.0, %v3517
        %v3519 = vpop.f32.mrf.mxu0
        %3520 = vmatprep.mubr.f32.mxu0 0.0
        %3521 = vmatmul.mubr.f32.gmra.mxu0 %v3438
        %v3522 = vpop.f32.mrf.mxu0
        %v3523 = vadd.f32 0.0, %v3522
        %v3524 = vpop.f32.mrf.mxu0
        %3525 = vdwg.mxu0
        %v3526 = vmul.f32 %v3513, 0.17677669
        %v3527 = vmul.f32 %v3518, 0.17677669
        %v3528 = vmul.f32 %v3523, 0.17677669
        %v3529 = vadd.f32 %v3526, %v726
        %v3530 = vadd.f32 %v3527, %v726
        %v3531 = vadd.f32 %v3528, %v726
        %v3532 = vsel %vm1199, %v3529, -inf
        %3533 = vmax.xlane.f32.xlu0 %v3532
        %v3534 = vpop.xlane.xlu0 %3533
        %v3535 = vsel %vm1199, %v3530, -inf
        %3536 = vmax.xlane.f32.xlu0 %v3535
        %v3537 = vpop.xlane.xlu0 %3536
        %v3538 = vsel %vm1199, %v3531, -inf
        %3539 = vmax.xlane.f32.xlu0 %v3538
        %v3540 = vpop.xlane.xlu0 %3539
        %v3541 = vsub.f32 %v3529, %v3534
        %v3542 = vsub.f32 %v3530, %v3537
        %v3543 = vsub.f32 %v3531, %v3540
        %v3544 = vmul.f32 %v3541, 1.442695
        %v3545 = vpow.pop %v3544
        %v3546 = vmul.f32 %v3542, 1.442695
        %v3547 = vpow.pop %v3546
        %v3548 = vmul.f32 %v3543, 1.442695
        %v3549 = vpow.pop %v3548
        %v3550 = vsel %vm1199, %v3545, 0.0
        %3551 = vadd.xlane.f32.xlu0 %v3550
        %v3552 = vpop.xlane.xlu0 %3551
        %v3553 = vsel %vm1199, %v3547, 0.0
        %3554 = vadd.xlane.f32.xlu0 %v3553
        %v3555 = vpop.xlane.xlu0 %3554
        %v3556 = vsel %vm1199, %v3549, 0.0
        %3557 = vadd.xlane.f32.xlu0 %v3556
        %v3558 = vpop.xlane.xlu0 %3557
        %v3559 = vrcp.pop %v3552
        %v3560 = vrcp.pop %v3555
        %v3561 = vrcp.pop %v3558
        %v3562 = vmul.f32 %v3545, %v3559
        %v3563 = vmul.f32 %v3547, %v3560
        %v3564 = vmul.f32 %v3549, %v3561
        %3568 = vrot.lane.b32.xlu0 %v3183, 96
        %v3569 = vpop.permute.xlu0 %3568
        %3570 = vrot.lane.b32.xlu0 %v3188, 96
        %v3571 = vpop.permute.xlu0 %3570
        %3572 = vrot.lane.b32.xlu0 %v3193, 96
        %v3573 = vpop.permute.xlu0 %3572
        %v3578 = vsel %vm1199, %v3562, 0
        %v3581 = vsel %vm1199, %v3563, 0
        %v3584 = vsel %vm1199, %v3564, 0
        %3586 = vmatprep.subr.mxu0 0.0
        %3587 = vmatpush1.msra.mxu0 0.0
        %3588 = vmatprep.subr.mxu0 0.0
        %3589 = vmatpush1.msra.mxu0 0.0
        %3590 = vmatprep.subr.mxu0 0.0
        %3591 = vmatpush1.msra.mxu0 0.0
        %3592 = vmatprep.subr.mxu0 0.0
        %3593 = vmatpush1.msra.mxu0 0.0
        %3594 = vmatprep.subr.mxu0 0.0
        %3595 = vmatpush1.msra.mxu0 0.0
        %3596 = vmatprep.subr.mxu0 0.0
        %3597 = vmatpush1.msra.mxu0 0.0
        %3598 = vmatprep.subr.mxu0 0.0
        %3599 = vmatpush1.msra.mxu0 0.0
        %3600 = vmatprep.subr.mxu0 0.0
        %3601 = vmatpush1.msra.mxu0 0.0
        %3602 = vmatprep.subr.mxu0 0.0
        %3603 = vmatpush1.msra.mxu0 0.0
        %3604 = vmatprep.subr.mxu0 0.0
        %3605 = vmatpush1.msra.mxu0 0.0
        %3606 = vmatprep.subr.mxu0 0.0
        %3607 = vmatpush1.msra.mxu0 0.0
        %3608 = vmatprep.subr.mxu0 0.0
        %3609 = vmatpush1.msra.mxu0 0.0
        %3610 = vmatprep.subr.mxu0 0.0
        %3611 = vmatpush1.msra.mxu0 0.0
        %3612 = vmatprep.subr.mxu0 0.0
        %3613 = vmatpush1.msra.mxu0 %v3573
        %3614 = vmatprep.subr.mxu0 0.0
        %3615 = vmatpush1.msra.mxu0 %v3571
        %3616 = vmatprep.subr.mxu0 0.0
        %3617 = vmatpush1.msra.mxu0 %v3569
        %3618 = vmatprep.subr.mxu0 0.0
        %3619 = vmatpush2.msra.mxu0 0.0
        %3620 = vmatprep.subr.mxu0 0.0
        %3621 = vmatpush2.msra.mxu0 0.0
        %3622 = vmatprep.subr.mxu0 0.0
        %3623 = vmatpush2.msra.mxu0 0.0
        %3624 = vmatprep.subr.mxu0 0.0
        %3625 = vmatpush2.msra.mxu0 0.0
        %3626 = vmatprep.subr.mxu0 0.0
        %3627 = vmatpush2.msra.mxu0 0.0
        %3628 = vmatprep.subr.mxu0 0.0
        %3629 = vmatpush2.msra.mxu0 0.0
        %3630 = vmatprep.subr.mxu0 0.0
        %3631 = vmatpush2.msra.mxu0 0.0
        %3632 = vmatprep.subr.mxu0 0.0
        %3633 = vmatpush2.msra.mxu0 0.0
        %3634 = vmatprep.subr.mxu0 0.0
        %3635 = vmatpush2.msra.mxu0 0.0
        %3636 = vmatprep.subr.mxu0 0.0
        %3637 = vmatpush2.msra.mxu0 0.0
        %3638 = vmatprep.subr.mxu0 0.0
        %3639 = vmatpush2.msra.mxu0 0.0
        %3640 = vmatprep.subr.mxu0 0.0
        %3641 = vmatpush2.msra.mxu0 0.0
        %3642 = vmatprep.subr.mxu0 0.0
        %3643 = vmatpush2.msra.mxu0 0.0
        %3644 = vmatprep.subr.mxu0 0.0
        %3645 = vmatpush2.msra.mxu0 0.0
        %3646 = vmatprep.subr.mxu0 0.0
        %3647 = vmatpush2.msra.mxu0 0.0
        %3648 = vmatprep.subr.mxu0 0.0
        %3649 = vmatpush2.msra.mxu0 0.0
        %3650 = vmatprep.mubr.f32.mxu0 0.0
        %3651 = vmatmul.mubr.f32.gmra.mxu0 %v3578
        %v3652 = vpop.f32.mrf.mxu0
        %v3653 = vadd.f32 0.0, %v3652
        %v3654 = vpop.f32.mrf.mxu0
        %3655 = vmatprep.mubr.f32.mxu0 0.0
        %3656 = vmatmul.mubr.f32.gmra.mxu0 %v3581
        %v3657 = vpop.f32.mrf.mxu0
        %v3658 = vadd.f32 0.0, %v3657
        %v3659 = vpop.f32.mrf.mxu0
        %3660 = vmatprep.mubr.f32.mxu0 0.0
        %3661 = vmatmul.mubr.f32.gmra.mxu0 %v3584
        %v3662 = vpop.f32.mrf.mxu0
        %v3663 = vadd.f32 0.0, %v3662
        %v3664 = vpop.f32.mrf.mxu0
        %3665 = vdwg.mxu0
        %v3667 = vsel %vm1094, %v3653, 0
        %v3670 = vsel %vm1094, %v3658, 0
        %v3673 = vsel %vm1094, %v3663, 0
        %3675 = vmatprep.subr.mxu0 0.0
        %3676 = vmatpush1.msra.mxu0 0.0
        %3677 = vmatprep.subr.mxu0 0.0
        %3678 = vmatpush1.msra.mxu0 0.0
        %3679 = vmatprep.subr.mxu0 0.0
        %3680 = vmatpush1.msra.mxu0 0.0
        %3681 = vmatprep.subr.mxu0 0.0
        %3682 = vmatpush1.msra.mxu0 0.0
        %3683 = vmatprep.subr.mxu0 0.0
        %3684 = vmatpush1.msra.mxu0 0.0
        %3685 = vmatprep.subr.mxu0 0.0
        %3686 = vmatpush1.msra.mxu0 0.0
        %3687 = vmatprep.subr.mxu0 0.0
        %3688 = vmatpush1.msra.mxu0 0.0
        %3689 = vmatprep.subr.mxu0 0.0
        %3690 = vmatpush1.msra.mxu0 0.0
        %3691 = vmatprep.subr.mxu0 0.0
        %3692 = vmatpush1.msra.mxu0 0.0
        %3693 = vmatprep.subr.mxu0 0.0
        %3694 = vmatpush1.msra.mxu0 0.0
        %3695 = vmatprep.subr.mxu0 0.0
        %3696 = vmatpush1.msra.mxu0 0.0
        %3697 = vmatprep.subr.mxu0 0.0
        %3698 = vmatpush1.msra.mxu0 0.0
        %3699 = vmatprep.subr.mxu0 0.0
        %3700 = vmatpush1.msra.mxu0 %v2881
        %3701 = vmatprep.subr.mxu0 0.0
        %3702 = vmatpush1.msra.mxu0 %v2880
        %3703 = vmatprep.subr.mxu0 0.0
        %3704 = vmatpush1.msra.mxu0 %v2879
        %3705 = vmatprep.subr.mxu0 0.0
        %3706 = vmatpush1.msra.mxu0 %v2878
        %3707 = vmatprep.subr.mxu0 0.0
        %3708 = vmatpush2.msra.mxu0 0.0
        %3709 = vmatprep.subr.mxu0 0.0
        %3710 = vmatpush2.msra.mxu0 0.0
        %3711 = vmatprep.subr.mxu0 0.0
        %3712 = vmatpush2.msra.mxu0 0.0
        %3713 = vmatprep.subr.mxu0 0.0
        %3714 = vmatpush2.msra.mxu0 0.0
        %3715 = vmatprep.subr.mxu0 0.0
        %3716 = vmatpush2.msra.mxu0 0.0
        %3717 = vmatprep.subr.mxu0 0.0
        %3718 = vmatpush2.msra.mxu0 0.0
        %3719 = vmatprep.subr.mxu0 0.0
        %3720 = vmatpush2.msra.mxu0 0.0
        %3721 = vmatprep.subr.mxu0 0.0
        %3722 = vmatpush2.msra.mxu0 0.0
        %3723 = vmatprep.subr.mxu0 0.0
        %3724 = vmatpush2.msra.mxu0 0.0
        %3725 = vmatprep.subr.mxu0 0.0
        %3726 = vmatpush2.msra.mxu0 0.0
        %3727 = vmatprep.subr.mxu0 0.0
        %3728 = vmatpush2.msra.mxu0 0.0
        %3729 = vmatprep.subr.mxu0 0.0
        %3730 = vmatpush2.msra.mxu0 0.0
        %3731 = vmatprep.subr.mxu0 0.0
        %3732 = vmatpush2.msra.mxu0 0.0
        %3733 = vmatprep.subr.mxu0 0.0
        %3734 = vmatpush2.msra.mxu0 0.0
        %3735 = vmatprep.subr.mxu0 0.0
        %3736 = vmatpush2.msra.mxu0 0.0
        %3737 = vmatprep.subr.mxu0 0.0
        %3738 = vmatpush2.msra.mxu0 0.0
        %3739 = vmatprep.mubr.f32.mxu0 0.0
        %3740 = vmatmul.mubr.f32.gmra.mxu0 %v3667
        %v3741 = vpop.f32.mrf.mxu0
        %v3742 = vadd.f32 0.0, %v3741
        %v3743 = vpop.f32.mrf.mxu0
        %3744 = vmatprep.mubr.f32.mxu0 0.0
        %3745 = vmatmul.mubr.f32.gmra.mxu0 %v3670
        %v3746 = vpop.f32.mrf.mxu0
        %v3747 = vadd.f32 0.0, %v3746
        %v3748 = vpop.f32.mrf.mxu0
        %3749 = vmatprep.mubr.f32.mxu0 0.0
        %3750 = vmatmul.mubr.f32.gmra.mxu0 %v3673
        %v3751 = vpop.f32.mrf.mxu0
        %v3752 = vadd.f32 0.0, %v3751
        %v3753 = vpop.f32.mrf.mxu0
        %3754 = vdwg.mxu0
        %v3756 = vsel %vm1094, %v3409, 0
        %v3759 = vsel %vm1094, %v3414, 0
        %v3762 = vsel %vm1094, %v3419, 0
        %3764 = vmatprep.subr.mxu0 0.0
        %3765 = vmatpush1.msra.mxu0 0.0
        %3766 = vmatprep.subr.mxu0 0.0
        %3767 = vmatpush1.msra.mxu0 0.0
        %3768 = vmatprep.subr.mxu0 0.0
        %3769 = vmatpush1.msra.mxu0 0.0
        %3770 = vmatprep.subr.mxu0 0.0
        %3771 = vmatpush1.msra.mxu0 0.0
        %3772 = vmatprep.subr.mxu0 0.0
        %3773 = vmatpush1.msra.mxu0 0.0
        %3774 = vmatprep.subr.mxu0 0.0
        %3775 = vmatpush1.msra.mxu0 0.0
        %3776 = vmatprep.subr.mxu0 0.0
        %3777 = vmatpush1.msra.mxu0 0.0
        %3778 = vmatprep.subr.mxu0 0.0
        %3779 = vmatpush1.msra.mxu0 0.0
        %3780 = vmatprep.subr.mxu0 0.0
        %3781 = vmatpush1.msra.mxu0 0.0
        %3782 = vmatprep.subr.mxu0 0.0
        %3783 = vmatpush1.msra.mxu0 0.0
        %3784 = vmatprep.subr.mxu0 0.0
        %3785 = vmatpush1.msra.mxu0 0.0
        %3786 = vmatprep.subr.mxu0 0.0
        %3787 = vmatpush1.msra.mxu0 0.0
        %3788 = vmatprep.subr.mxu0 0.0
        %3789 = vmatpush1.msra.mxu0 %v2877
        %3790 = vmatprep.subr.mxu0 0.0
        %3791 = vmatpush1.msra.mxu0 %v2876
        %3792 = vmatprep.subr.mxu0 0.0
        %3793 = vmatpush1.msra.mxu0 %v2875
        %3794 = vmatprep.subr.mxu0 0.0
        %3795 = vmatpush1.msra.mxu0 %v2874
        %3796 = vmatprep.subr.mxu0 0.0
        %3797 = vmatpush2.msra.mxu0 0.0
        %3798 = vmatprep.subr.mxu0 0.0
        %3799 = vmatpush2.msra.mxu0 0.0
        %3800 = vmatprep.subr.mxu0 0.0
        %3801 = vmatpush2.msra.mxu0 0.0
        %3802 = vmatprep.subr.mxu0 0.0
        %3803 = vmatpush2.msra.mxu0 0.0
        %3804 = vmatprep.subr.mxu0 0.0
        %3805 = vmatpush2.msra.mxu0 0.0
        %3806 = vmatprep.subr.mxu0 0.0
        %3807 = vmatpush2.msra.mxu0 0.0
        %3808 = vmatprep.subr.mxu0 0.0
        %3809 = vmatpush2.msra.mxu0 0.0
        %3810 = vmatprep.subr.mxu0 0.0
        %3811 = vmatpush2.msra.mxu0 0.0
        %3812 = vmatprep.subr.mxu0 0.0
        %3813 = vmatpush2.msra.mxu0 0.0
        %3814 = vmatprep.subr.mxu0 0.0
        %3815 = vmatpush2.msra.mxu0 0.0
        %3816 = vmatprep.subr.mxu0 0.0
        %3817 = vmatpush2.msra.mxu0 0.0
        %3818 = vmatprep.subr.mxu0 0.0
        %3819 = vmatpush2.msra.mxu0 0.0
        %3820 = vmatprep.subr.mxu0 0.0
        %3821 = vmatpush2.msra.mxu0 0.0
        %3822 = vmatprep.subr.mxu0 0.0
        %3823 = vmatpush2.msra.mxu0 0.0
        %3824 = vmatprep.subr.mxu0 0.0
        %3825 = vmatpush2.msra.mxu0 0.0
        %3826 = vmatprep.subr.mxu0 0.0
        %3827 = vmatpush2.msra.mxu0 0.0
        %3828 = vmatprep.mubr.f32.mxu0 0.0
        %3829 = vmatmul.mubr.f32.gmra.mxu0 %v3756
        %v3830 = vpop.f32.mrf.mxu0
        %v3831 = vadd.f32 %v3742, %v3830
        %v3832 = vpop.f32.mrf.mxu0
        %3833 = vmatprep.mubr.f32.mxu0 0.0
        %3834 = vmatmul.mubr.f32.gmra.mxu0 %v3759
        %v3835 = vpop.f32.mrf.mxu0
        %v3836 = vadd.f32 %v3747, %v3835
        %v3837 = vpop.f32.mrf.mxu0
        %3838 = vmatprep.mubr.f32.mxu0 0.0
        %3839 = vmatmul.mubr.f32.gmra.mxu0 %v3762
        %v3840 = vpop.f32.mrf.mxu0
        %v3841 = vadd.f32 %v3752, %v3840
        %v3842 = vpop.f32.mrf.mxu0
        %3843 = vdwg.mxu0
        %3844 = vrot.lane.b32.xlu0 %v3100, 64
        %v3845 = vpop.permute.xlu0 %3844
        %3846 = vrot.lane.b32.xlu0 %v3106, 64
        %v3847 = vpop.permute.xlu0 %3846
        %3848 = vrot.lane.b32.xlu0 %v3112, 64
        %v3849 = vpop.permute.xlu0 %3848
        %3850 = vrot.lane.b32.xlu0 %v3102, 64
        %v3851 = vpop.permute.xlu0 %3850
        %3852 = vrot.lane.b32.xlu0 %v3108, 64
        %v3853 = vpop.permute.xlu0 %3852
        %3854 = vrot.lane.b32.xlu0 %v3114, 64
        %v3855 = vpop.permute.xlu0 %3854
        %v3856 = vsel %vm1094, %v3845, 0
        %v3858 = vsel %vm1094, %v3847, 0
        %v3860 = vsel %vm1094, %v3849, 0
        %v3862 = vsel %vm1094, %v3851, 0
        %v3864 = vsel %vm1094, %v3853, 0
        %v3866 = vsel %vm1094, %v3855, 0
        %3868 = vmatprep.subr.mxu0 0.0
        %3869 = vmatpush1.xpose.msra.mxu0 0.0
        %3870 = vmatprep.subr.mxu0 0.0
        %3871 = vmatpush1.xpose.msra.mxu0 0.0
        %3872 = vmatprep.subr.mxu0 0.0
        %3873 = vmatpush1.xpose.msra.mxu0 0.0
        %3874 = vmatprep.subr.mxu0 0.0
        %3875 = vmatpush1.xpose.msra.mxu0 0.0
        %3876 = vmatprep.subr.mxu0 0.0
        %3877 = vmatpush1.xpose.msra.mxu0 0.0
        %3878 = vmatprep.subr.mxu0 0.0
        %3879 = vmatpush1.xpose.msra.mxu0 0.0
        %3880 = vmatprep.subr.mxu0 0.0
        %3881 = vmatpush1.xpose.msra.mxu0 0.0
        %3882 = vmatprep.subr.mxu0 0.0
        %3883 = vmatpush1.xpose.msra.mxu0 0.0
        %3884 = vmatprep.subr.mxu0 0.0
        %3885 = vmatpush1.xpose.msra.mxu0 0.0
        %3886 = vmatprep.subr.mxu0 0.0
        %3887 = vmatpush1.xpose.msra.mxu0 0.0
        %3888 = vmatprep.subr.mxu0 0.0
        %3889 = vmatpush1.xpose.msra.mxu0 0.0
        %3890 = vmatprep.subr.mxu0 0.0
        %3891 = vmatpush1.xpose.msra.mxu0 0.0
        %3892 = vmatprep.subr.mxu0 0.0
        %3893 = vmatpush1.xpose.msra.mxu0 0.0
        %3894 = vmatprep.subr.mxu0 0.0
        %3895 = vmatpush1.xpose.msra.mxu0 %v3866
        %3896 = vmatprep.subr.mxu0 0.0
        %3897 = vmatpush1.xpose.msra.mxu0 %v3864
        %3898 = vmatprep.subr.mxu0 0.0
        %3899 = vmatpush1.xpose.msra.mxu0 %v3862
        %3900 = vmatprep.subr.mxu0 0.0
        %3901 = vmatpush2.xpose.msra.mxu0 0.0
        %3902 = vmatprep.subr.mxu0 0.0
        %3903 = vmatpush2.xpose.msra.mxu0 0.0
        %3904 = vmatprep.subr.mxu0 0.0
        %3905 = vmatpush2.xpose.msra.mxu0 0.0
        %3906 = vmatprep.subr.mxu0 0.0
        %3907 = vmatpush2.xpose.msra.mxu0 0.0
        %3908 = vmatprep.subr.mxu0 0.0
        %3909 = vmatpush2.xpose.msra.mxu0 0.0
        %3910 = vmatprep.subr.mxu0 0.0
        %3911 = vmatpush2.xpose.msra.mxu0 0.0
        %3912 = vmatprep.subr.mxu0 0.0
        %3913 = vmatpush2.xpose.msra.mxu0 0.0
        %3914 = vmatprep.subr.mxu0 0.0
        %3915 = vmatpush2.xpose.msra.mxu0 0.0
        %3916 = vmatprep.subr.mxu0 0.0
        %3917 = vmatpush2.xpose.msra.mxu0 0.0
        %3918 = vmatprep.subr.mxu0 0.0
        %3919 = vmatpush2.xpose.msra.mxu0 0.0
        %3920 = vmatprep.subr.mxu0 0.0
        %3921 = vmatpush2.xpose.msra.mxu0 0.0
        %3922 = vmatprep.subr.mxu0 0.0
        %3923 = vmatpush2.xpose.msra.mxu0 0.0
        %3924 = vmatprep.subr.mxu0 0.0
        %3925 = vmatpush2.xpose.msra.mxu0 0.0
        %3926 = vmatprep.subr.mxu0 0.0
        %3927 = vmatpush2.xpose.msra.mxu0 0.0
        %3928 = vmatprep.subr.mxu0 0.0
        %3929 = vmatpush2.xpose.msra.mxu0 0.0
        %3930 = vmatprep.subr.mxu0 0.0
        %3931 = vmatpush2.xpose.msra.mxu0 0.0
        %3932 = vmatprep.mubr.f32.mxu0 0.0
        %3933 = vmatmul.mubr.f32.gmra.mxu0 %v3856
        %v3934 = vpop.f32.mrf.mxu0
        %v3935 = vadd.f32 0.0, %v3934
        %v3936 = vpop.f32.mrf.mxu0
        %3937 = vmatprep.mubr.f32.mxu0 0.0
        %3938 = vmatmul.mubr.f32.gmra.mxu0 %v3858
        %v3939 = vpop.f32.mrf.mxu0
        %v3940 = vadd.f32 0.0, %v3939
        %v3941 = vpop.f32.mrf.mxu0
        %3942 = vmatprep.mubr.f32.mxu0 0.0
        %3943 = vmatmul.mubr.f32.gmra.mxu0 %v3860
        %v3944 = vpop.f32.mrf.mxu0
        %v3945 = vadd.f32 0.0, %v3944
        %v3946 = vpop.f32.mrf.mxu0
        %3947 = vdwg.mxu0
        %v3948 = vmul.f32 %v3935, 0.17677669
        %v3949 = vmul.f32 %v3940, 0.17677669
        %v3950 = vmul.f32 %v3945, 0.17677669
        %v3951 = vadd.f32 %v3948, %v726
        %v3952 = vadd.f32 %v3949, %v726
        %v3953 = vadd.f32 %v3950, %v726
        %v3954 = vsel %vm1199, %v3951, -inf
        %3955 = vmax.xlane.f32.xlu0 %v3954
        %v3956 = vpop.xlane.xlu0 %3955
        %v3957 = vsel %vm1199, %v3952, -inf
        %3958 = vmax.xlane.f32.xlu0 %v3957
        %v3959 = vpop.xlane.xlu0 %3958
        %v3960 = vsel %vm1199, %v3953, -inf
        %3961 = vmax.xlane.f32.xlu0 %v3960
        %v3962 = vpop.xlane.xlu0 %3961
        %v3963 = vsub.f32 %v3951, %v3956
        %v3964 = vsub.f32 %v3952, %v3959
        %v3965 = vsub.f32 %v3953, %v3962
        %v3966 = vmul.f32 %v3963, 1.442695
        %v3967 = vpow.pop %v3966
        %v3968 = vmul.f32 %v3964, 1.442695
        %v3969 = vpow.pop %v3968
        %v3970 = vmul.f32 %v3965, 1.442695
        %v3971 = vpow.pop %v3970
        %v3972 = vsel %vm1199, %v3967, 0.0
        %3973 = vadd.xlane.f32.xlu0 %v3972
        %v3974 = vpop.xlane.xlu0 %3973
        %v3975 = vsel %vm1199, %v3969, 0.0
        %3976 = vadd.xlane.f32.xlu0 %v3975
        %v3977 = vpop.xlane.xlu0 %3976
        %v3978 = vsel %vm1199, %v3971, 0.0
        %3979 = vadd.xlane.f32.xlu0 %v3978
        %v3980 = vpop.xlane.xlu0 %3979
        %v3981 = vrcp.pop %v3974
        %v3982 = vrcp.pop %v3977
        %v3983 = vrcp.pop %v3980
        %v3984 = vmul.f32 %v3967, %v3981
        %v3985 = vmul.f32 %v3969, %v3982
        %v3986 = vmul.f32 %v3971, %v3983
        %3987 = vrot.lane.b32.xlu0 %v3183, 64
        %v3988 = vpop.permute.xlu0 %3987
        %3989 = vrot.lane.b32.xlu0 %v3188, 64
        %v3990 = vpop.permute.xlu0 %3989
        %3991 = vrot.lane.b32.xlu0 %v3193, 64
        %v3992 = vpop.permute.xlu0 %3991
        %v3997 = vsel %vm1199, %v3984, 0
        %v4000 = vsel %vm1199, %v3985, 0
        %v4003 = vsel %vm1199, %v3986, 0
        %4005 = vmatprep.subr.mxu0 0.0
        %4006 = vmatpush1.msra.mxu0 0.0
        %4007 = vmatprep.subr.mxu0 0.0
        %4008 = vmatpush1.msra.mxu0 0.0
        %4009 = vmatprep.subr.mxu0 0.0
        %4010 = vmatpush1.msra.mxu0 0.0
        %4011 = vmatprep.subr.mxu0 0.0
        %4012 = vmatpush1.msra.mxu0 0.0
        %4013 = vmatprep.subr.mxu0 0.0
        %4014 = vmatpush1.msra.mxu0 0.0
        %4015 = vmatprep.subr.mxu0 0.0
        %4016 = vmatpush1.msra.mxu0 0.0
        %4017 = vmatprep.subr.mxu0 0.0
        %4018 = vmatpush1.msra.mxu0 0.0
        %4019 = vmatprep.subr.mxu0 0.0
        %4020 = vmatpush1.msra.mxu0 0.0
        %4021 = vmatprep.subr.mxu0 0.0
        %4022 = vmatpush1.msra.mxu0 0.0
        %4023 = vmatprep.subr.mxu0 0.0
        %4024 = vmatpush1.msra.mxu0 0.0
        %4025 = vmatprep.subr.mxu0 0.0
        %4026 = vmatpush1.msra.mxu0 0.0
        %4027 = vmatprep.subr.mxu0 0.0
        %4028 = vmatpush1.msra.mxu0 0.0
        %4029 = vmatprep.subr.mxu0 0.0
        %4030 = vmatpush1.msra.mxu0 0.0
        %4031 = vmatprep.subr.mxu0 0.0
        %4032 = vmatpush1.msra.mxu0 %v3992
        %4033 = vmatprep.subr.mxu0 0.0
        %4034 = vmatpush1.msra.mxu0 %v3990
        %4035 = vmatprep.subr.mxu0 0.0
        %4036 = vmatpush1.msra.mxu0 %v3988
        %4037 = vmatprep.subr.mxu0 0.0
        %4038 = vmatpush2.msra.mxu0 0.0
        %4039 = vmatprep.subr.mxu0 0.0
        %4040 = vmatpush2.msra.mxu0 0.0
        %4041 = vmatprep.subr.mxu0 0.0
        %4042 = vmatpush2.msra.mxu0 0.0
        %4043 = vmatprep.subr.mxu0 0.0
        %4044 = vmatpush2.msra.mxu0 0.0
        %4045 = vmatprep.subr.mxu0 0.0
        %4046 = vmatpush2.msra.mxu0 0.0
        %4047 = vmatprep.subr.mxu0 0.0
        %4048 = vmatpush2.msra.mxu0 0.0
        %4049 = vmatprep.subr.mxu0 0.0
        %4050 = vmatpush2.msra.mxu0 0.0
        %4051 = vmatprep.subr.mxu0 0.0
        %4052 = vmatpush2.msra.mxu0 0.0
        %4053 = vmatprep.subr.mxu0 0.0
        %4054 = vmatpush2.msra.mxu0 0.0
        %4055 = vmatprep.subr.mxu0 0.0
        %4056 = vmatpush2.msra.mxu0 0.0
        %4057 = vmatprep.subr.mxu0 0.0
        %4058 = vmatpush2.msra.mxu0 0.0
        %4059 = vmatprep.subr.mxu0 0.0
        %4060 = vmatpush2.msra.mxu0 0.0
        %4061 = vmatprep.subr.mxu0 0.0
        %4062 = vmatpush2.msra.mxu0 0.0
        %4063 = vmatprep.subr.mxu0 0.0
        %4064 = vmatpush2.msra.mxu0 0.0
        %4065 = vmatprep.subr.mxu0 0.0
        %4066 = vmatpush2.msra.mxu0 0.0
        %4067 = vmatprep.subr.mxu0 0.0
        %4068 = vmatpush2.msra.mxu0 0.0
        %4069 = vmatprep.mubr.f32.mxu0 0.0
        %4070 = vmatmul.mubr.f32.gmra.mxu0 %v3997
        %v4071 = vpop.f32.mrf.mxu0
        %v4072 = vadd.f32 0.0, %v4071
        %v4073 = vpop.f32.mrf.mxu0
        %4074 = vmatprep.mubr.f32.mxu0 0.0
        %4075 = vmatmul.mubr.f32.gmra.mxu0 %v4000
        %v4076 = vpop.f32.mrf.mxu0
        %v4077 = vadd.f32 0.0, %v4076
        %v4078 = vpop.f32.mrf.mxu0
        %4079 = vmatprep.mubr.f32.mxu0 0.0
        %4080 = vmatmul.mubr.f32.gmra.mxu0 %v4003
        %v4081 = vpop.f32.mrf.mxu0
        %v4082 = vadd.f32 0.0, %v4081
        %v4083 = vpop.f32.mrf.mxu0
        %4084 = vdwg.mxu0
        %v4086 = vsel %vm1094, %v4072, 0
        %v4089 = vsel %vm1094, %v4077, 0
        %v4092 = vsel %vm1094, %v4082, 0
        %4094 = vmatprep.subr.mxu0 0.0
        %4095 = vmatpush1.msra.mxu0 0.0
        %4096 = vmatprep.subr.mxu0 0.0
        %4097 = vmatpush1.msra.mxu0 0.0
        %4098 = vmatprep.subr.mxu0 0.0
        %4099 = vmatpush1.msra.mxu0 0.0
        %4100 = vmatprep.subr.mxu0 0.0
        %4101 = vmatpush1.msra.mxu0 0.0
        %4102 = vmatprep.subr.mxu0 0.0
        %4103 = vmatpush1.msra.mxu0 0.0
        %4104 = vmatprep.subr.mxu0 0.0
        %4105 = vmatpush1.msra.mxu0 0.0
        %4106 = vmatprep.subr.mxu0 0.0
        %4107 = vmatpush1.msra.mxu0 0.0
        %4108 = vmatprep.subr.mxu0 0.0
        %4109 = vmatpush1.msra.mxu0 0.0
        %4110 = vmatprep.subr.mxu0 0.0
        %4111 = vmatpush1.msra.mxu0 0.0
        %4112 = vmatprep.subr.mxu0 0.0
        %4113 = vmatpush1.msra.mxu0 0.0
        %4114 = vmatprep.subr.mxu0 0.0
        %4115 = vmatpush1.msra.mxu0 0.0
        %4116 = vmatprep.subr.mxu0 0.0
        %4117 = vmatpush1.msra.mxu0 0.0
        %4118 = vmatprep.subr.mxu0 0.0
        %4119 = vmatpush1.msra.mxu0 %v2885
        %4120 = vmatprep.subr.mxu0 0.0
        %4121 = vmatpush1.msra.mxu0 %v2884
        %4122 = vmatprep.subr.mxu0 0.0
        %4123 = vmatpush1.msra.mxu0 %v2883
        %4124 = vmatprep.subr.mxu0 0.0
        %4125 = vmatpush1.msra.mxu0 %v2882
        %4126 = vmatprep.subr.mxu0 0.0
        %4127 = vmatpush2.msra.mxu0 0.0
        %4128 = vmatprep.subr.mxu0 0.0
        %4129 = vmatpush2.msra.mxu0 0.0
        %4130 = vmatprep.subr.mxu0 0.0
        %4131 = vmatpush2.msra.mxu0 0.0
        %4132 = vmatprep.subr.mxu0 0.0
        %4133 = vmatpush2.msra.mxu0 0.0
        %4134 = vmatprep.subr.mxu0 0.0
        %4135 = vmatpush2.msra.mxu0 0.0
        %4136 = vmatprep.subr.mxu0 0.0
        %4137 = vmatpush2.msra.mxu0 0.0
        %4138 = vmatprep.subr.mxu0 0.0
        %4139 = vmatpush2.msra.mxu0 0.0
        %4140 = vmatprep.subr.mxu0 0.0
        %4141 = vmatpush2.msra.mxu0 0.0
        %4142 = vmatprep.subr.mxu0 0.0
        %4143 = vmatpush2.msra.mxu0 0.0
        %4144 = vmatprep.subr.mxu0 0.0
        %4145 = vmatpush2.msra.mxu0 0.0
        %4146 = vmatprep.subr.mxu0 0.0
        %4147 = vmatpush2.msra.mxu0 0.0
        %4148 = vmatprep.subr.mxu0 0.0
        %4149 = vmatpush2.msra.mxu0 0.0
        %4150 = vmatprep.subr.mxu0 0.0
        %4151 = vmatpush2.msra.mxu0 0.0
        %4152 = vmatprep.subr.mxu0 0.0
        %4153 = vmatpush2.msra.mxu0 0.0
        %4154 = vmatprep.subr.mxu0 0.0
        %4155 = vmatpush2.msra.mxu0 0.0
        %4156 = vmatprep.subr.mxu0 0.0
        %4157 = vmatpush2.msra.mxu0 0.0
        %4158 = vmatprep.mubr.f32.mxu0 0.0
        %4159 = vmatmul.mubr.f32.gmra.mxu0 %v4086
        %v4160 = vpop.f32.mrf.mxu0
        %v4161 = vadd.f32 0.0, %v4160
        %v4162 = vpop.f32.mrf.mxu0
        %4163 = vmatprep.mubr.f32.mxu0 0.0
        %4164 = vmatmul.mubr.f32.gmra.mxu0 %v4089
        %v4165 = vpop.f32.mrf.mxu0
        %v4166 = vadd.f32 0.0, %v4165
        %v4167 = vpop.f32.mrf.mxu0
        %4168 = vmatprep.mubr.f32.mxu0 0.0
        %4169 = vmatmul.mubr.f32.gmra.mxu0 %v4092
        %v4170 = vpop.f32.mrf.mxu0
        %v4171 = vadd.f32 0.0, %v4170
        %v4172 = vpop.f32.mrf.mxu0
        %4173 = vdwg.mxu0
        %v4174 = vadd.f32 %v3831, %v4161
        %v4175 = vadd.f32 %v3836, %v4166
        %v4176 = vadd.f32 %v3841, %v4171
        %4177 = vrot.lane.b32.xlu0 %v3100, 32
        %v4178 = vpop.permute.xlu0 %4177
        %4179 = vrot.lane.b32.xlu0 %v3106, 32
        %v4180 = vpop.permute.xlu0 %4179
        %4181 = vrot.lane.b32.xlu0 %v3112, 32
        %v4182 = vpop.permute.xlu0 %4181
        %4183 = vrot.lane.b32.xlu0 %v3102, 32
        %v4184 = vpop.permute.xlu0 %4183
        %4185 = vrot.lane.b32.xlu0 %v3108, 32
        %v4186 = vpop.permute.xlu0 %4185
        %4187 = vrot.lane.b32.xlu0 %v3114, 32
        %v4188 = vpop.permute.xlu0 %4187
        %v4189 = vsel %vm1094, %v4178, 0
        %v4191 = vsel %vm1094, %v4180, 0
        %v4193 = vsel %vm1094, %v4182, 0
        %v4195 = vsel %vm1094, %v4184, 0
        %v4197 = vsel %vm1094, %v4186, 0
        %v4199 = vsel %vm1094, %v4188, 0
        %4201 = vmatprep.subr.mxu0 0.0
        %4202 = vmatpush1.xpose.msra.mxu0 0.0
        %4203 = vmatprep.subr.mxu0 0.0
        %4204 = vmatpush1.xpose.msra.mxu0 0.0
        %4205 = vmatprep.subr.mxu0 0.0
        %4206 = vmatpush1.xpose.msra.mxu0 0.0
        %4207 = vmatprep.subr.mxu0 0.0
        %4208 = vmatpush1.xpose.msra.mxu0 0.0
        %4209 = vmatprep.subr.mxu0 0.0
        %4210 = vmatpush1.xpose.msra.mxu0 0.0
        %4211 = vmatprep.subr.mxu0 0.0
        %4212 = vmatpush1.xpose.msra.mxu0 0.0
        %4213 = vmatprep.subr.mxu0 0.0
        %4214 = vmatpush1.xpose.msra.mxu0 0.0
        %4215 = vmatprep.subr.mxu0 0.0
        %4216 = vmatpush1.xpose.msra.mxu0 0.0
        %4217 = vmatprep.subr.mxu0 0.0
        %4218 = vmatpush1.xpose.msra.mxu0 0.0
        %4219 = vmatprep.subr.mxu0 0.0
        %4220 = vmatpush1.xpose.msra.mxu0 0.0
        %4221 = vmatprep.subr.mxu0 0.0
        %4222 = vmatpush1.xpose.msra.mxu0 0.0
        %4223 = vmatprep.subr.mxu0 0.0
        %4224 = vmatpush1.xpose.msra.mxu0 0.0
        %4225 = vmatprep.subr.mxu0 0.0
        %4226 = vmatpush1.xpose.msra.mxu0 0.0
        %4227 = vmatprep.subr.mxu0 0.0
        %4228 = vmatpush1.xpose.msra.mxu0 %v4199
        %4229 = vmatprep.subr.mxu0 0.0
        %4230 = vmatpush1.xpose.msra.mxu0 %v4197
        %4231 = vmatprep.subr.mxu0 0.0
        %4232 = vmatpush1.xpose.msra.mxu0 %v4195
        %4233 = vmatprep.subr.mxu0 0.0
        %4234 = vmatpush2.xpose.msra.mxu0 0.0
        %4235 = vmatprep.subr.mxu0 0.0
        %4236 = vmatpush2.xpose.msra.mxu0 0.0
        %4237 = vmatprep.subr.mxu0 0.0
        %4238 = vmatpush2.xpose.msra.mxu0 0.0
        %4239 = vmatprep.subr.mxu0 0.0
        %4240 = vmatpush2.xpose.msra.mxu0 0.0
        %4241 = vmatprep.subr.mxu0 0.0
        %4242 = vmatpush2.xpose.msra.mxu0 0.0
        %4243 = vmatprep.subr.mxu0 0.0
        %4244 = vmatpush2.xpose.msra.mxu0 0.0
        %4245 = vmatprep.subr.mxu0 0.0
        %4246 = vmatpush2.xpose.msra.mxu0 0.0
        %4247 = vmatprep.subr.mxu0 0.0
        %4248 = vmatpush2.xpose.msra.mxu0 0.0
        %4249 = vmatprep.subr.mxu0 0.0
        %4250 = vmatpush2.xpose.msra.mxu0 0.0
        %4251 = vmatprep.subr.mxu0 0.0
        %4252 = vmatpush2.xpose.msra.mxu0 0.0
        %4253 = vmatprep.subr.mxu0 0.0
        %4254 = vmatpush2.xpose.msra.mxu0 0.0
        %4255 = vmatprep.subr.mxu0 0.0
        %4256 = vmatpush2.xpose.msra.mxu0 0.0
        %4257 = vmatprep.subr.mxu0 0.0
        %4258 = vmatpush2.xpose.msra.mxu0 0.0
        %4259 = vmatprep.subr.mxu0 0.0
        %4260 = vmatpush2.xpose.msra.mxu0 0.0
        %4261 = vmatprep.subr.mxu0 0.0
        %4262 = vmatpush2.xpose.msra.mxu0 0.0
        %4263 = vmatprep.subr.mxu0 0.0
        %4264 = vmatpush2.xpose.msra.mxu0 0.0
        %4265 = vmatprep.mubr.f32.mxu0 0.0
        %4266 = vmatmul.mubr.f32.gmra.mxu0 %v4189
        %v4267 = vpop.f32.mrf.mxu0
        %v4268 = vadd.f32 0.0, %v4267
        %v4269 = vpop.f32.mrf.mxu0
        %4270 = vmatprep.mubr.f32.mxu0 0.0
        %4271 = vmatmul.mubr.f32.gmra.mxu0 %v4191
        %v4272 = vpop.f32.mrf.mxu0
        %v4273 = vadd.f32 0.0, %v4272
        %v4274 = vpop.f32.mrf.mxu0
        %4275 = vmatprep.mubr.f32.mxu0 0.0
        %4276 = vmatmul.mubr.f32.gmra.mxu0 %v4193
        %v4277 = vpop.f32.mrf.mxu0
        %v4278 = vadd.f32 0.0, %v4277
        %v4279 = vpop.f32.mrf.mxu0
        %4280 = vdwg.mxu0
        %v4281 = vmul.f32 %v4268, 0.17677669
        %v4282 = vmul.f32 %v4273, 0.17677669
        %v4283 = vmul.f32 %v4278, 0.17677669
        %v4284 = vadd.f32 %v4281, %v726
        %v4285 = vadd.f32 %v4282, %v726
        %v4286 = vadd.f32 %v4283, %v726
        %v4287 = vsel %vm1199, %v4284, -inf
        %4288 = vmax.xlane.f32.xlu0 %v4287
        %v4289 = vpop.xlane.xlu0 %4288
        %v4290 = vsel %vm1199, %v4285, -inf
        %4291 = vmax.xlane.f32.xlu0 %v4290
        %v4292 = vpop.xlane.xlu0 %4291
        %v4293 = vsel %vm1199, %v4286, -inf
        %4294 = vmax.xlane.f32.xlu0 %v4293
        %v4295 = vpop.xlane.xlu0 %4294
        %v4296 = vsub.f32 %v4284, %v4289
        %v4297 = vsub.f32 %v4285, %v4292
        %v4298 = vsub.f32 %v4286, %v4295
        %v4299 = vmul.f32 %v4296, 1.442695
        %v4300 = vpow.pop %v4299
        %v4301 = vmul.f32 %v4297, 1.442695
        %v4302 = vpow.pop %v4301
        %v4303 = vmul.f32 %v4298, 1.442695
        %v4304 = vpow.pop %v4303
        %v4305 = vsel %vm1199, %v4300, 0.0
        %4306 = vadd.xlane.f32.xlu0 %v4305
        %v4307 = vpop.xlane.xlu0 %4306
        %v4308 = vsel %vm1199, %v4302, 0.0
        %4309 = vadd.xlane.f32.xlu0 %v4308
        %v4310 = vpop.xlane.xlu0 %4309
        %v4311 = vsel %vm1199, %v4304, 0.0
        %4312 = vadd.xlane.f32.xlu0 %v4311
        %v4313 = vpop.xlane.xlu0 %4312
        %v4314 = vrcp.pop %v4307
        %v4315 = vrcp.pop %v4310
        %v4316 = vrcp.pop %v4313
        %v4317 = vmul.f32 %v4300, %v4314
        %v4318 = vmul.f32 %v4302, %v4315
        %v4319 = vmul.f32 %v4304, %v4316
        %4320 = vrot.lane.b32.xlu0 %v3183, 32
        %v4321 = vpop.permute.xlu0 %4320
        %4322 = vrot.lane.b32.xlu0 %v3188, 32
        %v4323 = vpop.permute.xlu0 %4322
        %4324 = vrot.lane.b32.xlu0 %v3193, 32
        %v4325 = vpop.permute.xlu0 %4324
        %v4330 = vsel %vm1199, %v4317, 0
        %v4333 = vsel %vm1199, %v4318, 0
        %v4336 = vsel %vm1199, %v4319, 0
        %4338 = vmatprep.subr.mxu0 0.0
        %4339 = vmatpush1.msra.mxu0 0.0
        %4340 = vmatprep.subr.mxu0 0.0
        %4341 = vmatpush1.msra.mxu0 0.0
        %4342 = vmatprep.subr.mxu0 0.0
        %4343 = vmatpush1.msra.mxu0 0.0
        %4344 = vmatprep.subr.mxu0 0.0
        %4345 = vmatpush1.msra.mxu0 0.0
        %4346 = vmatprep.subr.mxu0 0.0
        %4347 = vmatpush1.msra.mxu0 0.0
        %4348 = vmatprep.subr.mxu0 0.0
        %4349 = vmatpush1.msra.mxu0 0.0
        %4350 = vmatprep.subr.mxu0 0.0
        %4351 = vmatpush1.msra.mxu0 0.0
        %4352 = vmatprep.subr.mxu0 0.0
        %4353 = vmatpush1.msra.mxu0 0.0
        %4354 = vmatprep.subr.mxu0 0.0
        %4355 = vmatpush1.msra.mxu0 0.0
        %4356 = vmatprep.subr.mxu0 0.0
        %4357 = vmatpush1.msra.mxu0 0.0
        %4358 = vmatprep.subr.mxu0 0.0
        %4359 = vmatpush1.msra.mxu0 0.0
        %4360 = vmatprep.subr.mxu0 0.0
        %4361 = vmatpush1.msra.mxu0 0.0
        %4362 = vmatprep.subr.mxu0 0.0
        %4363 = vmatpush1.msra.mxu0 0.0
        %4364 = vmatprep.subr.mxu0 0.0
        %4365 = vmatpush1.msra.mxu0 %v4325
        %4366 = vmatprep.subr.mxu0 0.0
        %4367 = vmatpush1.msra.mxu0 %v4323
        %4368 = vmatprep.subr.mxu0 0.0
        %4369 = vmatpush1.msra.mxu0 %v4321
        %4370 = vmatprep.subr.mxu0 0.0
        %4371 = vmatpush2.msra.mxu0 0.0
        %4372 = vmatprep.subr.mxu0 0.0
        %4373 = vmatpush2.msra.mxu0 0.0
        %4374 = vmatprep.subr.mxu0 0.0
        %4375 = vmatpush2.msra.mxu0 0.0
        %4376 = vmatprep.subr.mxu0 0.0
        %4377 = vmatpush2.msra.mxu0 0.0
        %4378 = vmatprep.subr.mxu0 0.0
        %4379 = vmatpush2.msra.mxu0 0.0
        %4380 = vmatprep.subr.mxu0 0.0
        %4381 = vmatpush2.msra.mxu0 0.0
        %4382 = vmatprep.subr.mxu0 0.0
        %4383 = vmatpush2.msra.mxu0 0.0
        %4384 = vmatprep.subr.mxu0 0.0
        %4385 = vmatpush2.msra.mxu0 0.0
        %4386 = vmatprep.subr.mxu0 0.0
        %4387 = vmatpush2.msra.mxu0 0.0
        %4388 = vmatprep.subr.mxu0 0.0
        %4389 = vmatpush2.msra.mxu0 0.0
        %4390 = vmatprep.subr.mxu0 0.0
        %4391 = vmatpush2.msra.mxu0 0.0
        %4392 = vmatprep.subr.mxu0 0.0
        %4393 = vmatpush2.msra.mxu0 0.0
        %4394 = vmatprep.subr.mxu0 0.0
        %4395 = vmatpush2.msra.mxu0 0.0
        %4396 = vmatprep.subr.mxu0 0.0
        %4397 = vmatpush2.msra.mxu0 0.0
        %4398 = vmatprep.subr.mxu0 0.0
        %4399 = vmatpush2.msra.mxu0 0.0
        %4400 = vmatprep.subr.mxu0 0.0
        %4401 = vmatpush2.msra.mxu0 0.0
        %4402 = vmatprep.mubr.f32.mxu0 0.0
        %4403 = vmatmul.mubr.f32.gmra.mxu0 %v4330
        %v4404 = vpop.f32.mrf.mxu0
        %v4405 = vadd.f32 0.0, %v4404
        %v4406 = vpop.f32.mrf.mxu0
        %4407 = vmatprep.mubr.f32.mxu0 0.0
        %4408 = vmatmul.mubr.f32.gmra.mxu0 %v4333
        %v4409 = vpop.f32.mrf.mxu0
        %v4410 = vadd.f32 0.0, %v4409
        %v4411 = vpop.f32.mrf.mxu0
        %4412 = vmatprep.mubr.f32.mxu0 0.0
        %4413 = vmatmul.mubr.f32.gmra.mxu0 %v4336
        %v4414 = vpop.f32.mrf.mxu0
        %v4415 = vadd.f32 0.0, %v4414
        %v4416 = vpop.f32.mrf.mxu0
        %4417 = vdwg.mxu0
        %v4419 = vsel %vm1094, %v4405, 0
        %v4422 = vsel %vm1094, %v4410, 0
        %v4425 = vsel %vm1094, %v4415, 0
        %4427 = vmatprep.subr.mxu0 0.0
        %4428 = vmatpush1.msra.mxu0 0.0
        %4429 = vmatprep.subr.mxu0 0.0
        %4430 = vmatpush1.msra.mxu0 0.0
        %4431 = vmatprep.subr.mxu0 0.0
        %4432 = vmatpush1.msra.mxu0 0.0
        %4433 = vmatprep.subr.mxu0 0.0
        %4434 = vmatpush1.msra.mxu0 0.0
        %4435 = vmatprep.subr.mxu0 0.0
        %4436 = vmatpush1.msra.mxu0 0.0
        %4437 = vmatprep.subr.mxu0 0.0
        %4438 = vmatpush1.msra.mxu0 0.0
        %4439 = vmatprep.subr.mxu0 0.0
        %4440 = vmatpush1.msra.mxu0 0.0
        %4441 = vmatprep.subr.mxu0 0.0
        %4442 = vmatpush1.msra.mxu0 0.0
        %4443 = vmatprep.subr.mxu0 0.0
        %4444 = vmatpush1.msra.mxu0 0.0
        %4445 = vmatprep.subr.mxu0 0.0
        %4446 = vmatpush1.msra.mxu0 0.0
        %4447 = vmatprep.subr.mxu0 0.0
        %4448 = vmatpush1.msra.mxu0 0.0
        %4449 = vmatprep.subr.mxu0 0.0
        %4450 = vmatpush1.msra.mxu0 0.0
        %4451 = vmatprep.subr.mxu0 0.0
        %4452 = vmatpush1.msra.mxu0 %v2889
        %4453 = vmatprep.subr.mxu0 0.0
        %4454 = vmatpush1.msra.mxu0 %v2888
        %4455 = vmatprep.subr.mxu0 0.0
        %4456 = vmatpush1.msra.mxu0 %v2887
        %4457 = vmatprep.subr.mxu0 0.0
        %4458 = vmatpush1.msra.mxu0 %v2886
        %4459 = vmatprep.subr.mxu0 0.0
        %4460 = vmatpush2.msra.mxu0 0.0
        %4461 = vmatprep.subr.mxu0 0.0
        %4462 = vmatpush2.msra.mxu0 0.0
        %4463 = vmatprep.subr.mxu0 0.0
        %4464 = vmatpush2.msra.mxu0 0.0
        %4465 = vmatprep.subr.mxu0 0.0
        %4466 = vmatpush2.msra.mxu0 0.0
        %4467 = vmatprep.subr.mxu0 0.0
        %4468 = vmatpush2.msra.mxu0 0.0
        %4469 = vmatprep.subr.mxu0 0.0
        %4470 = vmatpush2.msra.mxu0 0.0
        %4471 = vmatprep.subr.mxu0 0.0
        %4472 = vmatpush2.msra.mxu0 0.0
        %4473 = vmatprep.subr.mxu0 0.0
        %4474 = vmatpush2.msra.mxu0 0.0
        %4475 = vmatprep.subr.mxu0 0.0
        %4476 = vmatpush2.msra.mxu0 0.0
        %4477 = vmatprep.subr.mxu0 0.0
        %4478 = vmatpush2.msra.mxu0 0.0
        %4479 = vmatprep.subr.mxu0 0.0
        %4480 = vmatpush2.msra.mxu0 0.0
        %4481 = vmatprep.subr.mxu0 0.0
        %4482 = vmatpush2.msra.mxu0 0.0
        %4483 = vmatprep.subr.mxu0 0.0
        %4484 = vmatpush2.msra.mxu0 0.0
        %4485 = vmatprep.subr.mxu0 0.0
        %4486 = vmatpush2.msra.mxu0 0.0
        %4487 = vmatprep.subr.mxu0 0.0
        %4488 = vmatpush2.msra.mxu0 0.0
        %4489 = vmatprep.subr.mxu0 0.0
        %4490 = vmatpush2.msra.mxu0 0.0
        %4491 = vmatprep.mubr.f32.mxu0 0.0
        %4492 = vmatmul.mubr.f32.gmra.mxu0 %v4419
        %v4493 = vpop.f32.mrf.mxu0
        %v4494 = vadd.f32 0.0, %v4493
        %v4495 = vpop.f32.mrf.mxu0
        %4496 = vmatprep.mubr.f32.mxu0 0.0
        %4497 = vmatmul.mubr.f32.gmra.mxu0 %v4422
        %v4498 = vpop.f32.mrf.mxu0
        %v4499 = vadd.f32 0.0, %v4498
        %v4500 = vpop.f32.mrf.mxu0
        %4501 = vmatprep.mubr.f32.mxu0 0.0
        %4502 = vmatmul.mubr.f32.gmra.mxu0 %v4425
        %v4503 = vpop.f32.mrf.mxu0
        %v4504 = vadd.f32 0.0, %v4503
        %v4505 = vpop.f32.mrf.mxu0
        %4506 = vdwg.mxu0
        %v4507 = vadd.f32 %v4174, %v4494
        %v4508 = vadd.f32 %v4175, %v4499
        %v4509 = vadd.f32 %v4176, %v4504
        %v4511 = vlaneseq
        %v4512 = vshrl.u32 %v4511, 7
        %v4513 = vsub.s32 0, %v4512
        %v4514 = vrot.slane %v2891, %v4513
        %v4516 = vadd.f32 %v4507, %v4514
        %v4517 = vadd.f32 %v4508, %v4514
        %v4518 = vadd.f32 %v4509, %v4514
        %v4519 = vadd.f32 %v2815, %v4516
        %v4520 = vadd.f32 %v2816, %v4517
        %v4521 = vadd.f32 %v2817, %v4518
        %4522 = vadd.xlane.f32.xlu0 %v4519
        %v4523 = vpop.xlane.xlu0 %4522
        %4524 = vadd.xlane.f32.xlu0 %v4520
        %v4525 = vpop.xlane.xlu0 %4524
        %4526 = vadd.xlane.f32.xlu0 %v4521
        %v4527 = vpop.xlane.xlu0 %4526
        %v4528 = vmul.f32 %v4523, %v869
        %v4529 = vmul.f32 %v4525, %v869
        %v4530 = vmul.f32 %v4527, %v869
        %v4531 = vsub.f32 %v4519, %v4528
        %v4532 = vsub.f32 %v4520, %v4529
        %v4533 = vsub.f32 %v4521, %v4530
        %v4534 = vmul.f32 %v4531, %v4531
        %v4535 = vmul.f32 %v4532, %v4532
        %v4536 = vmul.f32 %v4533, %v4533
        %4537 = vadd.xlane.f32.xlu0 %v4534
        %v4538 = vpop.xlane.xlu0 %4537
        %4539 = vadd.xlane.f32.xlu0 %v4535
        %v4540 = vpop.xlane.xlu0 %4539
        %4541 = vadd.xlane.f32.xlu0 %v4536
        %v4542 = vpop.xlane.xlu0 %4541
        %v4543 = vmul.f32 %v4538, %v869
        %v4544 = vmul.f32 %v4540, %v869
        %v4545 = vmul.f32 %v4542, %v869
        %v4546 = vadd.f32 %v4543, 1e-05
        %v4547 = vadd.f32 %v4544, 1e-05
        %v4548 = vadd.f32 %v4545, 1e-05
        %v4549 = vrsqrt.pop %v4546
        %v4550 = vrsqrt.pop %v4547
        %v4551 = vrsqrt.pop %v4548
        %v4552 = vmul.f32 %v4531, %v4549
        %v4553 = vmul.f32 %v4532, %v4550
        %v4554 = vmul.f32 %v4533, %v4551
        %v4556 = vlaneseq
        %v4557 = vshrl.u32 %v4556, 7
        %v4558 = vsub.s32 0, %v4557
        %v4559 = vrot.slane %v2893, %v4558
        %v4561 = vmul.f32 %v4552, %v4559
        %v4562 = vmul.f32 %v4553, %v4559
        %v4563 = vmul.f32 %v4554, %v4559
        %v4565 = vlaneseq
        %v4566 = vshrl.u32 %v4565, 7
        %v4567 = vsub.s32 0, %v4566
        %v4568 = vrot.slane %v2895, %v4567
        %v4570 = vadd.f32 %v4561, %v4568
        %v4571 = vadd.f32 %v4562, %v4568
        %v4572 = vadd.f32 %v4563, %v4568
        %v4574 = vlaneseq
        %v4575 = vshrl.u32 %v4574, 7
        %v4576 = vsub.s32 0, %v4575
        %v4577 = vrot.slane %v2930, %v4576
        %v4578 = vlaneseq
        %v4579 = vshrl.u32 %v4578, 7
        %v4580 = vsub.s32 1, %v4579
        %v4581 = vrot.slane %v2930, %v4580
        %4584 = vmatprep.subr.mxu0 %v2928
        %4585 = vmatpush1.msra.mxu0 %v2927
        %4586 = vmatprep.subr.mxu0 %v2926
        %4587 = vmatpush1.msra.mxu0 %v2925
        %4588 = vmatprep.subr.mxu0 %v2924
        %4589 = vmatpush1.msra.mxu0 %v2923
        %4590 = vmatprep.subr.mxu0 %v2922
        %4591 = vmatpush1.msra.mxu0 %v2921
        %4592 = vmatprep.subr.mxu0 %v2920
        %4593 = vmatpush1.msra.mxu0 %v2919
        %4594 = vmatprep.subr.mxu0 %v2918
        %4595 = vmatpush1.msra.mxu0 %v2917
        %4596 = vmatprep.subr.mxu0 %v2916
        %4597 = vmatpush1.msra.mxu0 %v2915
        %4598 = vmatprep.subr.mxu0 %v2914
        %4599 = vmatpush1.msra.mxu0 %v2913
        %4600 = vmatprep.subr.mxu0 %v2912
        %4601 = vmatpush1.msra.mxu0 %v2911
        %4602 = vmatprep.subr.mxu0 %v2910
        %4603 = vmatpush1.msra.mxu0 %v2909
        %4604 = vmatprep.subr.mxu0 %v2908
        %4605 = vmatpush1.msra.mxu0 %v2907
        %4606 = vmatprep.subr.mxu0 %v2906
        %4607 = vmatpush1.msra.mxu0 %v2905
        %4608 = vmatprep.subr.mxu0 %v2904
        %4609 = vmatpush1.msra.mxu0 %v2903
        %4610 = vmatprep.subr.mxu0 %v2902
        %4611 = vmatpush1.msra.mxu0 %v2901
        %4612 = vmatprep.subr.mxu0 %v2900
        %4613 = vmatpush1.msra.mxu0 %v2899
        %4614 = vmatprep.subr.mxu0 %v2898
        %4615 = vmatpush1.msra.mxu0 %v2897
        %4616 = vmatprep.subr.mxu0 0.0
        %4617 = vmatpush2.msra.mxu0 0.0
        %4618 = vmatprep.subr.mxu0 0.0
        %4619 = vmatpush2.msra.mxu0 0.0
        %4620 = vmatprep.subr.mxu0 0.0
        %4621 = vmatpush2.msra.mxu0 0.0
        %4622 = vmatprep.subr.mxu0 0.0
        %4623 = vmatpush2.msra.mxu0 0.0
        %4624 = vmatprep.subr.mxu0 0.0
        %4625 = vmatpush2.msra.mxu0 0.0
        %4626 = vmatprep.subr.mxu0 0.0
        %4627 = vmatpush2.msra.mxu0 0.0
        %4628 = vmatprep.subr.mxu0 0.0
        %4629 = vmatpush2.msra.mxu0 0.0
        %4630 = vmatprep.subr.mxu0 0.0
        %4631 = vmatpush2.msra.mxu0 0.0
        %4632 = vmatprep.subr.mxu0 0.0
        %4633 = vmatpush2.msra.mxu0 0.0
        %4634 = vmatprep.subr.mxu0 0.0
        %4635 = vmatpush2.msra.mxu0 0.0
        %4636 = vmatprep.subr.mxu0 0.0
        %4637 = vmatpush2.msra.mxu0 0.0
        %4638 = vmatprep.subr.mxu0 0.0
        %4639 = vmatpush2.msra.mxu0 0.0
        %4640 = vmatprep.subr.mxu0 0.0
        %4641 = vmatpush2.msra.mxu0 0.0
        %4642 = vmatprep.subr.mxu0 0.0
        %4643 = vmatpush2.msra.mxu0 0.0
        %4644 = vmatprep.subr.mxu0 0.0
        %4645 = vmatpush2.msra.mxu0 0.0
        %4646 = vmatprep.subr.mxu0 0.0
        %4647 = vmatpush2.msra.mxu0 0.0
        %4648 = vmatprep.mubr.f32.mxu0 0.0
        %4649 = vmatmul.mubr.f32.gmra.mxu0 %v4570
        %v4650 = vpop.f32.mrf.mxu0
        %v4651 = vadd.f32 %v4577, %v4650
        %v4652 = vpop.f32.mrf.mxu0
        %v4653 = vadd.f32 %v4581, %v4652
        %4654 = vmatprep.mubr.f32.mxu0 0.0
        %4655 = vmatmul.mubr.f32.gmra.mxu0 %v4571
        %v4656 = vpop.f32.mrf.mxu0
        %v4657 = vadd.f32 %v4577, %v4656
        %v4658 = vpop.f32.mrf.mxu0
        %v4659 = vadd.f32 %v4581, %v4658
        %4660 = vmatprep.mubr.f32.mxu0 0.0
        %4661 = vmatmul.mubr.f32.gmra.mxu0 %v4572
        %v4662 = vpop.f32.mrf.mxu0
        %v4663 = vadd.f32 %v4577, %v4662
        %v4664 = vpop.f32.mrf.mxu0
        %v4665 = vadd.f32 %v4581, %v4664
        %4666 = vdwg.mxu0
        %v4667 = vmul.f32 %v4651, 0.5
        %v4668 = vmul.f32 %v4653, 0.5
        %v4669 = vmul.f32 %v4657, 0.5
        %v4670 = vmul.f32 %v4659, 0.5
        %v4671 = vmul.f32 %v4663, 0.5
        %v4672 = vmul.f32 %v4665, 0.5
        %v4673 = vmul.f32 %v4651, 0.70710677
        %v4674 = vmul.f32 %v4653, 0.70710677
        %v4675 = vmul.f32 %v4657, 0.70710677
        %v4676 = vmul.f32 %v4659, 0.70710677
        %v4677 = vmul.f32 %v4663, 0.70710677
        %v4678 = vmul.f32 %v4665, 0.70710677
        %v4679 = vand.u32 2147483647, %v4673
        %v4680 = vand.u32 2147483647, %v4674
        %v4681 = vand.u32 2147483647, %v4675
        %v4682 = vand.u32 2147483647, %v4676
        %v4683 = vand.u32 2147483647, %v4677
        %v4684 = vand.u32 2147483647, %v4678
        %v4685 = vmul.f32 %v4679, 0.3275911
        %v4686 = vmul.f32 %v4680, 0.3275911
        %v4687 = vmul.f32 %v4681, 0.3275911
        %v4688 = vmul.f32 %v4682, 0.3275911
        %v4689 = vmul.f32 %v4683, 0.3275911
        %v4690 = vmul.f32 %v4684, 0.3275911
        %v4691 = vadd.f32 %v4685, 1.0
        %v4692 = vadd.f32 %v4686, 1.0
        %v4693 = vadd.f32 %v4687, 1.0
        %v4694 = vadd.f32 %v4688, 1.0
        %v4695 = vadd.f32 %v4689, 1.0
        %v4696 = vadd.f32 %v4690, 1.0
        %v4697 = vrcp.pop %v4691
        %v4698 = vmul.f32 1.0, %v4697
        %v4699 = vrcp.pop %v4692
        %v4700 = vmul.f32 1.0, %v4699
        %v4701 = vrcp.pop %v4693
        %v4702 = vmul.f32 1.0, %v4701
        %v4703 = vrcp.pop %v4694
        %v4704 = vmul.f32 1.0, %v4703
        %v4705 = vrcp.pop %v4695
        %v4706 = vmul.f32 1.0, %v4705
        %v4707 = vrcp.pop %v4696
        %v4708 = vmul.f32 1.0, %v4707
        %v4709 = vmul.f32 %v4698, 1.0614054
        %v4710 = vmul.f32 %v4700, 1.0614054
        %v4711 = vmul.f32 %v4702, 1.0614054
        %v4712 = vmul.f32 %v4704, 1.0614054
        %v4713 = vmul.f32 %v4706, 1.0614054
        %v4714 = vmul.f32 %v4708, 1.0614054
        %v4715 = vadd.f32 %v4709, -1.4531521
        %v4716 = vadd.f32 %v4710, -1.4531521
        %v4717 = vadd.f32 %v4711, -1.4531521
        %v4718 = vadd.f32 %v4712, -1.4531521
        %v4719 = vadd.f32 %v4713, -1.4531521
        %v4720 = vadd.f32 %v4714, -1.4531521
        %v4721 = vmul.f32 %v4715, %v4698
        %v4722 = vmul.f32 %v4716, %v4700
        %v4723 = vmul.f32 %v4717, %v4702
        %v4724 = vmul.f32 %v4718, %v4704
        %v4725 = vmul.f32 %v4719, %v4706
        %v4726 = vmul.f32 %v4720, %v4708
        %v4727 = vadd.f32 %v4721, 1.4214138
        %v4728 = vadd.f32 %v4722, 1.4214138
        %v4729 = vadd.f32 %v4723, 1.4214138
        %v4730 = vadd.f32 %v4724, 1.4214138
        %v4731 = vadd.f32 %v4725, 1.4214138
        %v4732 = vadd.f32 %v4726, 1.4214138
        %v4733 = vmul.f32 %v4727, %v4698
        %v4734 = vmul.f32 %v4728, %v4700
        %v4735 = vmul.f32 %v4729, %v4702
        %v4736 = vmul.f32 %v4730, %v4704
        %v4737 = vmul.f32 %v4731, %v4706
        %v4738 = vmul.f32 %v4732, %v4708
        %v4739 = vadd.f32 %v4733, -0.28449672
        %v4740 = vadd.f32 %v4734, -0.28449672
        %v4741 = vadd.f32 %v4735, -0.28449672
        %v4742 = vadd.f32 %v4736, -0.28449672
        %v4743 = vadd.f32 %v4737, -0.28449672
        %v4744 = vadd.f32 %v4738, -0.28449672
        %v4745 = vmul.f32 %v4739, %v4698
        %v4746 = vmul.f32 %v4740, %v4700
        %v4747 = vmul.f32 %v4741, %v4702
        %v4748 = vmul.f32 %v4742, %v4704
        %v4749 = vmul.f32 %v4743, %v4706
        %v4750 = vmul.f32 %v4744, %v4708
        %v4751 = vadd.f32 %v4745, 0.2548296
        %v4752 = vadd.f32 %v4746, 0.2548296
        %v4753 = vadd.f32 %v4747, 0.2548296
        %v4754 = vadd.f32 %v4748, 0.2548296
        %v4755 = vadd.f32 %v4749, 0.2548296
        %v4756 = vadd.f32 %v4750, 0.2548296
        %v4757 = vmul.f32 %v4751, %v4698
        %v4758 = vmul.f32 %v4752, %v4700
        %v4759 = vmul.f32 %v4753, %v4702
        %v4760 = vmul.f32 %v4754, %v4704
        %v4761 = vmul.f32 %v4755, %v4706
        %v4762 = vmul.f32 %v4756, %v4708
        %v4763 = vsub.f32 0.0, %v4679
        %v4764 = vsub.f32 0.0, %v4680
        %v4765 = vsub.f32 0.0, %v4681
        %v4766 = vsub.f32 0.0, %v4682
        %v4767 = vsub.f32 0.0, %v4683
        %v4768 = vsub.f32 0.0, %v4684
        %v4769 = vmul.f32 %v4763, %v4679
        %v4770 = vmul.f32 %v4764, %v4680
        %v4771 = vmul.f32 %v4765, %v4681
        %v4772 = vmul.f32 %v4766, %v4682
        %v4773 = vmul.f32 %v4767, %v4683
        %v4774 = vmul.f32 %v4768, %v4684
        %v4775 = vmul.f32 %v4769, 1.442695
        %v4776 = vpow.pop %v4775
        %v4777 = vmul.f32 %v4770, 1.442695
        %v4778 = vpow.pop %v4777
        %v4779 = vmul.f32 %v4771, 1.442695
        %v4780 = vpow.pop %v4779
        %v4781 = vmul.f32 %v4772, 1.442695
        %v4782 = vpow.pop %v4781
        %v4783 = vmul.f32 %v4773, 1.442695
        %v4784 = vpow.pop %v4783
        %v4785 = vmul.f32 %v4774, 1.442695
        %v4786 = vpow.pop %v4785
        %v4787 = vmul.f32 %v4757, %v4776
        %v4788 = vmul.f32 %v4758, %v4778
        %v4789 = vmul.f32 %v4759, %v4780
        %v4790 = vmul.f32 %v4760, %v4782
        %v4791 = vmul.f32 %v4761, %v4784
        %v4792 = vmul.f32 %v4762, %v4786
        %v4793 = vsub.f32 1.0, %v4787
        %v4794 = vsub.f32 1.0, %v4788
        %v4795 = vsub.f32 1.0, %v4789
        %v4796 = vsub.f32 1.0, %v4790
        %v4797 = vsub.f32 1.0, %v4791
        %v4798 = vsub.f32 1.0, %v4792
        %vm4799 = vcmp.ge.f32.partialorder %v4673, 0.0
        %vm4800 = vcmp.ge.f32.partialorder %v4674, 0.0
        %vm4801 = vcmp.ge.f32.partialorder %v4675, 0.0
        %vm4802 = vcmp.ge.f32.partialorder %v4676, 0.0
        %vm4803 = vcmp.ge.f32.partialorder %v4677, 0.0
        %vm4804 = vcmp.ge.f32.partialorder %v4678, 0.0
        %v4805 = vsub.f32 0.0, %v4793
        %v4806 = vsub.f32 0.0, %v4794
        %v4807 = vsub.f32 0.0, %v4795
        %v4808 = vsub.f32 0.0, %v4796
        %v4809 = vsub.f32 0.0, %v4797
        %v4810 = vsub.f32 0.0, %v4798
        %v4811 = vsel %vm4799, %v4793, %v4805
        %v4812 = vsel %vm4800, %v4794, %v4806
        %v4813 = vsel %vm4801, %v4795, %v4807
        %v4814 = vsel %vm4802, %v4796, %v4808
        %v4815 = vsel %vm4803, %v4797, %v4809
        %v4816 = vsel %vm4804, %v4798, %v4810
        %v4817 = vadd.f32 %v4811, 1.0
        %v4818 = vadd.f32 %v4812, 1.0
        %v4819 = vadd.f32 %v4813, 1.0
        %v4820 = vadd.f32 %v4814, 1.0
        %v4821 = vadd.f32 %v4815, 1.0
        %v4822 = vadd.f32 %v4816, 1.0
        %v4823 = vmul.f32 %v4667, %v4817
        %v4824 = vmul.f32 %v4668, %v4818
        %v4825 = vmul.f32 %v4669, %v4819
        %v4826 = vmul.f32 %v4670, %v4820
        %v4827 = vmul.f32 %v4671, %v4821
        %v4828 = vmul.f32 %v4672, %v4822
        %v4830 = vlaneseq
        %v4831 = vshrl.u32 %v4830, 7
        %v4832 = vsub.s32 0, %v4831
        %v4833 = vrot.slane %v2965, %v4832
        %4835 = vmatprep.subr.mxu0 0.0
        %4836 = vmatpush1.msra.mxu0 %v2947
        %4837 = vmatprep.subr.mxu0 0.0
        %4838 = vmatpush1.msra.mxu0 %v2946
        %4839 = vmatprep.subr.mxu0 0.0
        %4840 = vmatpush1.msra.mxu0 %v2945
        %4841 = vmatprep.subr.mxu0 0.0
        %4842 = vmatpush1.msra.mxu0 %v2944
        %4843 = vmatprep.subr.mxu0 0.0
        %4844 = vmatpush1.msra.mxu0 %v2943
        %4845 = vmatprep.subr.mxu0 0.0
        %4846 = vmatpush1.msra.mxu0 %v2942
        %4847 = vmatprep.subr.mxu0 0.0
        %4848 = vmatpush1.msra.mxu0 %v2941
        %4849 = vmatprep.subr.mxu0 0.0
        %4850 = vmatpush1.msra.mxu0 %v2940
        %4851 = vmatprep.subr.mxu0 0.0
        %4852 = vmatpush1.msra.mxu0 %v2939
        %4853 = vmatprep.subr.mxu0 0.0
        %4854 = vmatpush1.msra.mxu0 %v2938
        %4855 = vmatprep.subr.mxu0 0.0
        %4856 = vmatpush1.msra.mxu0 %v2937
        %4857 = vmatprep.subr.mxu0 0.0
        %4858 = vmatpush1.msra.mxu0 %v2936
        %4859 = vmatprep.subr.mxu0 0.0
        %4860 = vmatpush1.msra.mxu0 %v2935
        %4861 = vmatprep.subr.mxu0 0.0
        %4862 = vmatpush1.msra.mxu0 %v2934
        %4863 = vmatprep.subr.mxu0 0.0
        %4864 = vmatpush1.msra.mxu0 %v2933
        %4865 = vmatprep.subr.mxu0 0.0
        %4866 = vmatpush1.msra.mxu0 %v2932
        %4867 = vmatprep.subr.mxu0 0.0
        %4868 = vmatpush2.msra.mxu0 %v2963
        %4869 = vmatprep.subr.mxu0 0.0
        %4870 = vmatpush2.msra.mxu0 %v2962
        %4871 = vmatprep.subr.mxu0 0.0
        %4872 = vmatpush2.msra.mxu0 %v2961
        %4873 = vmatprep.subr.mxu0 0.0
        %4874 = vmatpush2.msra.mxu0 %v2960
        %4875 = vmatprep.subr.mxu0 0.0
        %4876 = vmatpush2.msra.mxu0 %v2959
        %4877 = vmatprep.subr.mxu0 0.0
        %4878 = vmatpush2.msra.mxu0 %v2958
        %4879 = vmatprep.subr.mxu0 0.0
        %4880 = vmatpush2.msra.mxu0 %v2957
        %4881 = vmatprep.subr.mxu0 0.0
        %4882 = vmatpush2.msra.mxu0 %v2956
        %4883 = vmatprep.subr.mxu0 0.0
        %4884 = vmatpush2.msra.mxu0 %v2955
        %4885 = vmatprep.subr.mxu0 0.0
        %4886 = vmatpush2.msra.mxu0 %v2954
        %4887 = vmatprep.subr.mxu0 0.0
        %4888 = vmatpush2.msra.mxu0 %v2953
        %4889 = vmatprep.subr.mxu0 0.0
        %4890 = vmatpush2.msra.mxu0 %v2952
        %4891 = vmatprep.subr.mxu0 0.0
        %4892 = vmatpush2.msra.mxu0 %v2951
        %4893 = vmatprep.subr.mxu0 0.0
        %4894 = vmatpush2.msra.mxu0 %v2950
        %4895 = vmatprep.subr.mxu0 0.0
        %4896 = vmatpush2.msra.mxu0 %v2949
        %4897 = vmatprep.subr.mxu0 0.0
        %4898 = vmatpush2.msra.mxu0 %v2948
        %4899 = vmatprep.mubr.f32.mxu0 %v4824
        %4900 = vmatmul.mubr.f32.gmra.mxu0 %v4823
        %v4901 = vpop.f32.mrf.mxu0
        %v4902 = vadd.f32 %v4833, %v4901
        %v4903 = vpop.f32.mrf.mxu0
        %4904 = vmatprep.mubr.f32.mxu0 %v4826
        %4905 = vmatmul.mubr.f32.gmra.mxu0 %v4825
        %v4906 = vpop.f32.mrf.mxu0
        %v4907 = vpop.f32.mrf.mxu0
        %4908 = vmatprep.mubr.f32.mxu0 %v4828
        %4909 = vmatmul.mubr.f32.gmra.mxu0 %v4827
        %v4910 = vpop.f32.mrf.mxu0
        %v4911 = vpop.f32.mrf.mxu0
        %4912 = vdwg.mxu0
        %v4913 = vadd.f32 %v4519, %v4902
        %v4914 = vld [vmem:[%s15] sm:$0x1]
        %v4915 = vld [vmem:[%s16] sm:$0x1]
        %vm4916 = vcmask 1040384
        %v4917 = vsel %vm4916, %v4913, 0.0
        %4918 = vadd.xlane.f32.xlu0 %v4917
        %v4919 = vpop.xlane.xlu0 %4918
        %v4920 = vmul.f32 %v4919, %v869
        %v4921 = vsub.f32 %v4913, %v4920
        %v4922 = vmul.f32 %v4921, %v4921
        %v4923 = vsel %vm4916, %v4922, 0.0
        %4924 = vadd.xlane.f32.xlu0 %v4923
        %v4925 = vpop.xlane.xlu0 %4924
        %v4926 = vmul.f32 %v4925, %v869
        %v4927 = vadd.f32 %v4926, 1e-05
        %v4928 = vrsqrt.pop %v4927
        %v4929 = vmul.f32 %v4921, %v4928
        %v4930 = vmul.f32 %v4929, %v4914
        %v4931 = vadd.f32 %v4930, %v4915
        %v4932 = vld [vmem:[%s17] sm:$0xff]
        %v4933 = vld [vmem:[%s17 + $0x8] sm:$0xff]
        %v4934 = vld [vmem:[%s17 + $0x10] sm:$0xff]
        %v4935 = vld [vmem:[%s17 + $0x18] sm:$0xff]
        %v4936 = vld [vmem:[%s17 + $0x20] sm:$0xff]
        %v4937 = vld [vmem:[%s17 + $0x28] sm:$0xff]
        %v4938 = vld [vmem:[%s17 + $0x30] sm:$0xff]
        %v4939 = vld [vmem:[%s17 + $0x38] sm:$0xff]
        %v4940 = vld [vmem:[%s17 + $0x40] sm:$0xff]
        %v4941 = vld [vmem:[%s17 + $0x48] sm:$0xff]
        %v4942 = vld [vmem:[%s17 + $0x50] sm:$0xff]
        %v4943 = vld [vmem:[%s17 + $0x58] sm:$0xff]
        %v4944 = vld [vmem:[%s17 + $0x60] sm:$0xff]
        %v4945 = vld [vmem:[%s17 + $0x68] sm:$0xff]
        %v4946 = vld [vmem:[%s17 + $0x70] sm:$0xff]
        %v4947 = vld [vmem:[%s17 + $0x78] sm:$0xff]
        %v4948 = vld [vmem:[%s18] sm:$0x1]
        %4949 = vmatprep.subr.mxu0 0.0
        %4950 = vmatpush1.msra.mxu0 %v4947
        %4951 = vmatprep.subr.mxu0 0.0
        %4952 = vmatpush1.msra.mxu0 %v4946
        %4953 = vmatprep.subr.mxu0 0.0
        %4954 = vmatpush1.msra.mxu0 %v4945
        %4955 = vmatprep.subr.mxu0 0.0
        %4956 = vmatpush1.msra.mxu0 %v4944
        %4957 = vmatprep.subr.mxu0 0.0
        %4958 = vmatpush1.msra.mxu0 %v4943
        %4959 = vmatprep.subr.mxu0 0.0
        %4960 = vmatpush1.msra.mxu0 %v4942
        %4961 = vmatprep.subr.mxu0 0.0
        %4962 = vmatpush1.msra.mxu0 %v4941
        %4963 = vmatprep.subr.mxu0 0.0
        %4964 = vmatpush1.msra.mxu0 %v4940
        %4965 = vmatprep.subr.mxu0 0.0
        %4966 = vmatpush1.msra.mxu0 %v4939
        %4967 = vmatprep.subr.mxu0 0.0
        %4968 = vmatpush1.msra.mxu0 %v4938
        %4969 = vmatprep.subr.mxu0 0.0
        %4970 = vmatpush1.msra.mxu0 %v4937
        %4971 = vmatprep.subr.mxu0 0.0
        %4972 = vmatpush1.msra.mxu0 %v4936
        %4973 = vmatprep.subr.mxu0 0.0
        %4974 = vmatpush1.msra.mxu0 %v4935
        %4975 = vmatprep.subr.mxu0 0.0
        %4976 = vmatpush1.msra.mxu0 %v4934
        %4977 = vmatprep.subr.mxu0 0.0
        %4978 = vmatpush1.msra.mxu0 %v4933
        %4979 = vmatprep.subr.mxu0 0.0
        %4980 = vmatpush1.msra.mxu0 %v4932
        %4981 = vmatprep.subr.mxu0 0.0
        %4982 = vmatpush2.msra.mxu0 0.0
        %4983 = vmatprep.subr.mxu0 0.0
        %4984 = vmatpush2.msra.mxu0 0.0
        %4985 = vmatprep.subr.mxu0 0.0
        %4986 = vmatpush2.msra.mxu0 0.0
        %4987 = vmatprep.subr.mxu0 0.0
        %4988 = vmatpush2.msra.mxu0 0.0
        %4989 = vmatprep.subr.mxu0 0.0
        %4990 = vmatpush2.msra.mxu0 0.0
        %4991 = vmatprep.subr.mxu0 0.0
        %4992 = vmatpush2.msra.mxu0 0.0
        %4993 = vmatprep.subr.mxu0 0.0
        %4994 = vmatpush2.msra.mxu0 0.0
        %4995 = vmatprep.subr.mxu0 0.0
        %4996 = vmatpush2.msra.mxu0 0.0
        %4997 = vmatprep.subr.mxu0 0.0
        %4998 = vmatpush2.msra.mxu0 0.0
        %4999 = vmatprep.subr.mxu0 0.0
        %5000 = vmatpush2.msra.mxu0 0.0
        %5001 = vmatprep.subr.mxu0 0.0
        %5002 = vmatpush2.msra.mxu0 0.0
        %5003 = vmatprep.subr.mxu0 0.0
        %5004 = vmatpush2.msra.mxu0 0.0
        %5005 = vmatprep.subr.mxu0 0.0
        %5006 = vmatpush2.msra.mxu0 0.0
        %5007 = vmatprep.subr.mxu0 0.0
        %5008 = vmatpush2.msra.mxu0 0.0
        %5009 = vmatprep.subr.mxu0 0.0
        %5010 = vmatpush2.msra.mxu0 0.0
        %5011 = vmatprep.subr.mxu0 0.0
        %5012 = vmatpush2.msra.mxu0 0.0
        %5013 = vmatprep.mubr.f32.mxu0 0.0
        %5014 = vmatmul.mubr.f32.gmra.mxu0 %v4931
        %v5015 = vpop.f32.mrf.mxu0
        %v5016 = vadd.f32 %v4948, %v5015
        %v5017 = vpop.f32.mrf.mxu0
        %5018 = vdwg.mxu0
        %5019 = vst [vmem:[%s594] sm:$0x1] %v5016
        %s5020 = sand.u32 %s445, 1
        %s5021 = scalar_lea.sflag [#allocation3], %s5020
        %s5022 = sand.u32 %s445, 1
        %s5023 = scalar_lea.vmem [#allocation2], %s5022
        // Predicated region
        $region97: #{vit_forward.1} parent=95 // pred_check
          %p5024 = pneg %p455
        $region98: #{vit_forward.1} parent=95 // pred_check_branch
          %5026 = sbr.rel (%p5024) target = $region100
        $region99: #{vit_forward.1} parent=95 // pred_region
          %s5028 = ssub.s32 16, 16
          %5029 = vsyncadd %s5021, %s5028
          %s5030 = smul.addr %s33, 16
          %s5031 = scalar_lea.hbm %s19, %s5030
          %s5033 = sshll.u32 %s5023, 4
          %s5034 = int_to_ptr.vmem [resolvable:$true] %s5033
          %5036 = dma.vmem_to_hbm [thread:$0]  %s5034, 16, %s5031, %s5021
        $region100: #{vit_forward.1} parent=95 // pred_fallthru
          _
      $region96: #{vit_forward.1} parent=5 // pred_fallthru
        _
      %p5037 = scmp.le.s32.totalorder 2, %s28
      // Predicated region
      $region101: #{vit_forward.1} parent=5 // pred_check
        %p5038 = pneg %p5037
      $region102: #{vit_forward.1} parent=5 // pred_check_branch
        %5040 = sbr.rel (%p5038) target = $region104
      $region103: #{vit_forward.1} parent=5 // pred_region
        %s5041 = ssub.s32 %s28, 2
        // Predicated region
        $region105: #{vit_forward.1} parent=103 // pred_check
          %p5042 = pneg %p461
        $region106: #{vit_forward.1} parent=103 // pred_check_branch
          %5044 = sbr.rel (%p5042) target = $region108
        $region107: #{vit_forward.1} parent=103 // pred_region
          %s5045 = sand.u32 %s446, 1
          %s5046 = scalar_lea.sflag [#allocation3], %s5045
          %s5047 = sand.u32 %s446, 1
          %s5048 = scalar_lea.vmem [#allocation2], %s5047
          %5049 = dma.done %s5046, 16
        $region108: #{vit_forward.1} parent=103 // pred_fallthru
          _
      $region104: #{vit_forward.1} parent=5 // pred_fallthru
        _
    $region6: #{vit_forward.1} parent=1 // loop_footer
      %s32 = sadd.s32 1, %s28
    $region7: #{vit_forward.1} parent=1 // loop_footer_branch
      %27 = sbr.rel target = $region3
    $region8: #{vit_forward.1} parent=1 // loop_exit
      _
    %5050 = vsyncpa [#allocation3], 1
    %s5051 = scalar_lea.sflag [#allocation3], 1
    %5052 = vsyncpa %s5051, 1

</llo_original>
